<compile_context>
chip_gen: v5e
topology: v5e:2x2
jax: 0.10.0
libtpu: 0.0.40
codegen_flags: <defaults>
</compile_context>

<pallas_src>
import math
import functools

import jax
import jax.numpy as jnp
from jax.experimental import pallas as pl
from jax.experimental.pallas import tpu as pltpu


def _sine_expand_kernel(y_ref, x_ref, inv_ref, ph_ref, out_ref, *,
                        num_pos_feats, chunk_c, chunk_l):
    # y_ref, x_ref: (1, 1, tile_n) f32  flattened y/x embeddings for this tile
    # inv_ref, ph_ref: (F, 1) f32      per-channel 1/dim_t and sin phase (0 | pi/2)
    # out_ref: (1, 2F, tile_n)         lane-dense NC(HW) output tile
    F = num_pos_feats
    tile_n = y_ref.shape[-1]

    inv_all = inv_ref[...]                                   # (F, 1)
    ph_all = ph_ref[...]                                     # (F, 1)

    for l0 in range(0, tile_n, chunk_l):
        nl = min(chunk_l, tile_n - l0)
        # Hoisted sublane broadcast of the (1, nl) embeddings to a full-height
        # (chunk_c, nl) vreg block (JAX does not CSE broadcast_in_dim, so do it
        # once per lane chunk, not once per channel chunk).
        y_b = jnp.broadcast_to(y_ref[0, :, l0:l0 + nl], (chunk_c, nl))
        x_b = jnp.broadcast_to(x_ref[0, :, l0:l0 + nl], (chunk_c, nl))
        for c0 in range(0, F, chunk_c):
            nc = min(chunk_c, F - c0)
            yy = y_b if nc == chunk_c else y_b[:nc]
            xx = x_b if nc == chunk_c else x_b[:nc]
            inv_c = inv_all[c0:c0 + nc]                      # (nc, 1)
            ph_c = ph_all[c0:c0 + nc]                        # (nc, 1)
            # Channels [0:F) = pos_y, [F:2F) = pos_x; odd channels carry a
            # +pi/2 phase so a single sin per element covers both sin and cos.
            out_ref[0, c0:c0 + nc, l0:l0 + nl] = (
                jnp.sin(yy * inv_c + ph_c).astype(out_ref.dtype))
            out_ref[0, F + c0:F + c0 + nc, l0:l0 + nl] = (
                jnp.sin(xx * inv_c + ph_c).astype(out_ref.dtype))


def _vmem_capacity_bytes():
    try:
        return int(pltpu.get_tpu_info().vmem_capacity_bytes)
    except Exception:
        return 64 * 1024 * 1024      # conservative (v7x) default


def _choose_tile_n(B, HW, C, out_itemsize, vmem_cap):
    """Largest lane tile (multiple of 128 dividing H*W) within the VMEM budget."""
    budget = min(8 << 20, max(2 << 20, vmem_cap // 12))      # per output tile
    max_tn = max(128, budget // (C * out_itemsize))
    cands = [d for d in range(128, min(HW, max_tn) + 1, 128) if HW % d == 0]
    if not cands:
        # TODO(synk): pad H*W up to a multiple of 128 for very large frames
        # whose H*W has no usable 128-aligned divisor; one tile per image is
        # still correct for moderate sizes.
        return HW
    tn = max(cands)
    # v7x megacore: guarantee at least 2 grid points when possible.
    if B * (HW // tn) < 2:
        smaller = [d for d in cands if d <= HW // 2]
        if smaller:
            tn = max(smaller)
    return tn


def position_embedding_sine(x, num_pos_feats=64, temperature=10000,
                            normalize=False, scale=None,
                            out_dtype=jnp.float32, tile_n=None):
    """x: (B, H, W) -> (B, 2*num_pos_feats, H, W), matching the PyTorch module."""
    if scale is not None and normalize is False:
        raise ValueError("normalize should be True if scale is passed")
    if scale is None:
        scale = 2 * math.pi

    x = jnp.asarray(x, jnp.float32)
    B, H, W = x.shape
    F = num_pos_feats
    C = 2 * F
    HW = H * W

    # ---- cumsum / normalize prologue (exact PyTorch ops; <4% of HBM traffic) ----
    y_embed = jnp.cumsum(x, axis=1, dtype=jnp.float32)
    x_embed = jnp.cumsum(x, axis=2, dtype=jnp.float32)
    if normalize:
        eps = 1e-6
        y_embed = y_embed / (y_embed[:, -1:, :] + eps) * scale
        x_embed = x_embed / (x_embed[:, :, -1:] + eps) * scale
    # Free trailing-dim merges: the kernel consumes lane-dense flat rows.
    y_flat = y_embed.reshape(B, 1, HW)
    x_flat = x_embed.reshape(B, 1, HW)

    # Per-channel constants: 1/dim_t (dim_t built exactly like the reference)
    # and the sin phase (0 for even/sin channels, pi/2 for odd/cos channels).
    dim_t = jnp.arange(F, dtype=jnp.float32)
    dim_t = temperature ** (2.0 * jnp.floor(dim_t / 2.0) / float(F))
    inv_dim_t = (1.0 / dim_t).reshape(F, 1).astype(jnp.float32)
    phase = ((jnp.arange(F) % 2).astype(jnp.float32) * (math.pi / 2.0)).reshape(F, 1)

    out_dtype = jnp.dtype(out_dtype)
    vmem_cap = _vmem_capacity_bytes()
    if tile_n is None:
        tile_n = _choose_tile_n(B, HW, C, out_dtype.itemsize, vmem_cap)
    if HW % tile_n != 0:
        raise ValueError(f"tile_n={tile_n} must divide H*W={HW}")

    tile_out_bytes = C * tile_n * out_dtype.itemsize
    vmem_limit = int(min(vmem_cap, max(32 << 20, 4 * tile_out_bytes)))

    # Channel chunks align with the native sublane tile (8 rows f32 / 16 bf16);
    # lane chunks keep each statement's vreg footprint around 64 KiB.
    chunk_c = 16 if out_dtype.itemsize < 4 else 8
    chunk_l = min(tile_n, 16384 // chunk_c)

    kernel = functools.partial(
        _sine_expand_kernel, num_pos_feats=F, chunk_c=chunk_c, chunk_l=chunk_l)

    out_flat = pl.pallas_call(
        kernel,
        out_shape=jax.ShapeDtypeStruct((B, C, HW), out_dtype),
        grid=(B, HW // tile_n),
        in_specs=[
            pl.BlockSpec((1, 1, tile_n), lambda b, t: (b, 0, t)),   # y_embed (flat)
            pl.BlockSpec((1, 1, tile_n), lambda b, t: (b, 0, t)),   # x_embed (flat)
            pl.BlockSpec((F, 1), lambda b, t: (0, 0)),              # 1/dim_t (tiny, resident)
            pl.BlockSpec((F, 1), lambda b, t: (0, 0)),              # phase   (tiny, resident)
        ],
        out_specs=pl.BlockSpec((1, C, tile_n), lambda b, t: (b, 0, t)),
        compiler_params=pltpu.CompilerParams(
            dimension_semantics=("parallel", "parallel"),
            vmem_limit_bytes=vmem_limit,
        ),
    )(y_flat, x_flat, inv_dim_t, phase)

    # Free trailing-dim split back to NCHW; no transpose, no extra HBM pass.
    return out_flat.reshape(B, C, H, W)


def _reference(x, num_pos_feats=64, temperature=10000, normalize=False, scale=None):
    # Pure-JAX reference mirroring the PyTorch forward pass exactly.
    if scale is None:
        scale = 2 * math.pi
    B, H, W = x.shape
    F = num_pos_feats
    y_embed = jnp.cumsum(x, axis=1, dtype=jnp.float32)
    x_embed = jnp.cumsum(x, axis=2, dtype=jnp.float32)
    if normalize:
        eps = 1e-6
        y_embed = y_embed / (y_embed[:, -1:, :] + eps) * scale
        x_embed = x_embed / (x_embed[:, :, -1:] + eps) * scale
    dim_t = jnp.arange(F, dtype=jnp.float32)
    dim_t = temperature ** (2 * (jnp.floor(dim_t / 2)) / F)
    pos_x = x_embed[:, :, :, None] / dim_t
    pos_y = y_embed[:, :, :, None] / dim_t
    pos_x = jnp.stack((jnp.sin(pos_x[:, :, :, 0::2]),
                       jnp.cos(pos_x[:, :, :, 1::2])), axis=4).reshape(B, H, W, F)
    pos_y = jnp.stack((jnp.sin(pos_y[:, :, :, 0::2]),
                       jnp.cos(pos_y[:, :, :, 1::2])), axis=4).reshape(B, H, W, F)
    pos = jnp.concatenate((pos_y, pos_x), axis=3).transpose(0, 3, 1, 2)
    return pos


if __name__ == "__main__":
    key = jax.random.PRNGKey(0)
    B, H, W = 2, 16, 16
    F = 64

    # Arbitrary float "mask" (typical usage is 0/1; floats exercise generality).
    x = jax.random.uniform(key, (B, H, W), dtype=jnp.float32)

    # 1) Default path (normalize=False, auto tile size).
    out = jax.block_until_ready(position_embedding_sine(x, num_pos_feats=F))
    ref = _reference(x, num_pos_feats=F)
    assert out.shape == (B, 2 * F, H, W)
    assert jnp.allclose(out, ref, atol=1e-4, rtol=1e-4), \
        float(jnp.max(jnp.abs(out - ref)))

    # 2) Normalized path, explicit small tile (exercises the multi-tile grid).
    out_n = jax.block_until_ready(
        position_embedding_sine(x, num_pos_feats=F, normalize=True, tile_n=128))
    ref_n = _reference(x, num_pos_feats=F, normalize=True)
    assert jnp.allclose(out_n, ref_n, atol=1e-4, rtol=1e-4), \
        float(jnp.max(jnp.abs(out_n - ref_n)))

    # 3) bfloat16 output (halves HBM writeback on this store-bound op).
    out_bf = jax.block_until_ready(
        position_embedding_sine(x, num_pos_feats=F, normalize=True,
                                out_dtype=jnp.bfloat16))
    assert out_bf.dtype == jnp.bfloat16
    assert jnp.allclose(out_bf.astype(jnp.float32), ref_n, atol=5e-2, rtol=0), \
        float(jnp.max(jnp.abs(out_bf.astype(jnp.float32) - ref_n)))

    print("KERNEL_OK")
</pallas_src>

<mosaic_0001>
module attributes {stable_mosaic.version = 11 : i64} {
  func.func @_sine_expand_kernel(%arg0: i32, %arg1: i32, %arg2: memref<1x1x256xf32, #tpu.memory_space<vmem>>, %arg3: memref<1x1x256xf32, #tpu.memory_space<vmem>>, %arg4: memref<64x1xf32, #tpu.memory_space<vmem>>, %arg5: memref<64x1xf32, #tpu.memory_space<vmem>>, %arg6: memref<1x128x256xf32, #tpu.memory_space<vmem>>) attributes {dimension_semantics = [#tpu.dimension_semantics<parallel>, #tpu.dimension_semantics<parallel>], iteration_bounds = array<i64: 2, 1>, scalar_prefetch = 0 : i64, scratch_operands = 0 : i64, tpu.core_type = #tpu.core_type<tc>, window_params = [{transform_indices = @transform_0, window_bounds = array<i64: 1, 1, 256>}, {transform_indices = @transform_1, window_bounds = array<i64: 1, 1, 256>}, {pipeline_mode = #tpu.pipeline_mode<synchronous>, transform_indices = @transform_2, window_bounds = array<i64: 64, 1>}, {pipeline_mode = #tpu.pipeline_mode<synchronous>, transform_indices = @transform_3, window_bounds = array<i64: 64, 1>}, {transform_indices = @transform_4, window_bounds = array<i64: 1, 128, 256>}]} {
    %c0 = arith.constant 0 : index
    %c0_0 = arith.constant 0 : index
    %0 = vector.load %arg4[%c0, %c0_0] : memref<64x1xf32, #tpu.memory_space<vmem>>, vector<64x1xf32>
    %c0_1 = arith.constant 0 : index
    %c0_2 = arith.constant 0 : index
    %1 = vector.load %arg5[%c0_1, %c0_2] : memref<64x1xf32, #tpu.memory_space<vmem>>, vector<64x1xf32>
    %c0_3 = arith.constant 0 : index
    %c0_4 = arith.constant 0 : index
    %c0_5 = arith.constant 0 : index
    %2 = vector.load %arg2[%c0_3, %c0_4, %c0_5] : memref<1x1x256xf32, #tpu.memory_space<vmem>>, vector<1x1x256xf32>
    %3 = vector.shape_cast %2 : vector<1x1x256xf32> to vector<1x256xf32>
    %4 = vector.shape_cast %3 : vector<1x256xf32> to vector<1x256xf32>
    %5 = vector.broadcast %4 : vector<1x256xf32> to vector<8x256xf32>
    %c0_6 = arith.constant 0 : index
    %c0_7 = arith.constant 0 : index
    %c0_8 = arith.constant 0 : index
    %6 = vector.load %arg3[%c0_6, %c0_7, %c0_8] : memref<1x1x256xf32, #tpu.memory_space<vmem>>, vector<1x1x256xf32>
    %7 = vector.shape_cast %6 : vector<1x1x256xf32> to vector<1x256xf32>
    %8 = vector.shape_cast %7 : vector<1x256xf32> to vector<1x256xf32>
    %9 = vector.broadcast %8 : vector<1x256xf32> to vector<8x256xf32>
    %10 = vector.extract_strided_slice %0 {offsets = [0, 0], sizes = [8, 1], strides = [1, 1]} : vector<64x1xf32> to vector<8x1xf32>
    %11 = vector.extract_strided_slice %1 {offsets = [0, 0], sizes = [8, 1], strides = [1, 1]} : vector<64x1xf32> to vector<8x1xf32>
    %12 = vector.broadcast %10 : vector<8x1xf32> to vector<8x256xf32>
    %13 = arith.mulf %5, %12 : vector<8x256xf32>
    %14 = vector.broadcast %11 : vector<8x1xf32> to vector<8x256xf32>
    %15 = arith.addf %13, %14 : vector<8x256xf32>
    %16 = math.sin %15 : vector<8x256xf32>
    %c0_9 = arith.constant 0 : index
    %c0_10 = arith.constant 0 : index
    %c0_11 = arith.constant 0 : index
    %17 = vector.load %arg6[%c0_9, %c0_10, %c0_11] : memref<1x128x256xf32, #tpu.memory_space<vmem>>, vector<1x8x256xf32>
    %18 = vector.shape_cast %17 : vector<1x8x256xf32> to vector<8x256xf32>
    %19 = vector.shape_cast %16 : vector<8x256xf32> to vector<1x8x256xf32>
    tpu.vector_store %arg6[%c0_9, %c0_10, %c0_11], %19 {strides = array<i32>} : memref<1x128x256xf32, #tpu.memory_space<vmem>>, vector<1x8x256xf32>,
    %20 = vector.broadcast %10 : vector<8x1xf32> to vector<8x256xf32>
    %21 = arith.mulf %9, %20 : vector<8x256xf32>
    %22 = vector.broadcast %11 : vector<8x1xf32> to vector<8x256xf32>
    %23 = arith.addf %21, %22 : vector<8x256xf32>
    %24 = math.sin %23 : vector<8x256xf32>
    %c0_12 = arith.constant 0 : index
    %c64 = arith.constant 64 : index
    %c0_13 = arith.constant 0 : index
    %25 = vector.load %arg6[%c0_12, %c64, %c0_13] : memref<1x128x256xf32, #tpu.memory_space<vmem>>, vector<1x8x256xf32>
    %26 = vector.shape_cast %25 : vector<1x8x256xf32> to vector<8x256xf32>
    %27 = vector.shape_cast %24 : vector<8x256xf32> to vector<1x8x256xf32>
    tpu.vector_store %arg6[%c0_12, %c64, %c0_13], %27 {strides = array<i32>} : memref<1x128x256xf32, #tpu.memory_space<vmem>>, vector<1x8x256xf32>,
    %28 = vector.extract_strided_slice %0 {offsets = [8, 0], sizes = [8, 1], strides = [1, 1]} : vector<64x1xf32> to vector<8x1xf32>
    %29 = vector.extract_strided_slice %1 {offsets = [8, 0], sizes = [8, 1], strides = [1, 1]} : vector<64x1xf32> to vector<8x1xf32>
    %30 = vector.broadcast %28 : vector<8x1xf32> to vector<8x256xf32>
    %31 = arith.mulf %5, %30 : vector<8x256xf32>
    %32 = vector.broadcast %29 : vector<8x1xf32> to vector<8x256xf32>
    %33 = arith.addf %31, %32 : vector<8x256xf32>
    %34 = math.sin %33 : vector<8x256xf32>
    %c0_14 = arith.constant 0 : index
    %c8 = arith.constant 8 : index
    %c0_15 = arith.constant 0 : index
    %35 = vector.load %arg6[%c0_14, %c8, %c0_15] : memref<1x128x256xf32, #tpu.memory_space<vmem>>, vector<1x8x256xf32>
    %36 = vector.shape_cast %35 : vector<1x8x256xf32> to vector<8x256xf32>
    %37 = vector.shape_cast %34 : vector<8x256xf32> to vector<1x8x256xf32>
    tpu.vector_store %arg6[%c0_14, %c8, %c0_15], %37 {strides = array<i32>} : memref<1x128x256xf32, #tpu.memory_space<vmem>>, vector<1x8x256xf32>,
    %38 = vector.broadcast %28 : vector<8x1xf32> to vector<8x256xf32>
    %39 = arith.mulf %9, %38 : vector<8x256xf32>
    %40 = vector.broadcast %29 : vector<8x1xf32> to vector<8x256xf32>
    %41 = arith.addf %39, %40 : vector<8x256xf32>
    %42 = math.sin %41 : vector<8x256xf32>
    %c0_16 = arith.constant 0 : index
    %c72 = arith.constant 72 : index
    %c0_17 = arith.constant 0 : index
    %43 = vector.load %arg6[%c0_16, %c72, %c0_17] : memref<1x128x256xf32, #tpu.memory_space<vmem>>, vector<1x8x256xf32>
    %44 = vector.shape_cast %43 : vector<1x8x256xf32> to vector<8x256xf32>
    %45 = vector.shape_cast %42 : vector<8x256xf32> to vector<1x8x256xf32>
    tpu.vector_store %arg6[%c0_16, %c72, %c0_17], %45 {strides = array<i32>} : memref<1x128x256xf32, #tpu.memory_space<vmem>>, vector<1x8x256xf32>,
    %46 = vector.extract_strided_slice %0 {offsets = [16, 0], sizes = [8, 1], strides = [1, 1]} : vector<64x1xf32> to vector<8x1xf32>
    %47 = vector.extract_strided_slice %1 {offsets = [16, 0], sizes = [8, 1], strides = [1, 1]} : vector<64x1xf32> to vector<8x1xf32>
    %48 = vector.broadcast %46 : vector<8x1xf32> to vector<8x256xf32>
    %49 = arith.mulf %5, %48 : vector<8x256xf32>
    %50 = vector.broadcast %47 : vector<8x1xf32> to vector<8x256xf32>
    %51 = arith.addf %49, %50 : vector<8x256xf32>
    %52 = math.sin %51 : vector<8x256xf32>
    %c0_18 = arith.constant 0 : index
    %c16 = arith.constant 16 : index
    %c0_19 = arith.constant 0 : index
    %53 = vector.load %arg6[%c0_18, %c16, %c0_19] : memref<1x128x256xf32, #tpu.memory_space<vmem>>, vector<1x8x256xf32>
    %54 = vector.shape_cast %53 : vector<1x8x256xf32> to vector<8x256xf32>
    %55 = vector.shape_cast %52 : vector<8x256xf32> to vector<1x8x256xf32>
    tpu.vector_store %arg6[%c0_18, %c16, %c0_19], %55 {strides = array<i32>} : memref<1x128x256xf32, #tpu.memory_space<vmem>>, vector<1x8x256xf32>,
    %56 = vector.broadcast %46 : vector<8x1xf32> to vector<8x256xf32>
    %57 = arith.mulf %9, %56 : vector<8x256xf32>
    %58 = vector.broadcast %47 : vector<8x1xf32> to vector<8x256xf32>
    %59 = arith.addf %57, %58 : vector<8x256xf32>
    %60 = math.sin %59 : vector<8x256xf32>
    %c0_20 = arith.constant 0 : index
    %c80 = arith.constant 80 : index
    %c0_21 = arith.constant 0 : index
    %61 = vector.load %arg6[%c0_20, %c80, %c0_21] : memref<1x128x256xf32, #tpu.memory_space<vmem>>, vector<1x8x256xf32>
    %62 = vector.shape_cast %61 : vector<1x8x256xf32> to vector<8x256xf32>
    %63 = vector.shape_cast %60 : vector<8x256xf32> to vector<1x8x256xf32>
    tpu.vector_store %arg6[%c0_20, %c80, %c0_21], %63 {strides = array<i32>} : memref<1x128x256xf32, #tpu.memory_space<vmem>>, vector<1x8x256xf32>,
    %64 = vector.extract_strided_slice %0 {offsets = [24, 0], sizes = [8, 1], strides = [1, 1]} : vector<64x1xf32> to vector<8x1xf32>
    %65 = vector.extract_strided_slice %1 {offsets = [24, 0], sizes = [8, 1], strides = [1, 1]} : vector<64x1xf32> to vector<8x1xf32>
    %66 = vector.broadcast %64 : vector<8x1xf32> to vector<8x256xf32>
    %67 = arith.mulf %5, %66 : vector<8x256xf32>
    %68 = vector.broadcast %65 : vector<8x1xf32> to vector<8x256xf32>
    %69 = arith.addf %67, %68 : vector<8x256xf32>
    %70 = math.sin %69 : vector<8x256xf32>
    %c0_22 = arith.constant 0 : index
    %c24 = arith.constant 24 : index
    %c0_23 = arith.constant 0 : index
    %71 = vector.load %arg6[%c0_22, %c24, %c0_23] : memref<1x128x256xf32, #tpu.memory_space<vmem>>, vector<1x8x256xf32>
    %72 = vector.shape_cast %71 : vector<1x8x256xf32> to vector<8x256xf32>
    %73 = vector.shape_cast %70 : vector<8x256xf32> to vector<1x8x256xf32>
    tpu.vector_store %arg6[%c0_22, %c24, %c0_23], %73 {strides = array<i32>} : memref<1x128x256xf32, #tpu.memory_space<vmem>>, vector<1x8x256xf32>,
    %74 = vector.broadcast %64 : vector<8x1xf32> to vector<8x256xf32>
    %75 = arith.mulf %9, %74 : vector<8x256xf32>
    %76 = vector.broadcast %65 : vector<8x1xf32> to vector<8x256xf32>
    %77 = arith.addf %75, %76 : vector<8x256xf32>
    %78 = math.sin %77 : vector<8x256xf32>
    %c0_24 = arith.constant 0 : index
    %c88 = arith.constant 88 : index
    %c0_25 = arith.constant 0 : index
    %79 = vector.load %arg6[%c0_24, %c88, %c0_25] : memref<1x128x256xf32, #tpu.memory_space<vmem>>, vector<1x8x256xf32>
    %80 = vector.shape_cast %79 : vector<1x8x256xf32> to vector<8x256xf32>
    %81 = vector.shape_cast %78 : vector<8x256xf32> to vector<1x8x256xf32>
    tpu.vector_store %arg6[%c0_24, %c88, %c0_25], %81 {strides = array<i32>} : memref<1x128x256xf32, #tpu.memory_space<vmem>>, vector<1x8x256xf32>,
    %82 = vector.extract_strided_slice %0 {offsets = [32, 0], sizes = [8, 1], strides = [1, 1]} : vector<64x1xf32> to vector<8x1xf32>
    %83 = vector.extract_strided_slice %1 {offsets = [32, 0], sizes = [8, 1], strides = [1, 1]} : vector<64x1xf32> to vector<8x1xf32>
    %84 = vector.broadcast %82 : vector<8x1xf32> to vector<8x256xf32>
    %85 = arith.mulf %5, %84 : vector<8x256xf32>
    %86 = vector.broadcast %83 : vector<8x1xf32> to vector<8x256xf32>
    %87 = arith.addf %85, %86 : vector<8x256xf32>
    %88 = math.sin %87 : vector<8x256xf32>
    %c0_26 = arith.constant 0 : index
    %c32 = arith.constant 32 : index
    %c0_27 = arith.constant 0 : index
    %89 = vector.load %arg6[%c0_26, %c32, %c0_27] : memref<1x128x256xf32, #tpu.memory_space<vmem>>, vector<1x8x256xf32>
    %90 = vector.shape_cast %89 : vector<1x8x256xf32> to vector<8x256xf32>
    %91 = vector.shape_cast %88 : vector<8x256xf32> to vector<1x8x256xf32>
    tpu.vector_store %arg6[%c0_26, %c32, %c0_27], %91 {strides = array<i32>} : memref<1x128x256xf32, #tpu.memory_space<vmem>>, vector<1x8x256xf32>,
    %92 = vector.broadcast %82 : vector<8x1xf32> to vector<8x256xf32>
    %93 = arith.mulf %9, %92 : vector<8x256xf32>
    %94 = vector.broadcast %83 : vector<8x1xf32> to vector<8x256xf32>
    %95 = arith.addf %93, %94 : vector<8x256xf32>
    %96 = math.sin %95 : vector<8x256xf32>
    %c0_28 = arith.constant 0 : index
    %c96 = arith.constant 96 : index
    %c0_29 = arith.constant 0 : index
    %97 = vector.load %arg6[%c0_28, %c96, %c0_29] : memref<1x128x256xf32, #tpu.memory_space<vmem>>, vector<1x8x256xf32>
    %98 = vector.shape_cast %97 : vector<1x8x256xf32> to vector<8x256xf32>
    %99 = vector.shape_cast %96 : vector<8x256xf32> to vector<1x8x256xf32>
    tpu.vector_store %arg6[%c0_28, %c96, %c0_29], %99 {strides = array<i32>} : memref<1x128x256xf32, #tpu.memory_space<vmem>>, vector<1x8x256xf32>,
    %100 = vector.extract_strided_slice %0 {offsets = [40, 0], sizes = [8, 1], strides = [1, 1]} : vector<64x1xf32> to vector<8x1xf32>
    %101 = vector.extract_strided_slice %1 {offsets = [40, 0], sizes = [8, 1], strides = [1, 1]} : vector<64x1xf32> to vector<8x1xf32>
    %102 = vector.broadcast %100 : vector<8x1xf32> to vector<8x256xf32>
    %103 = arith.mulf %5, %102 : vector<8x256xf32>
    %104 = vector.broadcast %101 : vector<8x1xf32> to vector<8x256xf32>
    %105 = arith.addf %103, %104 : vector<8x256xf32>
    %106 = math.sin %105 : vector<8x256xf32>
    %c0_30 = arith.constant 0 : index
    %c40 = arith.constant 40 : index
    %c0_31 = arith.constant 0 : index
    %107 = vector.load %arg6[%c0_30, %c40, %c0_31] : memref<1x128x256xf32, #tpu.memory_space<vmem>>, vector<1x8x256xf32>
    %108 = vector.shape_cast %107 : vector<1x8x256xf32> to vector<8x256xf32>
    %109 = vector.shape_cast %106 : vector<8x256xf32> to vector<1x8x256xf32>
    tpu.vector_store %arg6[%c0_30, %c40, %c0_31], %109 {strides = array<i32>} : memref<1x128x256xf32, #tpu.memory_space<vmem>>, vector<1x8x256xf32>,
    %110 = vector.broadcast %100 : vector<8x1xf32> to vector<8x256xf32>
    %111 = arith.mulf %9, %110 : vector<8x256xf32>
    %112 = vector.broadcast %101 : vector<8x1xf32> to vector<8x256xf32>
    %113 = arith.addf %111, %112 : vector<8x256xf32>
    %114 = math.sin %113 : vector<8x256xf32>
    %c0_32 = arith.constant 0 : index
    %c104 = arith.constant 104 : index
    %c0_33 = arith.constant 0 : index
    %115 = vector.load %arg6[%c0_32, %c104, %c0_33] : memref<1x128x256xf32, #tpu.memory_space<vmem>>, vector<1x8x256xf32>
    %116 = vector.shape_cast %115 : vector<1x8x256xf32> to vector<8x256xf32>
    %117 = vector.shape_cast %114 : vector<8x256xf32> to vector<1x8x256xf32>
    tpu.vector_store %arg6[%c0_32, %c104, %c0_33], %117 {strides = array<i32>} : memref<1x128x256xf32, #tpu.memory_space<vmem>>, vector<1x8x256xf32>,
    %118 = vector.extract_strided_slice %0 {offsets = [48, 0], sizes = [8, 1], strides = [1, 1]} : vector<64x1xf32> to vector<8x1xf32>
    %119 = vector.extract_strided_slice %1 {offsets = [48, 0], sizes = [8, 1], strides = [1, 1]} : vector<64x1xf32> to vector<8x1xf32>
    %120 = vector.broadcast %118 : vector<8x1xf32> to vector<8x256xf32>
    %121 = arith.mulf %5, %120 : vector<8x256xf32>
    %122 = vector.broadcast %119 : vector<8x1xf32> to vector<8x256xf32>
    %123 = arith.addf %121, %122 : vector<8x256xf32>
    %124 = math.sin %123 : vector<8x256xf32>
    %c0_34 = arith.constant 0 : index
    %c48 = arith.constant 48 : index
    %c0_35 = arith.constant 0 : index
    %125 = vector.load %arg6[%c0_34, %c48, %c0_35] : memref<1x128x256xf32, #tpu.memory_space<vmem>>, vector<1x8x256xf32>
    %126 = vector.shape_cast %125 : vector<1x8x256xf32> to vector<8x256xf32>
    %127 = vector.shape_cast %124 : vector<8x256xf32> to vector<1x8x256xf32>
    tpu.vector_store %arg6[%c0_34, %c48, %c0_35], %127 {strides = array<i32>} : memref<1x128x256xf32, #tpu.memory_space<vmem>>, vector<1x8x256xf32>,
    %128 = vector.broadcast %118 : vector<8x1xf32> to vector<8x256xf32>
    %129 = arith.mulf %9, %128 : vector<8x256xf32>
    %130 = vector.broadcast %119 : vector<8x1xf32> to vector<8x256xf32>
    %131 = arith.addf %129, %130 : vector<8x256xf32>
    %132 = math.sin %131 : vector<8x256xf32>
    %c0_36 = arith.constant 0 : index
    %c112 = arith.constant 112 : index
    %c0_37 = arith.constant 0 : index
    %133 = vector.load %arg6[%c0_36, %c112, %c0_37] : memref<1x128x256xf32, #tpu.memory_space<vmem>>, vector<1x8x256xf32>
    %134 = vector.shape_cast %133 : vector<1x8x256xf32> to vector<8x256xf32>
    %135 = vector.shape_cast %132 : vector<8x256xf32> to vector<1x8x256xf32>
    tpu.vector_store %arg6[%c0_36, %c112, %c0_37], %135 {strides = array<i32>} : memref<1x128x256xf32, #tpu.memory_space<vmem>>, vector<1x8x256xf32>,
    %136 = vector.extract_strided_slice %0 {offsets = [56, 0], sizes = [8, 1], strides = [1, 1]} : vector<64x1xf32> to vector<8x1xf32>
    %137 = vector.extract_strided_slice %1 {offsets = [56, 0], sizes = [8, 1], strides = [1, 1]} : vector<64x1xf32> to vector<8x1xf32>
    %138 = vector.broadcast %136 : vector<8x1xf32> to vector<8x256xf32>
    %139 = arith.mulf %5, %138 : vector<8x256xf32>
    %140 = vector.broadcast %137 : vector<8x1xf32> to vector<8x256xf32>
    %141 = arith.addf %139, %140 : vector<8x256xf32>
    %142 = math.sin %141 : vector<8x256xf32>
    %c0_38 = arith.constant 0 : index
    %c56 = arith.constant 56 : index
    %c0_39 = arith.constant 0 : index
    %143 = vector.load %arg6[%c0_38, %c56, %c0_39] : memref<1x128x256xf32, #tpu.memory_space<vmem>>, vector<1x8x256xf32>
    %144 = vector.shape_cast %143 : vector<1x8x256xf32> to vector<8x256xf32>
    %145 = vector.shape_cast %142 : vector<8x256xf32> to vector<1x8x256xf32>
    tpu.vector_store %arg6[%c0_38, %c56, %c0_39], %145 {strides = array<i32>} : memref<1x128x256xf32, #tpu.memory_space<vmem>>, vector<1x8x256xf32>,
    %146 = vector.broadcast %136 : vector<8x1xf32> to vector<8x256xf32>
    %147 = arith.mulf %9, %146 : vector<8x256xf32>
    %148 = vector.broadcast %137 : vector<8x1xf32> to vector<8x256xf32>
    %149 = arith.addf %147, %148 : vector<8x256xf32>
    %150 = math.sin %149 : vector<8x256xf32>
    %c0_40 = arith.constant 0 : index
    %c120 = arith.constant 120 : index
    %c0_41 = arith.constant 0 : index
    %151 = vector.load %arg6[%c0_40, %c120, %c0_41] : memref<1x128x256xf32, #tpu.memory_space<vmem>>, vector<1x8x256xf32>
    %152 = vector.shape_cast %151 : vector<1x8x256xf32> to vector<8x256xf32>
    %153 = vector.shape_cast %150 : vector<8x256xf32> to vector<1x8x256xf32>
    tpu.vector_store %arg6[%c0_40, %c120, %c0_41], %153 {strides = array<i32>} : memref<1x128x256xf32, #tpu.memory_space<vmem>>, vector<1x8x256xf32>,
    return
  }
  func.func @transform_0(%arg0: i32, %arg1: i32) -> (i32, i32, i32) {
    %c0_i32 = arith.constant 0 : i32
    %c0_i32_0 = arith.constant 0 : i32
    return %arg0, %c0_i32, %arg1 : i32, i32, i32
  }
  func.func @transform_1(%arg0: i32, %arg1: i32) -> (i32, i32, i32) {
    %c0_i32 = arith.constant 0 : i32
    %c0_i32_0 = arith.constant 0 : i32
    return %arg0, %c0_i32, %arg1 : i32, i32, i32
  }
  func.func @transform_2(%arg0: i32, %arg1: i32) -> (i32, i32) {
    %c0_i32 = arith.constant 0 : i32
    %c0_i32_0 = arith.constant 0 : i32
    %c0_i32_1 = arith.constant 0 : i32
    return %c0_i32, %c0_i32_0 : i32, i32
  }
  func.func @transform_3(%arg0: i32, %arg1: i32) -> (i32, i32) {
    %c0_i32 = arith.constant 0 : i32
    %c0_i32_0 = arith.constant 0 : i32
    %c0_i32_1 = arith.constant 0 : i32
    return %c0_i32, %c0_i32_0 : i32, i32
  }
  func.func @transform_4(%arg0: i32, %arg1: i32) -> (i32, i32, i32) {
    %c0_i32 = arith.constant 0 : i32
    %c0_i32_0 = arith.constant 0 : i32
    return %arg0, %c0_i32, %arg1 : i32, i32, i32
  }
}

</mosaic_0001>

<llo_original>
// kernel: tpu_custom_call.1
$region0: #{tpu_custom_call.1}
  #allocation0 [shape = 'u32[]', space=smem, size = 0x4, offset = 0x4, fixed_abs, tag = 'smem constant byte address 0x4 - core index']
  #allocation1 [shape = 'u32[72,128]{1,0:T(1,128)}', space=vmem, size = 0x9000, scoped, tag = 'internal scratch']
  %s0 = inlined_call_operand.vmem [shape: f32[2,1,256], index: 0, kind: input, shape index: {}]
  %s1 = inlined_call_operand.vmem [shape: f32[2,1,256], index: 1, kind: input, shape index: {}]
  %s2 = inlined_call_operand.vmem [shape: f32[64,1], index: 2, kind: input, shape index: {}]
  %s3 = inlined_call_operand.vmem [shape: f32[64,1], index: 3, kind: input, shape index: {}]
  %s4 = inlined_call_operand.hbm [shape: f32[2,128,256], index: 4, kind: output, shape index: {}]
  %s5 = sld [smem:[#allocation0]]
  $region49: #{tpu_custom_call.1} parent=0
    _
  %s7 = ssub.s32 1, %s5
  %s8 = scalar_select 0, %s7, %s5
  $region1: #{tpu_custom_call.1} parent=0
    #allocation2 [shape = 'u8[262144]{0}', space=vmem, size = 0x40000, scoped, tag = 'output window, operand 0']
    #allocation3 [shape = 's32[2]{0}', space=sflag, size = 0x8, scoped, tag = 'scoped memory for tpu_custom_call.1']
    %9 = vsyncpa [#allocation3], 0
    %s10 = scalar_lea.sflag [#allocation3], 1
    %11 = vsyncpa %s10, 0
    loop: start=0, step=1, limit=4
    $region2: #{tpu_custom_call.1} parent=1 // loop_pre_header
      _
    $region3: #{tpu_custom_call.1} parent=1 // loop_header
      %s13 = sphi 0, %s17
      %p14 = scmp.ge.s32.totalorder %s13, 4
      %s20 = sphi 0, %s32
      %s21 = sphi 0, %s28
      %s22 = sphi 0, %s20
      %s23 = sphi 0, %s21
      %s24 = sphi 0, %s22
      %s25 = sphi 0, %s23
      %s37 = sphi 0, %s39
      %s40 = sphi 0, %s37
      %s41 = sphi 0, %s40
      %s57 = sphi 0, %s41
      %s65 = sphi 0, %s67
      %s68 = sphi 0, %s65
      %s69 = sphi 0, %s68
      %s85 = sphi 0, %s69
      %s89 = sphi 0, %s89
      %s91 = sphi 0, %s89
      %s92 = sphi 0, %s91
      %s106 = sphi 0, %s92
      %s110 = sphi 0, %s110
      %s112 = sphi 0, %s110
      %s113 = sphi 0, %s112
      %s127 = sphi 0, %s113
      %s135 = sphi 0, %s137
      %s138 = sphi 0, %s135
      %s139 = sphi 0, %s138
      %s155 = sphi 0, %s139
    $region4: #{tpu_custom_call.1} parent=1 // loop_header_branch
      %16 = sbr.rel (%p14) target = $region8
    $region5: #{tpu_custom_call.1} parent=1 // loop_body
      %s18 = ssub.s32 %s13, 1
      %s19 = ssub.s32 %s13, 2
      %s26 = sadd.s32 1, %s21
      %p27 = scmp.ge.s32.totalorder %s26, 1
      %s28 = scalar_select %p27, 0, %s26
      %s29 = sadd.s32 1, %s20
      %s30 = scalar_select %p27, %s29, %s20
      %p31 = scmp.ge.s32.totalorder %s30, 2
      %s32 = scalar_select %p31, 0, %s30
      %s33 = ssub.s32 %s20, %s32
      %s34 = ssub.s32 %s21, %s28
      %s35 = sor.u32 %s33, %s34
      %p36 = scmp.eq.s32.totalorder %s35, 0
      %s38 = sadd.s32 %s37, 1
      %s39 = scalar_select %p36, %s37, %s38
      %p42 = pneg %p36
      %p43 = scmp.eq.s32.totalorder %s13, 1
      %p44 = por %p42, %p43
      %p45 = scmp.ne.s32.totalorder %s37, %s40
      %p46 = scmp.eq.s32.totalorder %s13, 0
      %p47 = por %p45, %p46
      %p48 = scmp.ne.s32.totalorder %s37, %s40
      %p49 = scmp.eq.s32.totalorder %s18, 1
      %p50 = por %p48, %p49
      %p51 = scmp.ne.s32.totalorder %s40, %s41
      %p52 = scmp.eq.s32.totalorder %s18, 0
      %p53 = por %p51, %p52
      %p54 = scmp.ne.s32.totalorder %s40, %s41
      %p55 = scmp.eq.s32.totalorder %s19, 1
      %p56 = por %p54, %p55
      %p58 = scmp.ne.s32.totalorder %s41, %s57
      %p59 = scmp.eq.s32.totalorder %s19, 0
      %p60 = por %p58, %p59
      %s61 = ssub.s32 %s20, %s32
      %s62 = ssub.s32 %s21, %s28
      %s63 = sor.u32 %s61, %s62
      %p64 = scmp.eq.s32.totalorder %s63, 0
      %s66 = sadd.s32 %s65, 1
      %s67 = scalar_select %p64, %s65, %s66
      %p70 = pneg %p64
      %p71 = scmp.eq.s32.totalorder %s13, 1
      %p72 = por %p70, %p71
      %p73 = scmp.ne.s32.totalorder %s65, %s68
      %p74 = scmp.eq.s32.totalorder %s13, 0
      %p75 = por %p73, %p74
      %p76 = scmp.ne.s32.totalorder %s65, %s68
      %p77 = scmp.eq.s32.totalorder %s18, 1
      %p78 = por %p76, %p77
      %p79 = scmp.ne.s32.totalorder %s68, %s69
      %p80 = scmp.eq.s32.totalorder %s18, 0
      %p81 = por %p79, %p80
      %p82 = scmp.ne.s32.totalorder %s68, %s69
      %p83 = scmp.eq.s32.totalorder %s19, 1
      %p84 = por %p82, %p83
      %p86 = scmp.ne.s32.totalorder %s69, %s85
      %p87 = scmp.eq.s32.totalorder %s19, 0
      %p88 = por %p86, %p87
      %s90 = sadd.s32 %s89, 1
      %p93 = scmp.eq.s32.totalorder %s13, 1
      %p94 = scmp.ne.s32.totalorder %s89, %s91
      %p95 = scmp.eq.s32.totalorder %s13, 0
      %p96 = por %p94, %p95
      %p97 = scmp.ne.s32.totalorder %s89, %s91
      %p98 = scmp.eq.s32.totalorder %s18, 1
      %p99 = por %p97, %p98
      %p100 = scmp.ne.s32.totalorder %s91, %s92
      %p101 = scmp.eq.s32.totalorder %s18, 0
      %p102 = por %p100, %p101
      %p103 = scmp.ne.s32.totalorder %s91, %s92
      %p104 = scmp.eq.s32.totalorder %s19, 1
      %p105 = por %p103, %p104
      %p107 = scmp.ne.s32.totalorder %s92, %s106
      %p108 = scmp.eq.s32.totalorder %s19, 0
      %p109 = por %p107, %p108
      %s111 = sadd.s32 %s110, 1
      %p114 = scmp.eq.s32.totalorder %s13, 1
      %p115 = scmp.ne.s32.totalorder %s110, %s112
      %p116 = scmp.eq.s32.totalorder %s13, 0
      %p117 = por %p115, %p116
      %p118 = scmp.ne.s32.totalorder %s110, %s112
      %p119 = scmp.eq.s32.totalorder %s18, 1
      %p120 = por %p118, %p119
      %p121 = scmp.ne.s32.totalorder %s112, %s113
      %p122 = scmp.eq.s32.totalorder %s18, 0
      %p123 = por %p121, %p122
      %p124 = scmp.ne.s32.totalorder %s112, %s113
      %p125 = scmp.eq.s32.totalorder %s19, 1
      %p126 = por %p124, %p125
      %p128 = scmp.ne.s32.totalorder %s113, %s127
      %p129 = scmp.eq.s32.totalorder %s19, 0
      %p130 = por %p128, %p129
      %s131 = ssub.s32 %s20, %s32
      %s132 = ssub.s32 %s21, %s28
      %s133 = sor.u32 %s131, %s132
      %p134 = scmp.eq.s32.totalorder %s133, 0
      %s136 = sadd.s32 %s135, 1
      %s137 = scalar_select %p134, %s135, %s136
      %p140 = pneg %p134
      %p141 = scmp.eq.s32.totalorder %s13, 1
      %p142 = por %p140, %p141
      %p143 = scmp.ne.s32.totalorder %s135, %s138
      %p144 = scmp.eq.s32.totalorder %s13, 0
      %p145 = por %p143, %p144
      %p146 = scmp.ne.s32.totalorder %s135, %s138
      %p147 = scmp.eq.s32.totalorder %s18, 1
      %p148 = por %p146, %p147
      %p149 = scmp.ne.s32.totalorder %s138, %s139
      %p150 = scmp.eq.s32.totalorder %s18, 0
      %p151 = por %p149, %p150
      %p152 = scmp.ne.s32.totalorder %s138, %s139
      %p153 = scmp.eq.s32.totalorder %s19, 1
      %p154 = por %p152, %p153
      %p156 = scmp.ne.s32.totalorder %s139, %s155
      %p157 = scmp.eq.s32.totalorder %s19, 0
      %p158 = por %p156, %p157
      %p159 = scmp.le.s32.totalorder 1, %s13
      %p160 = scmp.lt.s32.totalorder %s13, 3
      %p161 = pnand %p159, %p160
      %p162 = pneg %p161
      // Predicated region
      $region9: #{tpu_custom_call.1} parent=5 // pred_check
        _
      $region10: #{tpu_custom_call.1} parent=5 // pred_check_branch
        %164 = sbr.rel (%p161) target = $region12
      $region11: #{tpu_custom_call.1} parent=5 // pred_region
        %s165 = ssub.s32 %s13, 1
        // Predicated region
        $region13: #{tpu_custom_call.1} parent=11 // pred_check
          %p166 = pneg %p102
        $region14: #{tpu_custom_call.1} parent=11 // pred_check_branch
          %168 = sbr.rel (%p166) target = $region16
        $region15: #{tpu_custom_call.1} parent=11 // pred_region
          _
        $region16: #{tpu_custom_call.1} parent=11 // pred_fallthru
          _
        // Predicated region
        $region17: #{tpu_custom_call.1} parent=11 // pred_check
          %p169 = pneg %p123
        $region18: #{tpu_custom_call.1} parent=11 // pred_check_branch
          %171 = sbr.rel (%p169) target = $region20
        $region19: #{tpu_custom_call.1} parent=11 // pred_region
          _
        $region20: #{tpu_custom_call.1} parent=11 // pred_fallthru
          _
      $region12: #{tpu_custom_call.1} parent=5 // pred_fallthru
        _
      %p172 = scmp.lt.s32.totalorder %s13, 2
      // Predicated region
      $region21: #{tpu_custom_call.1} parent=5 // pred_check
        %p173 = pneg %p172
      $region22: #{tpu_custom_call.1} parent=5 // pred_check_branch
        %175 = sbr.rel (%p173) target = $region24
      $region23: #{tpu_custom_call.1} parent=5 // pred_region
        // Predicated region
        $region25: #{tpu_custom_call.1} parent=23 // pred_check
          %p176 = pneg %p47
        $region26: #{tpu_custom_call.1} parent=23 // pred_check_branch
          %178 = sbr.rel (%p176) target = $region28
        $region27: #{tpu_custom_call.1} parent=23 // pred_region
          %s179 = smul.u32 2, %s21
          %p180 = scmp.lt.s32.totalorder %s20, 1
          %s181 = scalar_select %p180, %s20, 1
          %p182 = scmp.lt.s32.totalorder %s179, 1
          %s183 = scalar_select %p182, %s179, 1
          %s184 = smul.addr %s181, 2
          %s185 = sadd.s32 %s183, %s184
          %s186 = scalar_lea.vmem %s0, %s185
          %s187 = smul.u32 2, %s21
        $region28: #{tpu_custom_call.1} parent=23 // pred_fallthru
          _
        // Predicated region
        $region29: #{tpu_custom_call.1} parent=23 // pred_check
          %p188 = pneg %p75
        $region30: #{tpu_custom_call.1} parent=23 // pred_check_branch
          %190 = sbr.rel (%p188) target = $region32
        $region31: #{tpu_custom_call.1} parent=23 // pred_region
          %s191 = smul.u32 2, %s21
          %p192 = scmp.lt.s32.totalorder %s20, 1
          %s193 = scalar_select %p192, %s20, 1
          %p194 = scmp.lt.s32.totalorder %s191, 1
          %s195 = scalar_select %p194, %s191, 1
          %s196 = smul.addr %s193, 2
          %s197 = sadd.s32 %s195, %s196
          %s198 = scalar_lea.vmem %s1, %s197
          %s199 = smul.u32 2, %s21
        $region32: #{tpu_custom_call.1} parent=23 // pred_fallthru
          _
      $region24: #{tpu_custom_call.1} parent=5 // pred_fallthru
        _
      %p200 = scmp.le.s32.totalorder 1, %s13
      %p201 = scmp.lt.s32.totalorder %s13, 3
      %p202 = pnand %p200, %p201
      %p203 = pneg %p202
      // Predicated region
      $region33: #{tpu_custom_call.1} parent=5 // pred_check
        _
      $region34: #{tpu_custom_call.1} parent=5 // pred_check_branch
        %205 = sbr.rel (%p202) target = $region36
      $region35: #{tpu_custom_call.1} parent=5 // pred_region
        %s206 = ssub.s32 %s13, 1
        %s207 = smul.u32 2, %s23
        %p208 = scmp.lt.s32.totalorder %s22, 1
        %s209 = scalar_select %p208, %s22, 1
        %p210 = scmp.lt.s32.totalorder %s207, 1
        %s211 = scalar_select %p210, %s207, 1
        %s212 = smul.addr %s209, 2
        %s213 = sadd.s32 %s211, %s212
        %s214 = scalar_lea.vmem %s0, %s213
        %p215 = pneg %p53
        %p216 = pneg %p50
        %s217 = smul.u32 2, %s23
        %p218 = scmp.lt.s32.totalorder %s22, 1
        %s219 = scalar_select %p218, %s22, 1
        %p220 = scmp.lt.s32.totalorder %s217, 1
        %s221 = scalar_select %p220, %s217, 1
        %s222 = smul.addr %s219, 2
        %s223 = sadd.s32 %s221, %s222
        %s224 = scalar_lea.vmem %s1, %s223
        %p225 = pneg %p81
        %p226 = pneg %p78
        %p227 = pneg %p102
        %p228 = pneg %p99
        %p229 = pneg %p123
        %p230 = pneg %p120
        %p231 = pneg %p151
        %p232 = pneg %p148
        %s233 = sand.u32 %s138, 1
        %s234 = scalar_lea.sflag [#allocation3], %s233
        %s235 = sand.u32 %s138, 1
        %s236 = smul.addr %s235, 256
        %s237 = scalar_lea.vmem [#allocation2], %s236
        %s238 = smul.u32 2, %s23
        %p239 = scmp.lt.s32.totalorder %s22, 1
        %s240 = scalar_select %p239, %s22, 1
        %p241 = scmp.lt.s32.totalorder %s238, 1
        %s242 = scalar_select %p241, %s238, 1
        %s243 = smul.addr %s240, 2
        %s244 = sadd.s32 %s242, %s243
        %s245 = scalar_lea.vmem %s0, %s244
        %s246 = smul.u32 2, %s23
        %s247 = smul.u32 2, %s23
        %p248 = scmp.lt.s32.totalorder %s22, 1
        %s249 = scalar_select %p248, %s22, 1
        %p250 = scmp.lt.s32.totalorder %s247, 1
        %s251 = scalar_select %p250, %s247, 1
        %s252 = smul.addr %s249, 2
        %s253 = sadd.s32 %s251, %s252
        %s254 = scalar_lea.vmem %s1, %s253
        %s255 = smul.u32 2, %s23
        %s256 = smul.u32 2, %s23
        %v257 = vld [vmem:[%s2] sm:$0xff]
        %v258 = vld [vmem:[%s2 + $0x8] sm:$0xff]
        %v259 = vld [vmem:[%s2 + $0x10] sm:$0xff]
        %v260 = vld [vmem:[%s2 + $0x18] sm:$0xff]
        %v261 = vld [vmem:[%s2 + $0x20] sm:$0xff]
        %v262 = vld [vmem:[%s2 + $0x28] sm:$0xff]
        %v263 = vld [vmem:[%s2 + $0x30] sm:$0xff]
        %v264 = vld [vmem:[%s2 + $0x38] sm:$0xff]
        %v265 = vld [vmem:[%s3] sm:$0xff]
        %v266 = vld [vmem:[%s3 + $0x8] sm:$0xff]
        %v267 = vld [vmem:[%s3 + $0x10] sm:$0xff]
        %v268 = vld [vmem:[%s3 + $0x18] sm:$0xff]
        %v269 = vld [vmem:[%s3 + $0x20] sm:$0xff]
        %v270 = vld [vmem:[%s3 + $0x28] sm:$0xff]
        %v271 = vld [vmem:[%s3 + $0x30] sm:$0xff]
        %v272 = vld [vmem:[%s3 + $0x38] sm:$0xff]
        %v273 = vld [vmem:[%s245] sm:$0x3]
        %v275 = vperm.slane %v273, 0
        %v276 = vperm.slane %v273, 1
        %v279 = vld [vmem:[%s254] sm:$0x3]
        %v281 = vperm.slane %v279, 0
        %v282 = vperm.slane %v279, 1
        %286 = vset.pattern.permute.xlu0 0
        %287 = vperm.xlu0 %286, %v257
        %v288 = vpop.permute.xlu0 %287
        %v290 = vmul.f32 %v275, %v288
        %v291 = vmul.f32 %v276, %v288
        %293 = vset.pattern.permute.xlu0 0
        %294 = vperm.xlu0 %293, %v265
        %v295 = vpop.permute.xlu0 %294
        %v297 = vadd.f32 %v290, %v295
        %v298 = vadd.f32 %v291, %v295
        %v299 = vand.u32 2147483647, %v297
        %vm300 = vcmp.le.f32.partialorder %v299, 0.7853982
        %vm301 = vcmp.lt.s32.totalorder %v297, 0
        %v302 = vand.u32 %v297, 2139095040
        %v303 = vshrl.u32 %v302, 23
        %v304 = vsub.s32 %v303, 127
        %v305 = vand.u32 2147483647, %v297
        %v306 = vand.u32 %v305, 8388607
        %v307 = vor.u32 %v306, 8388608
        %v308 = vsub.s32 0, %v307
        %v309 = vadd.s32 %v304, 1
        %vm310 = vcmp.gt.s32.totalorder %v309, 0
        %v311 = vsel %vm310, %v309, 0
        %v312 = vshrl.u32 %v311, 5
        %v313 = vand.u32 %v311, 31
        %v314 = vsub.s32 32, %v313
        %v315 = vshrl.u32 683565275, %v314
        %v316 = vshll.u32 683565275, %v313
        %v317 = vshrl.u32 2475754826, %v314
        %v318 = vor.u32 %v316, %v317
        %v319 = vshll.u32 2475754826, %v313
        %v320 = vshrl.u32 2131351028, %v314
        %v321 = vor.u32 %v319, %v320
        %v322 = vshll.u32 2131351028, %v313
        %v323 = vshrl.u32 2102212464, %v314
        %v324 = vor.u32 %v322, %v323
        %v325 = vshll.u32 2102212464, %v313
        %v326 = vshrl.u32 920167782, %v314
        %v327 = vor.u32 %v325, %v326
        %v328 = vshll.u32 920167782, %v313
        %v329 = vshrl.u32 1326507024, %v314
        %v330 = vor.u32 %v328, %v329
        %vm331 = vcmp.lt.s32.totalorder %v312, 1
        %vm332 = vcmp.lt.s32.totalorder %v312, 2
        %vm333 = vcmp.lt.s32.totalorder %v312, 3
        %vm334 = vcmp.lt.s32.totalorder %v312, 4
        %v335 = vsel %vm331, %v315, %v318
        %v336 = vsel %vm334, %v324, 2102212464
        %v337 = vsel %vm333, %v321, %v336
        %v338 = vsel %vm332, %v335, %v337
        %v339 = vsel %vm331, %v318, %v321
        %v340 = vsel %vm334, %v327, 920167782
        %v341 = vsel %vm333, %v324, %v340
        %v342 = vsel %vm332, %v339, %v341
        %v343 = vsel %vm331, %v321, %v324
        %v344 = vsel %vm334, %v330, 1326507024
        %v345 = vsel %vm333, %v327, %v344
        %v346 = vsel %vm332, %v343, %v345
        %v347 = vshll.u32 %v307, 8
        %v348 = vand.u32 %v347, 65535
        %v349 = vshrl.u32 %v347, 16
        %v350 = vand.u32 %v346, 65535
        %v351 = vshrl.u32 %v346, 16
        %v352 = vmul.u32 %v348, %v350
        %v353 = vmul.u32 %v348, %v351
        %v354 = vmul.u32 %v349, %v350
        %v355 = vmul.u32 %v349, %v351
        %v356 = vshll.u32 %v353, 16
        %v357 = vshrl.u32 %v353, 16
        %v358 = vshll.u32 %v354, 16
        %v359 = vshrl.u32 %v354, 16
        %vm360 = vc.u32 %v352, %v356
        %v361 = vsel %vm360, 1, 0
        %v362 = vadd.s32 %v352, %v356
        %v363 = vadd.s32 %v355, %v361
        %vm364 = vc.u32 %v362, %v358
        %v365 = vsel %vm364, 1, 0
        %v366 = vadd.s32 %v362, %v358
        %v367 = vadd.s32 %v363, %v365
        %v368 = vadd.s32 %v367, %v357
        %v369 = vadd.s32 %v368, %v359
        %v370 = vand.u32 %v347, 65535
        %v371 = vshrl.u32 %v347, 16
        %v372 = vand.u32 %v342, 65535
        %v373 = vshrl.u32 %v342, 16
        %v374 = vmul.u32 %v370, %v372
        %v375 = vmul.u32 %v370, %v373
        %v376 = vmul.u32 %v371, %v372
        %v377 = vmul.u32 %v371, %v373
        %v378 = vshll.u32 %v375, 16
        %v379 = vshrl.u32 %v375, 16
        %v380 = vshll.u32 %v376, 16
        %v381 = vshrl.u32 %v376, 16
        %vm382 = vc.u32 %v374, %v378
        %v383 = vsel %vm382, 1, 0
        %v384 = vadd.s32 %v374, %v378
        %v385 = vadd.s32 %v377, %v383
        %vm386 = vc.u32 %v384, %v380
        %v387 = vsel %vm386, 1, 0
        %v388 = vadd.s32 %v384, %v380
        %v389 = vadd.s32 %v385, %v387
        %v390 = vadd.s32 %v389, %v379
        %v391 = vadd.s32 %v390, %v381
        %v392 = vmul.u32 %v347, %v338
        %v393 = vadd.s32 %v369, %v388
        %vm394 = vc.u32 %v369, %v388
        %v395 = vadd.s32 %v391, 1
        %v396 = vsel %vm394, %v395, %v391
        %v397 = vadd.s32 %v392, %v396
        %v398 = vadd.s32 %v397, 536870912
        %v399 = vshrl.u32 %v398, 30
        %v400 = vshll.u32 %v399, 30
        %v401 = vsub.s32 %v397, %v400
        %vm402 = vcmp.lt.s32.totalorder %v401, 0
        %v403 = vsub.s32 0, %v401
        %v404 = vsel %vm402, %v403, %v401
        %v405 = vclz %v404
        %v406 = vsub.s32 %v405, 2
        %vm407 = vcmp.gt.s32.totalorder 0, %v406
        %v408 = vsel %vm407, 0, %v406
        %v409 = vsub.s32 32, %v408
        %v410 = vshll.u32 %v401, %v408
        %v411 = vshrl.u32 %v393, %v409
        %v412 = vor.u32 %v410, %v411
        %v413 = vsub.s32 4294967266, %v408
        %v414 = vadd.s32 %v413, 127
        %v415 = vshll.u32 %v414, 23
        %v416 = vor.u32 4788187, %v415
        %v417 = vand.u32 2147483647, %v416
        %v419 = vcvt.s32.f32 %v412
        %v420 = vmul.f32 %v419, %v417
        %v421 = vxor.u32 %v420, 2147483648
        %v422 = vsel %vm301, %v421, %v420
        %v423 = vsub.s32 4, %v399
        %v424 = vsel %vm301, %v423, %v399
        %v425 = vsel %vm300, %v297, %v422
        %v426 = vsel %vm300, 0, %v424
        %v427 = vmul.f32 %v425, %v425
        %v428 = vmul.f32 %v427, -0.001358992
        %v429 = vadd.f32 %v428, 0.041655596
        %v430 = vmul.f32 %v427, %v429
        %v431 = vadd.f32 %v430, -0.4999988
        %v432 = vmul.f32 %v427, %v431
        %v433 = vadd.f32 1.0, %v432
        %v434 = vmul.f32 %v425, %v425
        %v435 = vmul.f32 %v434, -0.00019511016
        %v436 = vadd.f32 %v435, 0.008332121
        %v437 = vmul.f32 %v434, %v436
        %v438 = vadd.f32 %v437, -0.16666654
        %v439 = vmul.f32 %v434, %v438
        %v440 = vadd.f32 %v439, 1.0
        %v441 = vmul.f32 %v440, %v425
        %vm442 = vweird.f32 %v297
        %v443 = vadd.s32 %v426, 3
        %v444 = vand.u32 %v443, 3
        %vm445 = vcmp.lt.s32.totalorder %v444, 2
        %vm446 = vcmp.eq.s32.totalorder %v444, 0
        %v447 = vxor.u32 %v441, 2147483648
        %v448 = vsel %vm446, %v433, %v447
        %vm449 = vcmp.eq.s32.totalorder %v444, 2
        %v450 = vxor.u32 %v433, 2147483648
        %v451 = vsel %vm449, %v450, %v441
        %v452 = vsel %vm445, %v448, %v451
        %v453 = vsel %vm442, nan, %v452
        %v454 = vand.u32 2147483647, %v298
        %vm455 = vcmp.le.f32.partialorder %v454, 0.7853982
        %vm456 = vcmp.lt.s32.totalorder %v298, 0
        %v457 = vand.u32 %v298, 2139095040
        %v458 = vshrl.u32 %v457, 23
        %v459 = vsub.s32 %v458, 127
        %v460 = vand.u32 2147483647, %v298
        %v461 = vand.u32 %v460, 8388607
        %v462 = vor.u32 %v461, 8388608
        %v463 = vsub.s32 0, %v462
        %v464 = vadd.s32 %v459, 1
        %vm465 = vcmp.gt.s32.totalorder %v464, 0
        %v466 = vsel %vm465, %v464, 0
        %v467 = vshrl.u32 %v466, 5
        %v468 = vand.u32 %v466, 31
        %v469 = vsub.s32 32, %v468
        %v470 = vshrl.u32 683565275, %v469
        %v471 = vshll.u32 683565275, %v468
        %v472 = vshrl.u32 2475754826, %v469
        %v473 = vor.u32 %v471, %v472
        %v474 = vshll.u32 2475754826, %v468
        %v475 = vshrl.u32 2131351028, %v469
        %v476 = vor.u32 %v474, %v475
        %v477 = vshll.u32 2131351028, %v468
        %v478 = vshrl.u32 2102212464, %v469
        %v479 = vor.u32 %v477, %v478
        %v480 = vshll.u32 2102212464, %v468
        %v481 = vshrl.u32 920167782, %v469
        %v482 = vor.u32 %v480, %v481
        %v483 = vshll.u32 920167782, %v468
        %v484 = vshrl.u32 1326507024, %v469
        %v485 = vor.u32 %v483, %v484
        %vm486 = vcmp.lt.s32.totalorder %v467, 1
        %vm487 = vcmp.lt.s32.totalorder %v467, 2
        %vm488 = vcmp.lt.s32.totalorder %v467, 3
        %vm489 = vcmp.lt.s32.totalorder %v467, 4
        %v490 = vsel %vm486, %v470, %v473
        %v491 = vsel %vm489, %v479, 2102212464
        %v492 = vsel %vm488, %v476, %v491
        %v493 = vsel %vm487, %v490, %v492
        %v494 = vsel %vm486, %v473, %v476
        %v495 = vsel %vm489, %v482, 920167782
        %v496 = vsel %vm488, %v479, %v495
        %v497 = vsel %vm487, %v494, %v496
        %v498 = vsel %vm486, %v476, %v479
        %v499 = vsel %vm489, %v485, 1326507024
        %v500 = vsel %vm488, %v482, %v499
        %v501 = vsel %vm487, %v498, %v500
        %v502 = vshll.u32 %v462, 8
        %v503 = vand.u32 %v502, 65535
        %v504 = vshrl.u32 %v502, 16
        %v505 = vand.u32 %v501, 65535
        %v506 = vshrl.u32 %v501, 16
        %v507 = vmul.u32 %v503, %v505
        %v508 = vmul.u32 %v503, %v506
        %v509 = vmul.u32 %v504, %v505
        %v510 = vmul.u32 %v504, %v506
        %v511 = vshll.u32 %v508, 16
        %v512 = vshrl.u32 %v508, 16
        %v513 = vshll.u32 %v509, 16
        %v514 = vshrl.u32 %v509, 16
        %vm515 = vc.u32 %v507, %v511
        %v516 = vsel %vm515, 1, 0
        %v517 = vadd.s32 %v507, %v511
        %v518 = vadd.s32 %v510, %v516
        %vm519 = vc.u32 %v517, %v513
        %v520 = vsel %vm519, 1, 0
        %v521 = vadd.s32 %v517, %v513
        %v522 = vadd.s32 %v518, %v520
        %v523 = vadd.s32 %v522, %v512
        %v524 = vadd.s32 %v523, %v514
        %v525 = vand.u32 %v502, 65535
        %v526 = vshrl.u32 %v502, 16
        %v527 = vand.u32 %v497, 65535
        %v528 = vshrl.u32 %v497, 16
        %v529 = vmul.u32 %v525, %v527
        %v530 = vmul.u32 %v525, %v528
        %v531 = vmul.u32 %v526, %v527
        %v532 = vmul.u32 %v526, %v528
        %v533 = vshll.u32 %v530, 16
        %v534 = vshrl.u32 %v530, 16
        %v535 = vshll.u32 %v531, 16
        %v536 = vshrl.u32 %v531, 16
        %vm537 = vc.u32 %v529, %v533
        %v538 = vsel %vm537, 1, 0
        %v539 = vadd.s32 %v529, %v533
        %v540 = vadd.s32 %v532, %v538
        %vm541 = vc.u32 %v539, %v535
        %v542 = vsel %vm541, 1, 0
        %v543 = vadd.s32 %v539, %v535
        %v544 = vadd.s32 %v540, %v542
        %v545 = vadd.s32 %v544, %v534
        %v546 = vadd.s32 %v545, %v536
        %v547 = vmul.u32 %v502, %v493
        %v548 = vadd.s32 %v524, %v543
        %vm549 = vc.u32 %v524, %v543
        %v550 = vadd.s32 %v546, 1
        %v551 = vsel %vm549, %v550, %v546
        %v552 = vadd.s32 %v547, %v551
        %v553 = vadd.s32 %v552, 536870912
        %v554 = vshrl.u32 %v553, 30
        %v555 = vshll.u32 %v554, 30
        %v556 = vsub.s32 %v552, %v555
        %vm557 = vcmp.lt.s32.totalorder %v556, 0
        %v558 = vsub.s32 0, %v556
        %v559 = vsel %vm557, %v558, %v556
        %v560 = vclz %v559
        %v561 = vsub.s32 %v560, 2
        %vm562 = vcmp.gt.s32.totalorder 0, %v561
        %v563 = vsel %vm562, 0, %v561
        %v564 = vsub.s32 32, %v563
        %v565 = vshll.u32 %v556, %v563
        %v566 = vshrl.u32 %v548, %v564
        %v567 = vor.u32 %v565, %v566
        %v568 = vsub.s32 4294967266, %v563
        %v569 = vadd.s32 %v568, 127
        %v570 = vshll.u32 %v569, 23
        %v571 = vor.u32 4788187, %v570
        %v572 = vand.u32 2147483647, %v571
        %v574 = vcvt.s32.f32 %v567
        %v575 = vmul.f32 %v574, %v572
        %v576 = vxor.u32 %v575, 2147483648
        %v577 = vsel %vm456, %v576, %v575
        %v578 = vsub.s32 4, %v554
        %v579 = vsel %vm456, %v578, %v554
        %v580 = vsel %vm455, %v298, %v577
        %v581 = vsel %vm455, 0, %v579
        %v582 = vmul.f32 %v580, %v580
        %v583 = vmul.f32 %v582, -0.001358992
        %v584 = vadd.f32 %v583, 0.041655596
        %v585 = vmul.f32 %v582, %v584
        %v586 = vadd.f32 %v585, -0.4999988
        %v587 = vmul.f32 %v582, %v586
        %v588 = vadd.f32 1.0, %v587
        %v589 = vmul.f32 %v580, %v580
        %v590 = vmul.f32 %v589, -0.00019511016
        %v591 = vadd.f32 %v590, 0.008332121
        %v592 = vmul.f32 %v589, %v591
        %v593 = vadd.f32 %v592, -0.16666654
        %v594 = vmul.f32 %v589, %v593
        %v595 = vadd.f32 %v594, 1.0
        %v596 = vmul.f32 %v595, %v580
        %vm597 = vweird.f32 %v298
        %v598 = vadd.s32 %v581, 3
        %v599 = vand.u32 %v598, 3
        %vm600 = vcmp.lt.s32.totalorder %v599, 2
        %vm601 = vcmp.eq.s32.totalorder %v599, 0
        %v602 = vxor.u32 %v596, 2147483648
        %v603 = vsel %vm601, %v588, %v602
        %vm604 = vcmp.eq.s32.totalorder %v599, 2
        %v605 = vxor.u32 %v588, 2147483648
        %v606 = vsel %vm604, %v605, %v596
        %v607 = vsel %vm600, %v603, %v606
        %v608 = vsel %vm597, nan, %v607
        %609 = vst [vmem:[%s237] sm:$0xff] %v453
        %610 = vst [vmem:[%s237 + $0x8] sm:$0xff] %v608
        %v611 = vmul.f32 %v281, %v288
        %v612 = vmul.f32 %v282, %v288
        %v613 = vadd.f32 %v611, %v295
        %v614 = vadd.f32 %v612, %v295
        %v615 = vand.u32 2147483647, %v613
        %vm616 = vcmp.le.f32.partialorder %v615, 0.7853982
        %vm617 = vcmp.lt.s32.totalorder %v613, 0
        %v618 = vand.u32 %v613, 2139095040
        %v619 = vshrl.u32 %v618, 23
        %v620 = vsub.s32 %v619, 127
        %v621 = vand.u32 2147483647, %v613
        %v622 = vand.u32 %v621, 8388607
        %v623 = vor.u32 %v622, 8388608
        %v624 = vsub.s32 0, %v623
        %v625 = vadd.s32 %v620, 1
        %vm626 = vcmp.gt.s32.totalorder %v625, 0
        %v627 = vsel %vm626, %v625, 0
        %v628 = vshrl.u32 %v627, 5
        %v629 = vand.u32 %v627, 31
        %v630 = vsub.s32 32, %v629
        %v631 = vshrl.u32 683565275, %v630
        %v632 = vshll.u32 683565275, %v629
        %v633 = vshrl.u32 2475754826, %v630
        %v634 = vor.u32 %v632, %v633
        %v635 = vshll.u32 2475754826, %v629
        %v636 = vshrl.u32 2131351028, %v630
        %v637 = vor.u32 %v635, %v636
        %v638 = vshll.u32 2131351028, %v629
        %v639 = vshrl.u32 2102212464, %v630
        %v640 = vor.u32 %v638, %v639
        %v641 = vshll.u32 2102212464, %v629
        %v642 = vshrl.u32 920167782, %v630
        %v643 = vor.u32 %v641, %v642
        %v644 = vshll.u32 920167782, %v629
        %v645 = vshrl.u32 1326507024, %v630
        %v646 = vor.u32 %v644, %v645
        %vm647 = vcmp.lt.s32.totalorder %v628, 1
        %vm648 = vcmp.lt.s32.totalorder %v628, 2
        %vm649 = vcmp.lt.s32.totalorder %v628, 3
        %vm650 = vcmp.lt.s32.totalorder %v628, 4
        %v651 = vsel %vm647, %v631, %v634
        %v652 = vsel %vm650, %v640, 2102212464
        %v653 = vsel %vm649, %v637, %v652
        %v654 = vsel %vm648, %v651, %v653
        %v655 = vsel %vm647, %v634, %v637
        %v656 = vsel %vm650, %v643, 920167782
        %v657 = vsel %vm649, %v640, %v656
        %v658 = vsel %vm648, %v655, %v657
        %v659 = vsel %vm647, %v637, %v640
        %v660 = vsel %vm650, %v646, 1326507024
        %v661 = vsel %vm649, %v643, %v660
        %v662 = vsel %vm648, %v659, %v661
        %v663 = vshll.u32 %v623, 8
        %v664 = vand.u32 %v663, 65535
        %v665 = vshrl.u32 %v663, 16
        %v666 = vand.u32 %v662, 65535
        %v667 = vshrl.u32 %v662, 16
        %v668 = vmul.u32 %v664, %v666
        %v669 = vmul.u32 %v664, %v667
        %v670 = vmul.u32 %v665, %v666
        %v671 = vmul.u32 %v665, %v667
        %v672 = vshll.u32 %v669, 16
        %v673 = vshrl.u32 %v669, 16
        %v674 = vshll.u32 %v670, 16
        %v675 = vshrl.u32 %v670, 16
        %vm676 = vc.u32 %v668, %v672
        %v677 = vsel %vm676, 1, 0
        %v678 = vadd.s32 %v668, %v672
        %v679 = vadd.s32 %v671, %v677
        %vm680 = vc.u32 %v678, %v674
        %v681 = vsel %vm680, 1, 0
        %v682 = vadd.s32 %v678, %v674
        %v683 = vadd.s32 %v679, %v681
        %v684 = vadd.s32 %v683, %v673
        %v685 = vadd.s32 %v684, %v675
        %v686 = vand.u32 %v663, 65535
        %v687 = vshrl.u32 %v663, 16
        %v688 = vand.u32 %v658, 65535
        %v689 = vshrl.u32 %v658, 16
        %v690 = vmul.u32 %v686, %v688
        %v691 = vmul.u32 %v686, %v689
        %v692 = vmul.u32 %v687, %v688
        %v693 = vmul.u32 %v687, %v689
        %v694 = vshll.u32 %v691, 16
        %v695 = vshrl.u32 %v691, 16
        %v696 = vshll.u32 %v692, 16
        %v697 = vshrl.u32 %v692, 16
        %vm698 = vc.u32 %v690, %v694
        %v699 = vsel %vm698, 1, 0
        %v700 = vadd.s32 %v690, %v694
        %v701 = vadd.s32 %v693, %v699
        %vm702 = vc.u32 %v700, %v696
        %v703 = vsel %vm702, 1, 0
        %v704 = vadd.s32 %v700, %v696
        %v705 = vadd.s32 %v701, %v703
        %v706 = vadd.s32 %v705, %v695
        %v707 = vadd.s32 %v706, %v697
        %v708 = vmul.u32 %v663, %v654
        %v709 = vadd.s32 %v685, %v704
        %vm710 = vc.u32 %v685, %v704
        %v711 = vadd.s32 %v707, 1
        %v712 = vsel %vm710, %v711, %v707
        %v713 = vadd.s32 %v708, %v712
        %v714 = vadd.s32 %v713, 536870912
        %v715 = vshrl.u32 %v714, 30
        %v716 = vshll.u32 %v715, 30
        %v717 = vsub.s32 %v713, %v716
        %vm718 = vcmp.lt.s32.totalorder %v717, 0
        %v719 = vsub.s32 0, %v717
        %v720 = vsel %vm718, %v719, %v717
        %v721 = vclz %v720
        %v722 = vsub.s32 %v721, 2
        %vm723 = vcmp.gt.s32.totalorder 0, %v722
        %v724 = vsel %vm723, 0, %v722
        %v725 = vsub.s32 32, %v724
        %v726 = vshll.u32 %v717, %v724
        %v727 = vshrl.u32 %v709, %v725
        %v728 = vor.u32 %v726, %v727
        %v729 = vsub.s32 4294967266, %v724
        %v730 = vadd.s32 %v729, 127
        %v731 = vshll.u32 %v730, 23
        %v732 = vor.u32 4788187, %v731
        %v733 = vand.u32 2147483647, %v732
        %v735 = vcvt.s32.f32 %v728
        %v736 = vmul.f32 %v735, %v733
        %v737 = vxor.u32 %v736, 2147483648
        %v738 = vsel %vm617, %v737, %v736
        %v739 = vsub.s32 4, %v715
        %v740 = vsel %vm617, %v739, %v715
        %v741 = vsel %vm616, %v613, %v738
        %v742 = vsel %vm616, 0, %v740
        %v743 = vmul.f32 %v741, %v741
        %v744 = vmul.f32 %v743, -0.001358992
        %v745 = vadd.f32 %v744, 0.041655596
        %v746 = vmul.f32 %v743, %v745
        %v747 = vadd.f32 %v746, -0.4999988
        %v748 = vmul.f32 %v743, %v747
        %v749 = vadd.f32 1.0, %v748
        %v750 = vmul.f32 %v741, %v741
        %v751 = vmul.f32 %v750, -0.00019511016
        %v752 = vadd.f32 %v751, 0.008332121
        %v753 = vmul.f32 %v750, %v752
        %v754 = vadd.f32 %v753, -0.16666654
        %v755 = vmul.f32 %v750, %v754
        %v756 = vadd.f32 %v755, 1.0
        %v757 = vmul.f32 %v756, %v741
        %vm758 = vweird.f32 %v613
        %v759 = vadd.s32 %v742, 3
        %v760 = vand.u32 %v759, 3
        %vm761 = vcmp.lt.s32.totalorder %v760, 2
        %vm762 = vcmp.eq.s32.totalorder %v760, 0
        %v763 = vxor.u32 %v757, 2147483648
        %v764 = vsel %vm762, %v749, %v763
        %vm765 = vcmp.eq.s32.totalorder %v760, 2
        %v766 = vxor.u32 %v749, 2147483648
        %v767 = vsel %vm765, %v766, %v757
        %v768 = vsel %vm761, %v764, %v767
        %v769 = vsel %vm758, nan, %v768
        %v770 = vand.u32 2147483647, %v614
        %vm771 = vcmp.le.f32.partialorder %v770, 0.7853982
        %vm772 = vcmp.lt.s32.totalorder %v614, 0
        %v773 = vand.u32 %v614, 2139095040
        %v774 = vshrl.u32 %v773, 23
        %v775 = vsub.s32 %v774, 127
        %v776 = vand.u32 2147483647, %v614
        %v777 = vand.u32 %v776, 8388607
        %v778 = vor.u32 %v777, 8388608
        %v779 = vsub.s32 0, %v778
        %v780 = vadd.s32 %v775, 1
        %vm781 = vcmp.gt.s32.totalorder %v780, 0
        %v782 = vsel %vm781, %v780, 0
        %v783 = vshrl.u32 %v782, 5
        %v784 = vand.u32 %v782, 31
        %v785 = vsub.s32 32, %v784
        %v786 = vshrl.u32 683565275, %v785
        %v787 = vshll.u32 683565275, %v784
        %v788 = vshrl.u32 2475754826, %v785
        %v789 = vor.u32 %v787, %v788
        %v790 = vshll.u32 2475754826, %v784
        %v791 = vshrl.u32 2131351028, %v785
        %v792 = vor.u32 %v790, %v791
        %v793 = vshll.u32 2131351028, %v784
        %v794 = vshrl.u32 2102212464, %v785
        %v795 = vor.u32 %v793, %v794
        %v796 = vshll.u32 2102212464, %v784
        %v797 = vshrl.u32 920167782, %v785
        %v798 = vor.u32 %v796, %v797
        %v799 = vshll.u32 920167782, %v784
        %v800 = vshrl.u32 1326507024, %v785
        %v801 = vor.u32 %v799, %v800
        %vm802 = vcmp.lt.s32.totalorder %v783, 1
        %vm803 = vcmp.lt.s32.totalorder %v783, 2
        %vm804 = vcmp.lt.s32.totalorder %v783, 3
        %vm805 = vcmp.lt.s32.totalorder %v783, 4
        %v806 = vsel %vm802, %v786, %v789
        %v807 = vsel %vm805, %v795, 2102212464
        %v808 = vsel %vm804, %v792, %v807
        %v809 = vsel %vm803, %v806, %v808
        %v810 = vsel %vm802, %v789, %v792
        %v811 = vsel %vm805, %v798, 920167782
        %v812 = vsel %vm804, %v795, %v811
        %v813 = vsel %vm803, %v810, %v812
        %v814 = vsel %vm802, %v792, %v795
        %v815 = vsel %vm805, %v801, 1326507024
        %v816 = vsel %vm804, %v798, %v815
        %v817 = vsel %vm803, %v814, %v816
        %v818 = vshll.u32 %v778, 8
        %v819 = vand.u32 %v818, 65535
        %v820 = vshrl.u32 %v818, 16
        %v821 = vand.u32 %v817, 65535
        %v822 = vshrl.u32 %v817, 16
        %v823 = vmul.u32 %v819, %v821
        %v824 = vmul.u32 %v819, %v822
        %v825 = vmul.u32 %v820, %v821
        %v826 = vmul.u32 %v820, %v822
        %v827 = vshll.u32 %v824, 16
        %v828 = vshrl.u32 %v824, 16
        %v829 = vshll.u32 %v825, 16
        %v830 = vshrl.u32 %v825, 16
        %vm831 = vc.u32 %v823, %v827
        %v832 = vsel %vm831, 1, 0
        %v833 = vadd.s32 %v823, %v827
        %v834 = vadd.s32 %v826, %v832
        %vm835 = vc.u32 %v833, %v829
        %v836 = vsel %vm835, 1, 0
        %v837 = vadd.s32 %v833, %v829
        %v838 = vadd.s32 %v834, %v836
        %v839 = vadd.s32 %v838, %v828
        %v840 = vadd.s32 %v839, %v830
        %v841 = vand.u32 %v818, 65535
        %v842 = vshrl.u32 %v818, 16
        %v843 = vand.u32 %v813, 65535
        %v844 = vshrl.u32 %v813, 16
        %v845 = vmul.u32 %v841, %v843
        %v846 = vmul.u32 %v841, %v844
        %v847 = vmul.u32 %v842, %v843
        %v848 = vmul.u32 %v842, %v844
        %v849 = vshll.u32 %v846, 16
        %v850 = vshrl.u32 %v846, 16
        %v851 = vshll.u32 %v847, 16
        %v852 = vshrl.u32 %v847, 16
        %vm853 = vc.u32 %v845, %v849
        %v854 = vsel %vm853, 1, 0
        %v855 = vadd.s32 %v845, %v849
        %v856 = vadd.s32 %v848, %v854
        %vm857 = vc.u32 %v855, %v851
        %v858 = vsel %vm857, 1, 0
        %v859 = vadd.s32 %v855, %v851
        %v860 = vadd.s32 %v856, %v858
        %v861 = vadd.s32 %v860, %v850
        %v862 = vadd.s32 %v861, %v852
        %v863 = vmul.u32 %v818, %v809
        %v864 = vadd.s32 %v840, %v859
        %vm865 = vc.u32 %v840, %v859
        %v866 = vadd.s32 %v862, 1
        %v867 = vsel %vm865, %v866, %v862
        %v868 = vadd.s32 %v863, %v867
        %v869 = vadd.s32 %v868, 536870912
        %v870 = vshrl.u32 %v869, 30
        %v871 = vshll.u32 %v870, 30
        %v872 = vsub.s32 %v868, %v871
        %vm873 = vcmp.lt.s32.totalorder %v872, 0
        %v874 = vsub.s32 0, %v872
        %v875 = vsel %vm873, %v874, %v872
        %v876 = vclz %v875
        %v877 = vsub.s32 %v876, 2
        %vm878 = vcmp.gt.s32.totalorder 0, %v877
        %v879 = vsel %vm878, 0, %v877
        %v880 = vsub.s32 32, %v879
        %v881 = vshll.u32 %v872, %v879
        %v882 = vshrl.u32 %v864, %v880
        %v883 = vor.u32 %v881, %v882
        %v884 = vsub.s32 4294967266, %v879
        %v885 = vadd.s32 %v884, 127
        %v886 = vshll.u32 %v885, 23
        %v887 = vor.u32 4788187, %v886
        %v888 = vand.u32 2147483647, %v887
        %v890 = vcvt.s32.f32 %v883
        %v891 = vmul.f32 %v890, %v888
        %v892 = vxor.u32 %v891, 2147483648
        %v893 = vsel %vm772, %v892, %v891
        %v894 = vsub.s32 4, %v870
        %v895 = vsel %vm772, %v894, %v870
        %v896 = vsel %vm771, %v614, %v893
        %v897 = vsel %vm771, 0, %v895
        %v898 = vmul.f32 %v896, %v896
        %v899 = vmul.f32 %v898, -0.001358992
        %v900 = vadd.f32 %v899, 0.041655596
        %v901 = vmul.f32 %v898, %v900
        %v902 = vadd.f32 %v901, -0.4999988
        %v903 = vmul.f32 %v898, %v902
        %v904 = vadd.f32 1.0, %v903
        %v905 = vmul.f32 %v896, %v896
        %v906 = vmul.f32 %v905, -0.00019511016
        %v907 = vadd.f32 %v906, 0.008332121
        %v908 = vmul.f32 %v905, %v907
        %v909 = vadd.f32 %v908, -0.16666654
        %v910 = vmul.f32 %v905, %v909
        %v911 = vadd.f32 %v910, 1.0
        %v912 = vmul.f32 %v911, %v896
        %vm913 = vweird.f32 %v614
        %v914 = vadd.s32 %v897, 3
        %v915 = vand.u32 %v914, 3
        %vm916 = vcmp.lt.s32.totalorder %v915, 2
        %vm917 = vcmp.eq.s32.totalorder %v915, 0
        %v918 = vxor.u32 %v912, 2147483648
        %v919 = vsel %vm917, %v904, %v918
        %vm920 = vcmp.eq.s32.totalorder %v915, 2
        %v921 = vxor.u32 %v904, 2147483648
        %v922 = vsel %vm920, %v921, %v912
        %v923 = vsel %vm916, %v919, %v922
        %v924 = vsel %vm913, nan, %v923
        %925 = vst [vmem:[%s237 + $0x80] sm:$0xff] %v769
        %926 = vst [vmem:[%s237 + $0x88] sm:$0xff] %v924
        %928 = vset.pattern.permute.xlu0 0
        %929 = vperm.xlu0 %928, %v258
        %v930 = vpop.permute.xlu0 %929
        %v932 = vmul.f32 %v275, %v930
        %v933 = vmul.f32 %v276, %v930
        %935 = vset.pattern.permute.xlu0 0
        %936 = vperm.xlu0 %935, %v266
        %v937 = vpop.permute.xlu0 %936
        %v939 = vadd.f32 %v932, %v937
        %v940 = vadd.f32 %v933, %v937
        %v941 = vand.u32 2147483647, %v939
        %vm942 = vcmp.le.f32.partialorder %v941, 0.7853982
        %vm943 = vcmp.lt.s32.totalorder %v939, 0
        %v944 = vand.u32 %v939, 2139095040
        %v945 = vshrl.u32 %v944, 23
        %v946 = vsub.s32 %v945, 127
        %v947 = vand.u32 2147483647, %v939
        %v948 = vand.u32 %v947, 8388607
        %v949 = vor.u32 %v948, 8388608
        %v950 = vsub.s32 0, %v949
        %v951 = vadd.s32 %v946, 1
        %vm952 = vcmp.gt.s32.totalorder %v951, 0
        %v953 = vsel %vm952, %v951, 0
        %v954 = vshrl.u32 %v953, 5
        %v955 = vand.u32 %v953, 31
        %v956 = vsub.s32 32, %v955
        %v957 = vshrl.u32 683565275, %v956
        %v958 = vshll.u32 683565275, %v955
        %v959 = vshrl.u32 2475754826, %v956
        %v960 = vor.u32 %v958, %v959
        %v961 = vshll.u32 2475754826, %v955
        %v962 = vshrl.u32 2131351028, %v956
        %v963 = vor.u32 %v961, %v962
        %v964 = vshll.u32 2131351028, %v955
        %v965 = vshrl.u32 2102212464, %v956
        %v966 = vor.u32 %v964, %v965
        %v967 = vshll.u32 2102212464, %v955
        %v968 = vshrl.u32 920167782, %v956
        %v969 = vor.u32 %v967, %v968
        %v970 = vshll.u32 920167782, %v955
        %v971 = vshrl.u32 1326507024, %v956
        %v972 = vor.u32 %v970, %v971
        %vm973 = vcmp.lt.s32.totalorder %v954, 1
        %vm974 = vcmp.lt.s32.totalorder %v954, 2
        %vm975 = vcmp.lt.s32.totalorder %v954, 3
        %vm976 = vcmp.lt.s32.totalorder %v954, 4
        %v977 = vsel %vm973, %v957, %v960
        %v978 = vsel %vm976, %v966, 2102212464
        %v979 = vsel %vm975, %v963, %v978
        %v980 = vsel %vm974, %v977, %v979
        %v981 = vsel %vm973, %v960, %v963
        %v982 = vsel %vm976, %v969, 920167782
        %v983 = vsel %vm975, %v966, %v982
        %v984 = vsel %vm974, %v981, %v983
        %v985 = vsel %vm973, %v963, %v966
        %v986 = vsel %vm976, %v972, 1326507024
        %v987 = vsel %vm975, %v969, %v986
        %v988 = vsel %vm974, %v985, %v987
        %v989 = vshll.u32 %v949, 8
        %v990 = vand.u32 %v989, 65535
        %v991 = vshrl.u32 %v989, 16
        %v992 = vand.u32 %v988, 65535
        %v993 = vshrl.u32 %v988, 16
        %v994 = vmul.u32 %v990, %v992
        %v995 = vmul.u32 %v990, %v993
        %v996 = vmul.u32 %v991, %v992
        %v997 = vmul.u32 %v991, %v993
        %v998 = vshll.u32 %v995, 16
        %v999 = vshrl.u32 %v995, 16
        %v1000 = vshll.u32 %v996, 16
        %v1001 = vshrl.u32 %v996, 16
        %vm1002 = vc.u32 %v994, %v998
        %v1003 = vsel %vm1002, 1, 0
        %v1004 = vadd.s32 %v994, %v998
        %v1005 = vadd.s32 %v997, %v1003
        %vm1006 = vc.u32 %v1004, %v1000
        %v1007 = vsel %vm1006, 1, 0
        %v1008 = vadd.s32 %v1004, %v1000
        %v1009 = vadd.s32 %v1005, %v1007
        %v1010 = vadd.s32 %v1009, %v999
        %v1011 = vadd.s32 %v1010, %v1001
        %v1012 = vand.u32 %v989, 65535
        %v1013 = vshrl.u32 %v989, 16
        %v1014 = vand.u32 %v984, 65535
        %v1015 = vshrl.u32 %v984, 16
        %v1016 = vmul.u32 %v1012, %v1014
        %v1017 = vmul.u32 %v1012, %v1015
        %v1018 = vmul.u32 %v1013, %v1014
        %v1019 = vmul.u32 %v1013, %v1015
        %v1020 = vshll.u32 %v1017, 16
        %v1021 = vshrl.u32 %v1017, 16
        %v1022 = vshll.u32 %v1018, 16
        %v1023 = vshrl.u32 %v1018, 16
        %vm1024 = vc.u32 %v1016, %v1020
        %v1025 = vsel %vm1024, 1, 0
        %v1026 = vadd.s32 %v1016, %v1020
        %v1027 = vadd.s32 %v1019, %v1025
        %vm1028 = vc.u32 %v1026, %v1022
        %v1029 = vsel %vm1028, 1, 0
        %v1030 = vadd.s32 %v1026, %v1022
        %v1031 = vadd.s32 %v1027, %v1029
        %v1032 = vadd.s32 %v1031, %v1021
        %v1033 = vadd.s32 %v1032, %v1023
        %v1034 = vmul.u32 %v989, %v980
        %v1035 = vadd.s32 %v1011, %v1030
        %vm1036 = vc.u32 %v1011, %v1030
        %v1037 = vadd.s32 %v1033, 1
        %v1038 = vsel %vm1036, %v1037, %v1033
        %v1039 = vadd.s32 %v1034, %v1038
        %v1040 = vadd.s32 %v1039, 536870912
        %v1041 = vshrl.u32 %v1040, 30
        %v1042 = vshll.u32 %v1041, 30
        %v1043 = vsub.s32 %v1039, %v1042
        %vm1044 = vcmp.lt.s32.totalorder %v1043, 0
        %v1045 = vsub.s32 0, %v1043
        %v1046 = vsel %vm1044, %v1045, %v1043
        %v1047 = vclz %v1046
        %v1048 = vsub.s32 %v1047, 2
        %vm1049 = vcmp.gt.s32.totalorder 0, %v1048
        %v1050 = vsel %vm1049, 0, %v1048
        %v1051 = vsub.s32 32, %v1050
        %v1052 = vshll.u32 %v1043, %v1050
        %v1053 = vshrl.u32 %v1035, %v1051
        %v1054 = vor.u32 %v1052, %v1053
        %v1055 = vsub.s32 4294967266, %v1050
        %v1056 = vadd.s32 %v1055, 127
        %v1057 = vshll.u32 %v1056, 23
        %v1058 = vor.u32 4788187, %v1057
        %v1059 = vand.u32 2147483647, %v1058
        %v1061 = vcvt.s32.f32 %v1054
        %v1062 = vmul.f32 %v1061, %v1059
        %v1063 = vxor.u32 %v1062, 2147483648
        %v1064 = vsel %vm943, %v1063, %v1062
        %v1065 = vsub.s32 4, %v1041
        %v1066 = vsel %vm943, %v1065, %v1041
        %v1067 = vsel %vm942, %v939, %v1064
        %v1068 = vsel %vm942, 0, %v1066
        %v1069 = vmul.f32 %v1067, %v1067
        %v1070 = vmul.f32 %v1069, -0.001358992
        %v1071 = vadd.f32 %v1070, 0.041655596
        %v1072 = vmul.f32 %v1069, %v1071
        %v1073 = vadd.f32 %v1072, -0.4999988
        %v1074 = vmul.f32 %v1069, %v1073
        %v1075 = vadd.f32 1.0, %v1074
        %v1076 = vmul.f32 %v1067, %v1067
        %v1077 = vmul.f32 %v1076, -0.00019511016
        %v1078 = vadd.f32 %v1077, 0.008332121
        %v1079 = vmul.f32 %v1076, %v1078
        %v1080 = vadd.f32 %v1079, -0.16666654
        %v1081 = vmul.f32 %v1076, %v1080
        %v1082 = vadd.f32 %v1081, 1.0
        %v1083 = vmul.f32 %v1082, %v1067
        %vm1084 = vweird.f32 %v939
        %v1085 = vadd.s32 %v1068, 3
        %v1086 = vand.u32 %v1085, 3
        %vm1087 = vcmp.lt.s32.totalorder %v1086, 2
        %vm1088 = vcmp.eq.s32.totalorder %v1086, 0
        %v1089 = vxor.u32 %v1083, 2147483648
        %v1090 = vsel %vm1088, %v1075, %v1089
        %vm1091 = vcmp.eq.s32.totalorder %v1086, 2
        %v1092 = vxor.u32 %v1075, 2147483648
        %v1093 = vsel %vm1091, %v1092, %v1083
        %v1094 = vsel %vm1087, %v1090, %v1093
        %v1095 = vsel %vm1084, nan, %v1094
        %v1096 = vand.u32 2147483647, %v940
        %vm1097 = vcmp.le.f32.partialorder %v1096, 0.7853982
        %vm1098 = vcmp.lt.s32.totalorder %v940, 0
        %v1099 = vand.u32 %v940, 2139095040
        %v1100 = vshrl.u32 %v1099, 23
        %v1101 = vsub.s32 %v1100, 127
        %v1102 = vand.u32 2147483647, %v940
        %v1103 = vand.u32 %v1102, 8388607
        %v1104 = vor.u32 %v1103, 8388608
        %v1105 = vsub.s32 0, %v1104
        %v1106 = vadd.s32 %v1101, 1
        %vm1107 = vcmp.gt.s32.totalorder %v1106, 0
        %v1108 = vsel %vm1107, %v1106, 0
        %v1109 = vshrl.u32 %v1108, 5
        %v1110 = vand.u32 %v1108, 31
        %v1111 = vsub.s32 32, %v1110
        %v1112 = vshrl.u32 683565275, %v1111
        %v1113 = vshll.u32 683565275, %v1110
        %v1114 = vshrl.u32 2475754826, %v1111
        %v1115 = vor.u32 %v1113, %v1114
        %v1116 = vshll.u32 2475754826, %v1110
        %v1117 = vshrl.u32 2131351028, %v1111
        %v1118 = vor.u32 %v1116, %v1117
        %v1119 = vshll.u32 2131351028, %v1110
        %v1120 = vshrl.u32 2102212464, %v1111
        %v1121 = vor.u32 %v1119, %v1120
        %v1122 = vshll.u32 2102212464, %v1110
        %v1123 = vshrl.u32 920167782, %v1111
        %v1124 = vor.u32 %v1122, %v1123
        %v1125 = vshll.u32 920167782, %v1110
        %v1126 = vshrl.u32 1326507024, %v1111
        %v1127 = vor.u32 %v1125, %v1126
        %vm1128 = vcmp.lt.s32.totalorder %v1109, 1
        %vm1129 = vcmp.lt.s32.totalorder %v1109, 2
        %vm1130 = vcmp.lt.s32.totalorder %v1109, 3
        %vm1131 = vcmp.lt.s32.totalorder %v1109, 4
        %v1132 = vsel %vm1128, %v1112, %v1115
        %v1133 = vsel %vm1131, %v1121, 2102212464
        %v1134 = vsel %vm1130, %v1118, %v1133
        %v1135 = vsel %vm1129, %v1132, %v1134
        %v1136 = vsel %vm1128, %v1115, %v1118
        %v1137 = vsel %vm1131, %v1124, 920167782
        %v1138 = vsel %vm1130, %v1121, %v1137
        %v1139 = vsel %vm1129, %v1136, %v1138
        %v1140 = vsel %vm1128, %v1118, %v1121
        %v1141 = vsel %vm1131, %v1127, 1326507024
        %v1142 = vsel %vm1130, %v1124, %v1141
        %v1143 = vsel %vm1129, %v1140, %v1142
        %v1144 = vshll.u32 %v1104, 8
        %v1145 = vand.u32 %v1144, 65535
        %v1146 = vshrl.u32 %v1144, 16
        %v1147 = vand.u32 %v1143, 65535
        %v1148 = vshrl.u32 %v1143, 16
        %v1149 = vmul.u32 %v1145, %v1147
        %v1150 = vmul.u32 %v1145, %v1148
        %v1151 = vmul.u32 %v1146, %v1147
        %v1152 = vmul.u32 %v1146, %v1148
        %v1153 = vshll.u32 %v1150, 16
        %v1154 = vshrl.u32 %v1150, 16
        %v1155 = vshll.u32 %v1151, 16
        %v1156 = vshrl.u32 %v1151, 16
        %vm1157 = vc.u32 %v1149, %v1153
        %v1158 = vsel %vm1157, 1, 0
        %v1159 = vadd.s32 %v1149, %v1153
        %v1160 = vadd.s32 %v1152, %v1158
        %vm1161 = vc.u32 %v1159, %v1155
        %v1162 = vsel %vm1161, 1, 0
        %v1163 = vadd.s32 %v1159, %v1155
        %v1164 = vadd.s32 %v1160, %v1162
        %v1165 = vadd.s32 %v1164, %v1154
        %v1166 = vadd.s32 %v1165, %v1156
        %v1167 = vand.u32 %v1144, 65535
        %v1168 = vshrl.u32 %v1144, 16
        %v1169 = vand.u32 %v1139, 65535
        %v1170 = vshrl.u32 %v1139, 16
        %v1171 = vmul.u32 %v1167, %v1169
        %v1172 = vmul.u32 %v1167, %v1170
        %v1173 = vmul.u32 %v1168, %v1169
        %v1174 = vmul.u32 %v1168, %v1170
        %v1175 = vshll.u32 %v1172, 16
        %v1176 = vshrl.u32 %v1172, 16
        %v1177 = vshll.u32 %v1173, 16
        %v1178 = vshrl.u32 %v1173, 16
        %vm1179 = vc.u32 %v1171, %v1175
        %v1180 = vsel %vm1179, 1, 0
        %v1181 = vadd.s32 %v1171, %v1175
        %v1182 = vadd.s32 %v1174, %v1180
        %vm1183 = vc.u32 %v1181, %v1177
        %v1184 = vsel %vm1183, 1, 0
        %v1185 = vadd.s32 %v1181, %v1177
        %v1186 = vadd.s32 %v1182, %v1184
        %v1187 = vadd.s32 %v1186, %v1176
        %v1188 = vadd.s32 %v1187, %v1178
        %v1189 = vmul.u32 %v1144, %v1135
        %v1190 = vadd.s32 %v1166, %v1185
        %vm1191 = vc.u32 %v1166, %v1185
        %v1192 = vadd.s32 %v1188, 1
        %v1193 = vsel %vm1191, %v1192, %v1188
        %v1194 = vadd.s32 %v1189, %v1193
        %v1195 = vadd.s32 %v1194, 536870912
        %v1196 = vshrl.u32 %v1195, 30
        %v1197 = vshll.u32 %v1196, 30
        %v1198 = vsub.s32 %v1194, %v1197
        %vm1199 = vcmp.lt.s32.totalorder %v1198, 0
        %v1200 = vsub.s32 0, %v1198
        %v1201 = vsel %vm1199, %v1200, %v1198
        %v1202 = vclz %v1201
        %v1203 = vsub.s32 %v1202, 2
        %vm1204 = vcmp.gt.s32.totalorder 0, %v1203
        %v1205 = vsel %vm1204, 0, %v1203
        %v1206 = vsub.s32 32, %v1205
        %v1207 = vshll.u32 %v1198, %v1205
        %v1208 = vshrl.u32 %v1190, %v1206
        %v1209 = vor.u32 %v1207, %v1208
        %v1210 = vsub.s32 4294967266, %v1205
        %v1211 = vadd.s32 %v1210, 127
        %v1212 = vshll.u32 %v1211, 23
        %v1213 = vor.u32 4788187, %v1212
        %v1214 = vand.u32 2147483647, %v1213
        %v1216 = vcvt.s32.f32 %v1209
        %v1217 = vmul.f32 %v1216, %v1214
        %v1218 = vxor.u32 %v1217, 2147483648
        %v1219 = vsel %vm1098, %v1218, %v1217
        %v1220 = vsub.s32 4, %v1196
        %v1221 = vsel %vm1098, %v1220, %v1196
        %v1222 = vsel %vm1097, %v940, %v1219
        %v1223 = vsel %vm1097, 0, %v1221
        %v1224 = vmul.f32 %v1222, %v1222
        %v1225 = vmul.f32 %v1224, -0.001358992
        %v1226 = vadd.f32 %v1225, 0.041655596
        %v1227 = vmul.f32 %v1224, %v1226
        %v1228 = vadd.f32 %v1227, -0.4999988
        %v1229 = vmul.f32 %v1224, %v1228
        %v1230 = vadd.f32 1.0, %v1229
        %v1231 = vmul.f32 %v1222, %v1222
        %v1232 = vmul.f32 %v1231, -0.00019511016
        %v1233 = vadd.f32 %v1232, 0.008332121
        %v1234 = vmul.f32 %v1231, %v1233
        %v1235 = vadd.f32 %v1234, -0.16666654
        %v1236 = vmul.f32 %v1231, %v1235
        %v1237 = vadd.f32 %v1236, 1.0
        %v1238 = vmul.f32 %v1237, %v1222
        %vm1239 = vweird.f32 %v940
        %v1240 = vadd.s32 %v1223, 3
        %v1241 = vand.u32 %v1240, 3
        %vm1242 = vcmp.lt.s32.totalorder %v1241, 2
        %vm1243 = vcmp.eq.s32.totalorder %v1241, 0
        %v1244 = vxor.u32 %v1238, 2147483648
        %v1245 = vsel %vm1243, %v1230, %v1244
        %vm1246 = vcmp.eq.s32.totalorder %v1241, 2
        %v1247 = vxor.u32 %v1230, 2147483648
        %v1248 = vsel %vm1246, %v1247, %v1238
        %v1249 = vsel %vm1242, %v1245, %v1248
        %v1250 = vsel %vm1239, nan, %v1249
        %1251 = vst [vmem:[%s237 + $0x10] sm:$0xff] %v1095
        %1252 = vst [vmem:[%s237 + $0x18] sm:$0xff] %v1250
        %v1253 = vmul.f32 %v281, %v930
        %v1254 = vmul.f32 %v282, %v930
        %v1255 = vadd.f32 %v1253, %v937
        %v1256 = vadd.f32 %v1254, %v937
        %v1257 = vand.u32 2147483647, %v1255
        %vm1258 = vcmp.le.f32.partialorder %v1257, 0.7853982
        %vm1259 = vcmp.lt.s32.totalorder %v1255, 0
        %v1260 = vand.u32 %v1255, 2139095040
        %v1261 = vshrl.u32 %v1260, 23
        %v1262 = vsub.s32 %v1261, 127
        %v1263 = vand.u32 2147483647, %v1255
        %v1264 = vand.u32 %v1263, 8388607
        %v1265 = vor.u32 %v1264, 8388608
        %v1266 = vsub.s32 0, %v1265
        %v1267 = vadd.s32 %v1262, 1
        %vm1268 = vcmp.gt.s32.totalorder %v1267, 0
        %v1269 = vsel %vm1268, %v1267, 0
        %v1270 = vshrl.u32 %v1269, 5
        %v1271 = vand.u32 %v1269, 31
        %v1272 = vsub.s32 32, %v1271
        %v1273 = vshrl.u32 683565275, %v1272
        %v1274 = vshll.u32 683565275, %v1271
        %v1275 = vshrl.u32 2475754826, %v1272
        %v1276 = vor.u32 %v1274, %v1275
        %v1277 = vshll.u32 2475754826, %v1271
        %v1278 = vshrl.u32 2131351028, %v1272
        %v1279 = vor.u32 %v1277, %v1278
        %v1280 = vshll.u32 2131351028, %v1271
        %v1281 = vshrl.u32 2102212464, %v1272
        %v1282 = vor.u32 %v1280, %v1281
        %v1283 = vshll.u32 2102212464, %v1271
        %v1284 = vshrl.u32 920167782, %v1272
        %v1285 = vor.u32 %v1283, %v1284
        %v1286 = vshll.u32 920167782, %v1271
        %v1287 = vshrl.u32 1326507024, %v1272
        %v1288 = vor.u32 %v1286, %v1287
        %vm1289 = vcmp.lt.s32.totalorder %v1270, 1
        %vm1290 = vcmp.lt.s32.totalorder %v1270, 2
        %vm1291 = vcmp.lt.s32.totalorder %v1270, 3
        %vm1292 = vcmp.lt.s32.totalorder %v1270, 4
        %v1293 = vsel %vm1289, %v1273, %v1276
        %v1294 = vsel %vm1292, %v1282, 2102212464
        %v1295 = vsel %vm1291, %v1279, %v1294
        %v1296 = vsel %vm1290, %v1293, %v1295
        %v1297 = vsel %vm1289, %v1276, %v1279
        %v1298 = vsel %vm1292, %v1285, 920167782
        %v1299 = vsel %vm1291, %v1282, %v1298
        %v1300 = vsel %vm1290, %v1297, %v1299
        %v1301 = vsel %vm1289, %v1279, %v1282
        %v1302 = vsel %vm1292, %v1288, 1326507024
        %v1303 = vsel %vm1291, %v1285, %v1302
        %v1304 = vsel %vm1290, %v1301, %v1303
        %v1305 = vshll.u32 %v1265, 8
        %v1306 = vand.u32 %v1305, 65535
        %v1307 = vshrl.u32 %v1305, 16
        %v1308 = vand.u32 %v1304, 65535
        %v1309 = vshrl.u32 %v1304, 16
        %v1310 = vmul.u32 %v1306, %v1308
        %v1311 = vmul.u32 %v1306, %v1309
        %v1312 = vmul.u32 %v1307, %v1308
        %v1313 = vmul.u32 %v1307, %v1309
        %v1314 = vshll.u32 %v1311, 16
        %v1315 = vshrl.u32 %v1311, 16
        %v1316 = vshll.u32 %v1312, 16
        %v1317 = vshrl.u32 %v1312, 16
        %vm1318 = vc.u32 %v1310, %v1314
        %v1319 = vsel %vm1318, 1, 0
        %v1320 = vadd.s32 %v1310, %v1314
        %v1321 = vadd.s32 %v1313, %v1319
        %vm1322 = vc.u32 %v1320, %v1316
        %v1323 = vsel %vm1322, 1, 0
        %v1324 = vadd.s32 %v1320, %v1316
        %v1325 = vadd.s32 %v1321, %v1323
        %v1326 = vadd.s32 %v1325, %v1315
        %v1327 = vadd.s32 %v1326, %v1317
        %v1328 = vand.u32 %v1305, 65535
        %v1329 = vshrl.u32 %v1305, 16
        %v1330 = vand.u32 %v1300, 65535
        %v1331 = vshrl.u32 %v1300, 16
        %v1332 = vmul.u32 %v1328, %v1330
        %v1333 = vmul.u32 %v1328, %v1331
        %v1334 = vmul.u32 %v1329, %v1330
        %v1335 = vmul.u32 %v1329, %v1331
        %v1336 = vshll.u32 %v1333, 16
        %v1337 = vshrl.u32 %v1333, 16
        %v1338 = vshll.u32 %v1334, 16
        %v1339 = vshrl.u32 %v1334, 16
        %vm1340 = vc.u32 %v1332, %v1336
        %v1341 = vsel %vm1340, 1, 0
        %v1342 = vadd.s32 %v1332, %v1336
        %v1343 = vadd.s32 %v1335, %v1341
        %vm1344 = vc.u32 %v1342, %v1338
        %v1345 = vsel %vm1344, 1, 0
        %v1346 = vadd.s32 %v1342, %v1338
        %v1347 = vadd.s32 %v1343, %v1345
        %v1348 = vadd.s32 %v1347, %v1337
        %v1349 = vadd.s32 %v1348, %v1339
        %v1350 = vmul.u32 %v1305, %v1296
        %v1351 = vadd.s32 %v1327, %v1346
        %vm1352 = vc.u32 %v1327, %v1346
        %v1353 = vadd.s32 %v1349, 1
        %v1354 = vsel %vm1352, %v1353, %v1349
        %v1355 = vadd.s32 %v1350, %v1354
        %v1356 = vadd.s32 %v1355, 536870912
        %v1357 = vshrl.u32 %v1356, 30
        %v1358 = vshll.u32 %v1357, 30
        %v1359 = vsub.s32 %v1355, %v1358
        %vm1360 = vcmp.lt.s32.totalorder %v1359, 0
        %v1361 = vsub.s32 0, %v1359
        %v1362 = vsel %vm1360, %v1361, %v1359
        %v1363 = vclz %v1362
        %v1364 = vsub.s32 %v1363, 2
        %vm1365 = vcmp.gt.s32.totalorder 0, %v1364
        %v1366 = vsel %vm1365, 0, %v1364
        %v1367 = vsub.s32 32, %v1366
        %v1368 = vshll.u32 %v1359, %v1366
        %v1369 = vshrl.u32 %v1351, %v1367
        %v1370 = vor.u32 %v1368, %v1369
        %v1371 = vsub.s32 4294967266, %v1366
        %v1372 = vadd.s32 %v1371, 127
        %v1373 = vshll.u32 %v1372, 23
        %v1374 = vor.u32 4788187, %v1373
        %v1375 = vand.u32 2147483647, %v1374
        %v1377 = vcvt.s32.f32 %v1370
        %v1378 = vmul.f32 %v1377, %v1375
        %v1379 = vxor.u32 %v1378, 2147483648
        %v1380 = vsel %vm1259, %v1379, %v1378
        %v1381 = vsub.s32 4, %v1357
        %v1382 = vsel %vm1259, %v1381, %v1357
        %v1383 = vsel %vm1258, %v1255, %v1380
        %v1384 = vsel %vm1258, 0, %v1382
        %v1385 = vmul.f32 %v1383, %v1383
        %v1386 = vmul.f32 %v1385, -0.001358992
        %v1387 = vadd.f32 %v1386, 0.041655596
        %v1388 = vmul.f32 %v1385, %v1387
        %v1389 = vadd.f32 %v1388, -0.4999988
        %v1390 = vmul.f32 %v1385, %v1389
        %v1391 = vadd.f32 1.0, %v1390
        %v1392 = vmul.f32 %v1383, %v1383
        %v1393 = vmul.f32 %v1392, -0.00019511016
        %v1394 = vadd.f32 %v1393, 0.008332121
        %v1395 = vmul.f32 %v1392, %v1394
        %v1396 = vadd.f32 %v1395, -0.16666654
        %v1397 = vmul.f32 %v1392, %v1396
        %v1398 = vadd.f32 %v1397, 1.0
        %v1399 = vmul.f32 %v1398, %v1383
        %vm1400 = vweird.f32 %v1255
        %v1401 = vadd.s32 %v1384, 3
        %v1402 = vand.u32 %v1401, 3
        %vm1403 = vcmp.lt.s32.totalorder %v1402, 2
        %vm1404 = vcmp.eq.s32.totalorder %v1402, 0
        %v1405 = vxor.u32 %v1399, 2147483648
        %v1406 = vsel %vm1404, %v1391, %v1405
        %vm1407 = vcmp.eq.s32.totalorder %v1402, 2
        %v1408 = vxor.u32 %v1391, 2147483648
        %v1409 = vsel %vm1407, %v1408, %v1399
        %v1410 = vsel %vm1403, %v1406, %v1409
        %v1411 = vsel %vm1400, nan, %v1410
        %v1412 = vand.u32 2147483647, %v1256
        %vm1413 = vcmp.le.f32.partialorder %v1412, 0.7853982
        %vm1414 = vcmp.lt.s32.totalorder %v1256, 0
        %v1415 = vand.u32 %v1256, 2139095040
        %v1416 = vshrl.u32 %v1415, 23
        %v1417 = vsub.s32 %v1416, 127
        %v1418 = vand.u32 2147483647, %v1256
        %v1419 = vand.u32 %v1418, 8388607
        %v1420 = vor.u32 %v1419, 8388608
        %v1421 = vsub.s32 0, %v1420
        %v1422 = vadd.s32 %v1417, 1
        %vm1423 = vcmp.gt.s32.totalorder %v1422, 0
        %v1424 = vsel %vm1423, %v1422, 0
        %v1425 = vshrl.u32 %v1424, 5
        %v1426 = vand.u32 %v1424, 31
        %v1427 = vsub.s32 32, %v1426
        %v1428 = vshrl.u32 683565275, %v1427
        %v1429 = vshll.u32 683565275, %v1426
        %v1430 = vshrl.u32 2475754826, %v1427
        %v1431 = vor.u32 %v1429, %v1430
        %v1432 = vshll.u32 2475754826, %v1426
        %v1433 = vshrl.u32 2131351028, %v1427
        %v1434 = vor.u32 %v1432, %v1433
        %v1435 = vshll.u32 2131351028, %v1426
        %v1436 = vshrl.u32 2102212464, %v1427
        %v1437 = vor.u32 %v1435, %v1436
        %v1438 = vshll.u32 2102212464, %v1426
        %v1439 = vshrl.u32 920167782, %v1427
        %v1440 = vor.u32 %v1438, %v1439
        %v1441 = vshll.u32 920167782, %v1426
        %v1442 = vshrl.u32 1326507024, %v1427
        %v1443 = vor.u32 %v1441, %v1442
        %vm1444 = vcmp.lt.s32.totalorder %v1425, 1
        %vm1445 = vcmp.lt.s32.totalorder %v1425, 2
        %vm1446 = vcmp.lt.s32.totalorder %v1425, 3
        %vm1447 = vcmp.lt.s32.totalorder %v1425, 4
        %v1448 = vsel %vm1444, %v1428, %v1431
        %v1449 = vsel %vm1447, %v1437, 2102212464
        %v1450 = vsel %vm1446, %v1434, %v1449
        %v1451 = vsel %vm1445, %v1448, %v1450
        %v1452 = vsel %vm1444, %v1431, %v1434
        %v1453 = vsel %vm1447, %v1440, 920167782
        %v1454 = vsel %vm1446, %v1437, %v1453
        %v1455 = vsel %vm1445, %v1452, %v1454
        %v1456 = vsel %vm1444, %v1434, %v1437
        %v1457 = vsel %vm1447, %v1443, 1326507024
        %v1458 = vsel %vm1446, %v1440, %v1457
        %v1459 = vsel %vm1445, %v1456, %v1458
        %v1460 = vshll.u32 %v1420, 8
        %v1461 = vand.u32 %v1460, 65535
        %v1462 = vshrl.u32 %v1460, 16
        %v1463 = vand.u32 %v1459, 65535
        %v1464 = vshrl.u32 %v1459, 16
        %v1465 = vmul.u32 %v1461, %v1463
        %v1466 = vmul.u32 %v1461, %v1464
        %v1467 = vmul.u32 %v1462, %v1463
        %v1468 = vmul.u32 %v1462, %v1464
        %v1469 = vshll.u32 %v1466, 16
        %v1470 = vshrl.u32 %v1466, 16
        %v1471 = vshll.u32 %v1467, 16
        %v1472 = vshrl.u32 %v1467, 16
        %vm1473 = vc.u32 %v1465, %v1469
        %v1474 = vsel %vm1473, 1, 0
        %v1475 = vadd.s32 %v1465, %v1469
        %v1476 = vadd.s32 %v1468, %v1474
        %vm1477 = vc.u32 %v1475, %v1471
        %v1478 = vsel %vm1477, 1, 0
        %v1479 = vadd.s32 %v1475, %v1471
        %v1480 = vadd.s32 %v1476, %v1478
        %v1481 = vadd.s32 %v1480, %v1470
        %v1482 = vadd.s32 %v1481, %v1472
        %v1483 = vand.u32 %v1460, 65535
        %v1484 = vshrl.u32 %v1460, 16
        %v1485 = vand.u32 %v1455, 65535
        %v1486 = vshrl.u32 %v1455, 16
        %v1487 = vmul.u32 %v1483, %v1485
        %v1488 = vmul.u32 %v1483, %v1486
        %v1489 = vmul.u32 %v1484, %v1485
        %v1490 = vmul.u32 %v1484, %v1486
        %v1491 = vshll.u32 %v1488, 16
        %v1492 = vshrl.u32 %v1488, 16
        %v1493 = vshll.u32 %v1489, 16
        %v1494 = vshrl.u32 %v1489, 16
        %vm1495 = vc.u32 %v1487, %v1491
        %v1496 = vsel %vm1495, 1, 0
        %v1497 = vadd.s32 %v1487, %v1491
        %v1498 = vadd.s32 %v1490, %v1496
        %vm1499 = vc.u32 %v1497, %v1493
        %v1500 = vsel %vm1499, 1, 0
        %v1501 = vadd.s32 %v1497, %v1493
        %v1502 = vadd.s32 %v1498, %v1500
        %v1503 = vadd.s32 %v1502, %v1492
        %v1504 = vadd.s32 %v1503, %v1494
        %v1505 = vmul.u32 %v1460, %v1451
        %v1506 = vadd.s32 %v1482, %v1501
        %vm1507 = vc.u32 %v1482, %v1501
        %v1508 = vadd.s32 %v1504, 1
        %v1509 = vsel %vm1507, %v1508, %v1504
        %v1510 = vadd.s32 %v1505, %v1509
        %v1511 = vadd.s32 %v1510, 536870912
        %v1512 = vshrl.u32 %v1511, 30
        %v1513 = vshll.u32 %v1512, 30
        %v1514 = vsub.s32 %v1510, %v1513
        %vm1515 = vcmp.lt.s32.totalorder %v1514, 0
        %v1516 = vsub.s32 0, %v1514
        %v1517 = vsel %vm1515, %v1516, %v1514
        %v1518 = vclz %v1517
        %v1519 = vsub.s32 %v1518, 2
        %vm1520 = vcmp.gt.s32.totalorder 0, %v1519
        %v1521 = vsel %vm1520, 0, %v1519
        %v1522 = vsub.s32 32, %v1521
        %v1523 = vshll.u32 %v1514, %v1521
        %v1524 = vshrl.u32 %v1506, %v1522
        %v1525 = vor.u32 %v1523, %v1524
        %v1526 = vsub.s32 4294967266, %v1521
        %v1527 = vadd.s32 %v1526, 127
        %v1528 = vshll.u32 %v1527, 23
        %v1529 = vor.u32 4788187, %v1528
        %v1530 = vand.u32 2147483647, %v1529
        %v1532 = vcvt.s32.f32 %v1525
        %v1533 = vmul.f32 %v1532, %v1530
        %v1534 = vxor.u32 %v1533, 2147483648
        %v1535 = vsel %vm1414, %v1534, %v1533
        %v1536 = vsub.s32 4, %v1512
        %v1537 = vsel %vm1414, %v1536, %v1512
        %v1538 = vsel %vm1413, %v1256, %v1535
        %v1539 = vsel %vm1413, 0, %v1537
        %v1540 = vmul.f32 %v1538, %v1538
        %v1541 = vmul.f32 %v1540, -0.001358992
        %v1542 = vadd.f32 %v1541, 0.041655596
        %v1543 = vmul.f32 %v1540, %v1542
        %v1544 = vadd.f32 %v1543, -0.4999988
        %v1545 = vmul.f32 %v1540, %v1544
        %v1546 = vadd.f32 1.0, %v1545
        %v1547 = vmul.f32 %v1538, %v1538
        %v1548 = vmul.f32 %v1547, -0.00019511016
        %v1549 = vadd.f32 %v1548, 0.008332121
        %v1550 = vmul.f32 %v1547, %v1549
        %v1551 = vadd.f32 %v1550, -0.16666654
        %v1552 = vmul.f32 %v1547, %v1551
        %v1553 = vadd.f32 %v1552, 1.0
        %v1554 = vmul.f32 %v1553, %v1538
        %vm1555 = vweird.f32 %v1256
        %v1556 = vadd.s32 %v1539, 3
        %v1557 = vand.u32 %v1556, 3
        %vm1558 = vcmp.lt.s32.totalorder %v1557, 2
        %vm1559 = vcmp.eq.s32.totalorder %v1557, 0
        %v1560 = vxor.u32 %v1554, 2147483648
        %v1561 = vsel %vm1559, %v1546, %v1560
        %vm1562 = vcmp.eq.s32.totalorder %v1557, 2
        %v1563 = vxor.u32 %v1546, 2147483648
        %v1564 = vsel %vm1562, %v1563, %v1554
        %v1565 = vsel %vm1558, %v1561, %v1564
        %v1566 = vsel %vm1555, nan, %v1565
        %1567 = vst [vmem:[%s237 + $0x90] sm:$0xff] %v1411
        %1568 = vst [vmem:[%s237 + $0x98] sm:$0xff] %v1566
        %1570 = vset.pattern.permute.xlu0 0
        %1571 = vperm.xlu0 %1570, %v259
        %v1572 = vpop.permute.xlu0 %1571
        %v1574 = vmul.f32 %v275, %v1572
        %v1575 = vmul.f32 %v276, %v1572
        %1577 = vset.pattern.permute.xlu0 0
        %1578 = vperm.xlu0 %1577, %v267
        %v1579 = vpop.permute.xlu0 %1578
        %v1581 = vadd.f32 %v1574, %v1579
        %v1582 = vadd.f32 %v1575, %v1579
        %v1583 = vand.u32 2147483647, %v1581
        %vm1584 = vcmp.le.f32.partialorder %v1583, 0.7853982
        %vm1585 = vcmp.lt.s32.totalorder %v1581, 0
        %v1586 = vand.u32 %v1581, 2139095040
        %v1587 = vshrl.u32 %v1586, 23
        %v1588 = vsub.s32 %v1587, 127
        %v1589 = vand.u32 2147483647, %v1581
        %v1590 = vand.u32 %v1589, 8388607
        %v1591 = vor.u32 %v1590, 8388608
        %v1592 = vsub.s32 0, %v1591
        %v1593 = vadd.s32 %v1588, 1
        %vm1594 = vcmp.gt.s32.totalorder %v1593, 0
        %v1595 = vsel %vm1594, %v1593, 0
        %v1596 = vshrl.u32 %v1595, 5
        %v1597 = vand.u32 %v1595, 31
        %v1598 = vsub.s32 32, %v1597
        %v1599 = vshrl.u32 683565275, %v1598
        %v1600 = vshll.u32 683565275, %v1597
        %v1601 = vshrl.u32 2475754826, %v1598
        %v1602 = vor.u32 %v1600, %v1601
        %v1603 = vshll.u32 2475754826, %v1597
        %v1604 = vshrl.u32 2131351028, %v1598
        %v1605 = vor.u32 %v1603, %v1604
        %v1606 = vshll.u32 2131351028, %v1597
        %v1607 = vshrl.u32 2102212464, %v1598
        %v1608 = vor.u32 %v1606, %v1607
        %v1609 = vshll.u32 2102212464, %v1597
        %v1610 = vshrl.u32 920167782, %v1598
        %v1611 = vor.u32 %v1609, %v1610
        %v1612 = vshll.u32 920167782, %v1597
        %v1613 = vshrl.u32 1326507024, %v1598
        %v1614 = vor.u32 %v1612, %v1613
        %vm1615 = vcmp.lt.s32.totalorder %v1596, 1
        %vm1616 = vcmp.lt.s32.totalorder %v1596, 2
        %vm1617 = vcmp.lt.s32.totalorder %v1596, 3
        %vm1618 = vcmp.lt.s32.totalorder %v1596, 4
        %v1619 = vsel %vm1615, %v1599, %v1602
        %v1620 = vsel %vm1618, %v1608, 2102212464
        %v1621 = vsel %vm1617, %v1605, %v1620
        %v1622 = vsel %vm1616, %v1619, %v1621
        %v1623 = vsel %vm1615, %v1602, %v1605
        %v1624 = vsel %vm1618, %v1611, 920167782
        %v1625 = vsel %vm1617, %v1608, %v1624
        %v1626 = vsel %vm1616, %v1623, %v1625
        %v1627 = vsel %vm1615, %v1605, %v1608
        %v1628 = vsel %vm1618, %v1614, 1326507024
        %v1629 = vsel %vm1617, %v1611, %v1628
        %v1630 = vsel %vm1616, %v1627, %v1629
        %v1631 = vshll.u32 %v1591, 8
        %v1632 = vand.u32 %v1631, 65535
        %v1633 = vshrl.u32 %v1631, 16
        %v1634 = vand.u32 %v1630, 65535
        %v1635 = vshrl.u32 %v1630, 16
        %v1636 = vmul.u32 %v1632, %v1634
        %v1637 = vmul.u32 %v1632, %v1635
        %v1638 = vmul.u32 %v1633, %v1634
        %v1639 = vmul.u32 %v1633, %v1635
        %v1640 = vshll.u32 %v1637, 16
        %v1641 = vshrl.u32 %v1637, 16
        %v1642 = vshll.u32 %v1638, 16
        %v1643 = vshrl.u32 %v1638, 16
        %vm1644 = vc.u32 %v1636, %v1640
        %v1645 = vsel %vm1644, 1, 0
        %v1646 = vadd.s32 %v1636, %v1640
        %v1647 = vadd.s32 %v1639, %v1645
        %vm1648 = vc.u32 %v1646, %v1642
        %v1649 = vsel %vm1648, 1, 0
        %v1650 = vadd.s32 %v1646, %v1642
        %v1651 = vadd.s32 %v1647, %v1649
        %v1652 = vadd.s32 %v1651, %v1641
        %v1653 = vadd.s32 %v1652, %v1643
        %v1654 = vand.u32 %v1631, 65535
        %v1655 = vshrl.u32 %v1631, 16
        %v1656 = vand.u32 %v1626, 65535
        %v1657 = vshrl.u32 %v1626, 16
        %v1658 = vmul.u32 %v1654, %v1656
        %v1659 = vmul.u32 %v1654, %v1657
        %v1660 = vmul.u32 %v1655, %v1656
        %v1661 = vmul.u32 %v1655, %v1657
        %v1662 = vshll.u32 %v1659, 16
        %v1663 = vshrl.u32 %v1659, 16
        %v1664 = vshll.u32 %v1660, 16
        %v1665 = vshrl.u32 %v1660, 16
        %vm1666 = vc.u32 %v1658, %v1662
        %v1667 = vsel %vm1666, 1, 0
        %v1668 = vadd.s32 %v1658, %v1662
        %v1669 = vadd.s32 %v1661, %v1667
        %vm1670 = vc.u32 %v1668, %v1664
        %v1671 = vsel %vm1670, 1, 0
        %v1672 = vadd.s32 %v1668, %v1664
        %v1673 = vadd.s32 %v1669, %v1671
        %v1674 = vadd.s32 %v1673, %v1663
        %v1675 = vadd.s32 %v1674, %v1665
        %v1676 = vmul.u32 %v1631, %v1622
        %v1677 = vadd.s32 %v1653, %v1672
        %vm1678 = vc.u32 %v1653, %v1672
        %v1679 = vadd.s32 %v1675, 1
        %v1680 = vsel %vm1678, %v1679, %v1675
        %v1681 = vadd.s32 %v1676, %v1680
        %v1682 = vadd.s32 %v1681, 536870912
        %v1683 = vshrl.u32 %v1682, 30
        %v1684 = vshll.u32 %v1683, 30
        %v1685 = vsub.s32 %v1681, %v1684
        %vm1686 = vcmp.lt.s32.totalorder %v1685, 0
        %v1687 = vsub.s32 0, %v1685
        %v1688 = vsel %vm1686, %v1687, %v1685
        %v1689 = vclz %v1688
        %v1690 = vsub.s32 %v1689, 2
        %vm1691 = vcmp.gt.s32.totalorder 0, %v1690
        %v1692 = vsel %vm1691, 0, %v1690
        %v1693 = vsub.s32 32, %v1692
        %v1694 = vshll.u32 %v1685, %v1692
        %v1695 = vshrl.u32 %v1677, %v1693
        %v1696 = vor.u32 %v1694, %v1695
        %v1697 = vsub.s32 4294967266, %v1692
        %v1698 = vadd.s32 %v1697, 127
        %v1699 = vshll.u32 %v1698, 23
        %v1700 = vor.u32 4788187, %v1699
        %v1701 = vand.u32 2147483647, %v1700
        %v1703 = vcvt.s32.f32 %v1696
        %v1704 = vmul.f32 %v1703, %v1701
        %v1705 = vxor.u32 %v1704, 2147483648
        %v1706 = vsel %vm1585, %v1705, %v1704
        %v1707 = vsub.s32 4, %v1683
        %v1708 = vsel %vm1585, %v1707, %v1683
        %v1709 = vsel %vm1584, %v1581, %v1706
        %v1710 = vsel %vm1584, 0, %v1708
        %v1711 = vmul.f32 %v1709, %v1709
        %v1712 = vmul.f32 %v1711, -0.001358992
        %v1713 = vadd.f32 %v1712, 0.041655596
        %v1714 = vmul.f32 %v1711, %v1713
        %v1715 = vadd.f32 %v1714, -0.4999988
        %v1716 = vmul.f32 %v1711, %v1715
        %v1717 = vadd.f32 1.0, %v1716
        %v1718 = vmul.f32 %v1709, %v1709
        %v1719 = vmul.f32 %v1718, -0.00019511016
        %v1720 = vadd.f32 %v1719, 0.008332121
        %v1721 = vmul.f32 %v1718, %v1720
        %v1722 = vadd.f32 %v1721, -0.16666654
        %v1723 = vmul.f32 %v1718, %v1722
        %v1724 = vadd.f32 %v1723, 1.0
        %v1725 = vmul.f32 %v1724, %v1709
        %vm1726 = vweird.f32 %v1581
        %v1727 = vadd.s32 %v1710, 3
        %v1728 = vand.u32 %v1727, 3
        %vm1729 = vcmp.lt.s32.totalorder %v1728, 2
        %vm1730 = vcmp.eq.s32.totalorder %v1728, 0
        %v1731 = vxor.u32 %v1725, 2147483648
        %v1732 = vsel %vm1730, %v1717, %v1731
        %vm1733 = vcmp.eq.s32.totalorder %v1728, 2
        %v1734 = vxor.u32 %v1717, 2147483648
        %v1735 = vsel %vm1733, %v1734, %v1725
        %v1736 = vsel %vm1729, %v1732, %v1735
        %v1737 = vsel %vm1726, nan, %v1736
        %v1738 = vand.u32 2147483647, %v1582
        %vm1739 = vcmp.le.f32.partialorder %v1738, 0.7853982
        %vm1740 = vcmp.lt.s32.totalorder %v1582, 0
        %v1741 = vand.u32 %v1582, 2139095040
        %v1742 = vshrl.u32 %v1741, 23
        %v1743 = vsub.s32 %v1742, 127
        %v1744 = vand.u32 2147483647, %v1582
        %v1745 = vand.u32 %v1744, 8388607
        %v1746 = vor.u32 %v1745, 8388608
        %v1747 = vsub.s32 0, %v1746
        %v1748 = vadd.s32 %v1743, 1
        %vm1749 = vcmp.gt.s32.totalorder %v1748, 0
        %v1750 = vsel %vm1749, %v1748, 0
        %v1751 = vshrl.u32 %v1750, 5
        %v1752 = vand.u32 %v1750, 31
        %v1753 = vsub.s32 32, %v1752
        %v1754 = vshrl.u32 683565275, %v1753
        %v1755 = vshll.u32 683565275, %v1752
        %v1756 = vshrl.u32 2475754826, %v1753
        %v1757 = vor.u32 %v1755, %v1756
        %v1758 = vshll.u32 2475754826, %v1752
        %v1759 = vshrl.u32 2131351028, %v1753
        %v1760 = vor.u32 %v1758, %v1759
        %v1761 = vshll.u32 2131351028, %v1752
        %v1762 = vshrl.u32 2102212464, %v1753
        %v1763 = vor.u32 %v1761, %v1762
        %v1764 = vshll.u32 2102212464, %v1752
        %v1765 = vshrl.u32 920167782, %v1753
        %v1766 = vor.u32 %v1764, %v1765
        %v1767 = vshll.u32 920167782, %v1752
        %v1768 = vshrl.u32 1326507024, %v1753
        %v1769 = vor.u32 %v1767, %v1768
        %vm1770 = vcmp.lt.s32.totalorder %v1751, 1
        %vm1771 = vcmp.lt.s32.totalorder %v1751, 2
        %vm1772 = vcmp.lt.s32.totalorder %v1751, 3
        %vm1773 = vcmp.lt.s32.totalorder %v1751, 4
        %v1774 = vsel %vm1770, %v1754, %v1757
        %v1775 = vsel %vm1773, %v1763, 2102212464
        %v1776 = vsel %vm1772, %v1760, %v1775
        %v1777 = vsel %vm1771, %v1774, %v1776
        %v1778 = vsel %vm1770, %v1757, %v1760
        %v1779 = vsel %vm1773, %v1766, 920167782
        %v1780 = vsel %vm1772, %v1763, %v1779
        %v1781 = vsel %vm1771, %v1778, %v1780
        %v1782 = vsel %vm1770, %v1760, %v1763
        %v1783 = vsel %vm1773, %v1769, 1326507024
        %v1784 = vsel %vm1772, %v1766, %v1783
        %v1785 = vsel %vm1771, %v1782, %v1784
        %v1786 = vshll.u32 %v1746, 8
        %v1787 = vand.u32 %v1786, 65535
        %v1788 = vshrl.u32 %v1786, 16
        %v1789 = vand.u32 %v1785, 65535
        %v1790 = vshrl.u32 %v1785, 16
        %v1791 = vmul.u32 %v1787, %v1789
        %v1792 = vmul.u32 %v1787, %v1790
        %v1793 = vmul.u32 %v1788, %v1789
        %v1794 = vmul.u32 %v1788, %v1790
        %v1795 = vshll.u32 %v1792, 16
        %v1796 = vshrl.u32 %v1792, 16
        %v1797 = vshll.u32 %v1793, 16
        %v1798 = vshrl.u32 %v1793, 16
        %vm1799 = vc.u32 %v1791, %v1795
        %v1800 = vsel %vm1799, 1, 0
        %v1801 = vadd.s32 %v1791, %v1795
        %v1802 = vadd.s32 %v1794, %v1800
        %vm1803 = vc.u32 %v1801, %v1797
        %v1804 = vsel %vm1803, 1, 0
        %v1805 = vadd.s32 %v1801, %v1797
        %v1806 = vadd.s32 %v1802, %v1804
        %v1807 = vadd.s32 %v1806, %v1796
        %v1808 = vadd.s32 %v1807, %v1798
        %v1809 = vand.u32 %v1786, 65535
        %v1810 = vshrl.u32 %v1786, 16
        %v1811 = vand.u32 %v1781, 65535
        %v1812 = vshrl.u32 %v1781, 16
        %v1813 = vmul.u32 %v1809, %v1811
        %v1814 = vmul.u32 %v1809, %v1812
        %v1815 = vmul.u32 %v1810, %v1811
        %v1816 = vmul.u32 %v1810, %v1812
        %v1817 = vshll.u32 %v1814, 16
        %v1818 = vshrl.u32 %v1814, 16
        %v1819 = vshll.u32 %v1815, 16
        %v1820 = vshrl.u32 %v1815, 16
        %vm1821 = vc.u32 %v1813, %v1817
        %v1822 = vsel %vm1821, 1, 0
        %v1823 = vadd.s32 %v1813, %v1817
        %v1824 = vadd.s32 %v1816, %v1822
        %vm1825 = vc.u32 %v1823, %v1819
        %v1826 = vsel %vm1825, 1, 0
        %v1827 = vadd.s32 %v1823, %v1819
        %v1828 = vadd.s32 %v1824, %v1826
        %v1829 = vadd.s32 %v1828, %v1818
        %v1830 = vadd.s32 %v1829, %v1820
        %v1831 = vmul.u32 %v1786, %v1777
        %v1832 = vadd.s32 %v1808, %v1827
        %vm1833 = vc.u32 %v1808, %v1827
        %v1834 = vadd.s32 %v1830, 1
        %v1835 = vsel %vm1833, %v1834, %v1830
        %v1836 = vadd.s32 %v1831, %v1835
        %v1837 = vadd.s32 %v1836, 536870912
        %v1838 = vshrl.u32 %v1837, 30
        %v1839 = vshll.u32 %v1838, 30
        %v1840 = vsub.s32 %v1836, %v1839
        %vm1841 = vcmp.lt.s32.totalorder %v1840, 0
        %v1842 = vsub.s32 0, %v1840
        %v1843 = vsel %vm1841, %v1842, %v1840
        %v1844 = vclz %v1843
        %v1845 = vsub.s32 %v1844, 2
        %vm1846 = vcmp.gt.s32.totalorder 0, %v1845
        %v1847 = vsel %vm1846, 0, %v1845
        %v1848 = vsub.s32 32, %v1847
        %v1849 = vshll.u32 %v1840, %v1847
        %v1850 = vshrl.u32 %v1832, %v1848
        %v1851 = vor.u32 %v1849, %v1850
        %v1852 = vsub.s32 4294967266, %v1847
        %v1853 = vadd.s32 %v1852, 127
        %v1854 = vshll.u32 %v1853, 23
        %v1855 = vor.u32 4788187, %v1854
        %v1856 = vand.u32 2147483647, %v1855
        %v1858 = vcvt.s32.f32 %v1851
        %v1859 = vmul.f32 %v1858, %v1856
        %v1860 = vxor.u32 %v1859, 2147483648
        %v1861 = vsel %vm1740, %v1860, %v1859
        %v1862 = vsub.s32 4, %v1838
        %v1863 = vsel %vm1740, %v1862, %v1838
        %v1864 = vsel %vm1739, %v1582, %v1861
        %v1865 = vsel %vm1739, 0, %v1863
        %v1866 = vmul.f32 %v1864, %v1864
        %v1867 = vmul.f32 %v1866, -0.001358992
        %v1868 = vadd.f32 %v1867, 0.041655596
        %v1869 = vmul.f32 %v1866, %v1868
        %v1870 = vadd.f32 %v1869, -0.4999988
        %v1871 = vmul.f32 %v1866, %v1870
        %v1872 = vadd.f32 1.0, %v1871
        %v1873 = vmul.f32 %v1864, %v1864
        %v1874 = vmul.f32 %v1873, -0.00019511016
        %v1875 = vadd.f32 %v1874, 0.008332121
        %v1876 = vmul.f32 %v1873, %v1875
        %v1877 = vadd.f32 %v1876, -0.16666654
        %v1878 = vmul.f32 %v1873, %v1877
        %v1879 = vadd.f32 %v1878, 1.0
        %v1880 = vmul.f32 %v1879, %v1864
        %vm1881 = vweird.f32 %v1582
        %v1882 = vadd.s32 %v1865, 3
        %v1883 = vand.u32 %v1882, 3
        %vm1884 = vcmp.lt.s32.totalorder %v1883, 2
        %vm1885 = vcmp.eq.s32.totalorder %v1883, 0
        %v1886 = vxor.u32 %v1880, 2147483648
        %v1887 = vsel %vm1885, %v1872, %v1886
        %vm1888 = vcmp.eq.s32.totalorder %v1883, 2
        %v1889 = vxor.u32 %v1872, 2147483648
        %v1890 = vsel %vm1888, %v1889, %v1880
        %v1891 = vsel %vm1884, %v1887, %v1890
        %v1892 = vsel %vm1881, nan, %v1891
        %1893 = vst [vmem:[%s237 + $0x20] sm:$0xff] %v1737
        %1894 = vst [vmem:[%s237 + $0x28] sm:$0xff] %v1892
        %v1895 = vmul.f32 %v281, %v1572
        %v1896 = vmul.f32 %v282, %v1572
        %v1897 = vadd.f32 %v1895, %v1579
        %v1898 = vadd.f32 %v1896, %v1579
        %v1899 = vand.u32 2147483647, %v1897
        %vm1900 = vcmp.le.f32.partialorder %v1899, 0.7853982
        %vm1901 = vcmp.lt.s32.totalorder %v1897, 0
        %v1902 = vand.u32 %v1897, 2139095040
        %v1903 = vshrl.u32 %v1902, 23
        %v1904 = vsub.s32 %v1903, 127
        %v1905 = vand.u32 2147483647, %v1897
        %v1906 = vand.u32 %v1905, 8388607
        %v1907 = vor.u32 %v1906, 8388608
        %v1908 = vsub.s32 0, %v1907
        %v1909 = vadd.s32 %v1904, 1
        %vm1910 = vcmp.gt.s32.totalorder %v1909, 0
        %v1911 = vsel %vm1910, %v1909, 0
        %v1912 = vshrl.u32 %v1911, 5
        %v1913 = vand.u32 %v1911, 31
        %v1914 = vsub.s32 32, %v1913
        %v1915 = vshrl.u32 683565275, %v1914
        %v1916 = vshll.u32 683565275, %v1913
        %v1917 = vshrl.u32 2475754826, %v1914
        %v1918 = vor.u32 %v1916, %v1917
        %v1919 = vshll.u32 2475754826, %v1913
        %v1920 = vshrl.u32 2131351028, %v1914
        %v1921 = vor.u32 %v1919, %v1920
        %v1922 = vshll.u32 2131351028, %v1913
        %v1923 = vshrl.u32 2102212464, %v1914
        %v1924 = vor.u32 %v1922, %v1923
        %v1925 = vshll.u32 2102212464, %v1913
        %v1926 = vshrl.u32 920167782, %v1914
        %v1927 = vor.u32 %v1925, %v1926
        %v1928 = vshll.u32 920167782, %v1913
        %v1929 = vshrl.u32 1326507024, %v1914
        %v1930 = vor.u32 %v1928, %v1929
        %vm1931 = vcmp.lt.s32.totalorder %v1912, 1
        %vm1932 = vcmp.lt.s32.totalorder %v1912, 2
        %vm1933 = vcmp.lt.s32.totalorder %v1912, 3
        %vm1934 = vcmp.lt.s32.totalorder %v1912, 4
        %v1935 = vsel %vm1931, %v1915, %v1918
        %v1936 = vsel %vm1934, %v1924, 2102212464
        %v1937 = vsel %vm1933, %v1921, %v1936
        %v1938 = vsel %vm1932, %v1935, %v1937
        %v1939 = vsel %vm1931, %v1918, %v1921
        %v1940 = vsel %vm1934, %v1927, 920167782
        %v1941 = vsel %vm1933, %v1924, %v1940
        %v1942 = vsel %vm1932, %v1939, %v1941
        %v1943 = vsel %vm1931, %v1921, %v1924
        %v1944 = vsel %vm1934, %v1930, 1326507024
        %v1945 = vsel %vm1933, %v1927, %v1944
        %v1946 = vsel %vm1932, %v1943, %v1945
        %v1947 = vshll.u32 %v1907, 8
        %v1948 = vand.u32 %v1947, 65535
        %v1949 = vshrl.u32 %v1947, 16
        %v1950 = vand.u32 %v1946, 65535
        %v1951 = vshrl.u32 %v1946, 16
        %v1952 = vmul.u32 %v1948, %v1950
        %v1953 = vmul.u32 %v1948, %v1951
        %v1954 = vmul.u32 %v1949, %v1950
        %v1955 = vmul.u32 %v1949, %v1951
        %v1956 = vshll.u32 %v1953, 16
        %v1957 = vshrl.u32 %v1953, 16
        %v1958 = vshll.u32 %v1954, 16
        %v1959 = vshrl.u32 %v1954, 16
        %vm1960 = vc.u32 %v1952, %v1956
        %v1961 = vsel %vm1960, 1, 0
        %v1962 = vadd.s32 %v1952, %v1956
        %v1963 = vadd.s32 %v1955, %v1961
        %vm1964 = vc.u32 %v1962, %v1958
        %v1965 = vsel %vm1964, 1, 0
        %v1966 = vadd.s32 %v1962, %v1958
        %v1967 = vadd.s32 %v1963, %v1965
        %v1968 = vadd.s32 %v1967, %v1957
        %v1969 = vadd.s32 %v1968, %v1959
        %v1970 = vand.u32 %v1947, 65535
        %v1971 = vshrl.u32 %v1947, 16
        %v1972 = vand.u32 %v1942, 65535
        %v1973 = vshrl.u32 %v1942, 16
        %v1974 = vmul.u32 %v1970, %v1972
        %v1975 = vmul.u32 %v1970, %v1973
        %v1976 = vmul.u32 %v1971, %v1972
        %v1977 = vmul.u32 %v1971, %v1973
        %v1978 = vshll.u32 %v1975, 16
        %v1979 = vshrl.u32 %v1975, 16
        %v1980 = vshll.u32 %v1976, 16
        %v1981 = vshrl.u32 %v1976, 16
        %vm1982 = vc.u32 %v1974, %v1978
        %v1983 = vsel %vm1982, 1, 0
        %v1984 = vadd.s32 %v1974, %v1978
        %v1985 = vadd.s32 %v1977, %v1983
        %vm1986 = vc.u32 %v1984, %v1980
        %v1987 = vsel %vm1986, 1, 0
        %v1988 = vadd.s32 %v1984, %v1980
        %v1989 = vadd.s32 %v1985, %v1987
        %v1990 = vadd.s32 %v1989, %v1979
        %v1991 = vadd.s32 %v1990, %v1981
        %v1992 = vmul.u32 %v1947, %v1938
        %v1993 = vadd.s32 %v1969, %v1988
        %vm1994 = vc.u32 %v1969, %v1988
        %v1995 = vadd.s32 %v1991, 1
        %v1996 = vsel %vm1994, %v1995, %v1991
        %v1997 = vadd.s32 %v1992, %v1996
        %v1998 = vadd.s32 %v1997, 536870912
        %v1999 = vshrl.u32 %v1998, 30
        %v2000 = vshll.u32 %v1999, 30
        %v2001 = vsub.s32 %v1997, %v2000
        %vm2002 = vcmp.lt.s32.totalorder %v2001, 0
        %v2003 = vsub.s32 0, %v2001
        %v2004 = vsel %vm2002, %v2003, %v2001
        %v2005 = vclz %v2004
        %v2006 = vsub.s32 %v2005, 2
        %vm2007 = vcmp.gt.s32.totalorder 0, %v2006
        %v2008 = vsel %vm2007, 0, %v2006
        %v2009 = vsub.s32 32, %v2008
        %v2010 = vshll.u32 %v2001, %v2008
        %v2011 = vshrl.u32 %v1993, %v2009
        %v2012 = vor.u32 %v2010, %v2011
        %v2013 = vsub.s32 4294967266, %v2008
        %v2014 = vadd.s32 %v2013, 127
        %v2015 = vshll.u32 %v2014, 23
        %v2016 = vor.u32 4788187, %v2015
        %v2017 = vand.u32 2147483647, %v2016
        %v2019 = vcvt.s32.f32 %v2012
        %v2020 = vmul.f32 %v2019, %v2017
        %v2021 = vxor.u32 %v2020, 2147483648
        %v2022 = vsel %vm1901, %v2021, %v2020
        %v2023 = vsub.s32 4, %v1999
        %v2024 = vsel %vm1901, %v2023, %v1999
        %v2025 = vsel %vm1900, %v1897, %v2022
        %v2026 = vsel %vm1900, 0, %v2024
        %v2027 = vmul.f32 %v2025, %v2025
        %v2028 = vmul.f32 %v2027, -0.001358992
        %v2029 = vadd.f32 %v2028, 0.041655596
        %v2030 = vmul.f32 %v2027, %v2029
        %v2031 = vadd.f32 %v2030, -0.4999988
        %v2032 = vmul.f32 %v2027, %v2031
        %v2033 = vadd.f32 1.0, %v2032
        %v2034 = vmul.f32 %v2025, %v2025
        %v2035 = vmul.f32 %v2034, -0.00019511016
        %v2036 = vadd.f32 %v2035, 0.008332121
        %v2037 = vmul.f32 %v2034, %v2036
        %v2038 = vadd.f32 %v2037, -0.16666654
        %v2039 = vmul.f32 %v2034, %v2038
        %v2040 = vadd.f32 %v2039, 1.0
        %v2041 = vmul.f32 %v2040, %v2025
        %vm2042 = vweird.f32 %v1897
        %v2043 = vadd.s32 %v2026, 3
        %v2044 = vand.u32 %v2043, 3
        %vm2045 = vcmp.lt.s32.totalorder %v2044, 2
        %vm2046 = vcmp.eq.s32.totalorder %v2044, 0
        %v2047 = vxor.u32 %v2041, 2147483648
        %v2048 = vsel %vm2046, %v2033, %v2047
        %vm2049 = vcmp.eq.s32.totalorder %v2044, 2
        %v2050 = vxor.u32 %v2033, 2147483648
        %v2051 = vsel %vm2049, %v2050, %v2041
        %v2052 = vsel %vm2045, %v2048, %v2051
        %v2053 = vsel %vm2042, nan, %v2052
        %v2054 = vand.u32 2147483647, %v1898
        %vm2055 = vcmp.le.f32.partialorder %v2054, 0.7853982
        %vm2056 = vcmp.lt.s32.totalorder %v1898, 0
        %v2057 = vand.u32 %v1898, 2139095040
        %v2058 = vshrl.u32 %v2057, 23
        %v2059 = vsub.s32 %v2058, 127
        %v2060 = vand.u32 2147483647, %v1898
        %v2061 = vand.u32 %v2060, 8388607
        %v2062 = vor.u32 %v2061, 8388608
        %v2063 = vsub.s32 0, %v2062
        %v2064 = vadd.s32 %v2059, 1
        %vm2065 = vcmp.gt.s32.totalorder %v2064, 0
        %v2066 = vsel %vm2065, %v2064, 0
        %v2067 = vshrl.u32 %v2066, 5
        %v2068 = vand.u32 %v2066, 31
        %v2069 = vsub.s32 32, %v2068
        %v2070 = vshrl.u32 683565275, %v2069
        %v2071 = vshll.u32 683565275, %v2068
        %v2072 = vshrl.u32 2475754826, %v2069
        %v2073 = vor.u32 %v2071, %v2072
        %v2074 = vshll.u32 2475754826, %v2068
        %v2075 = vshrl.u32 2131351028, %v2069
        %v2076 = vor.u32 %v2074, %v2075
        %v2077 = vshll.u32 2131351028, %v2068
        %v2078 = vshrl.u32 2102212464, %v2069
        %v2079 = vor.u32 %v2077, %v2078
        %v2080 = vshll.u32 2102212464, %v2068
        %v2081 = vshrl.u32 920167782, %v2069
        %v2082 = vor.u32 %v2080, %v2081
        %v2083 = vshll.u32 920167782, %v2068
        %v2084 = vshrl.u32 1326507024, %v2069
        %v2085 = vor.u32 %v2083, %v2084
        %vm2086 = vcmp.lt.s32.totalorder %v2067, 1
        %vm2087 = vcmp.lt.s32.totalorder %v2067, 2
        %vm2088 = vcmp.lt.s32.totalorder %v2067, 3
        %vm2089 = vcmp.lt.s32.totalorder %v2067, 4
        %v2090 = vsel %vm2086, %v2070, %v2073
        %v2091 = vsel %vm2089, %v2079, 2102212464
        %v2092 = vsel %vm2088, %v2076, %v2091
        %v2093 = vsel %vm2087, %v2090, %v2092
        %v2094 = vsel %vm2086, %v2073, %v2076
        %v2095 = vsel %vm2089, %v2082, 920167782
        %v2096 = vsel %vm2088, %v2079, %v2095
        %v2097 = vsel %vm2087, %v2094, %v2096
        %v2098 = vsel %vm2086, %v2076, %v2079
        %v2099 = vsel %vm2089, %v2085, 1326507024
        %v2100 = vsel %vm2088, %v2082, %v2099
        %v2101 = vsel %vm2087, %v2098, %v2100
        %v2102 = vshll.u32 %v2062, 8
        %v2103 = vand.u32 %v2102, 65535
        %v2104 = vshrl.u32 %v2102, 16
        %v2105 = vand.u32 %v2101, 65535
        %v2106 = vshrl.u32 %v2101, 16
        %v2107 = vmul.u32 %v2103, %v2105
        %v2108 = vmul.u32 %v2103, %v2106
        %v2109 = vmul.u32 %v2104, %v2105
        %v2110 = vmul.u32 %v2104, %v2106
        %v2111 = vshll.u32 %v2108, 16
        %v2112 = vshrl.u32 %v2108, 16
        %v2113 = vshll.u32 %v2109, 16
        %v2114 = vshrl.u32 %v2109, 16
        %vm2115 = vc.u32 %v2107, %v2111
        %v2116 = vsel %vm2115, 1, 0
        %v2117 = vadd.s32 %v2107, %v2111
        %v2118 = vadd.s32 %v2110, %v2116
        %vm2119 = vc.u32 %v2117, %v2113
        %v2120 = vsel %vm2119, 1, 0
        %v2121 = vadd.s32 %v2117, %v2113
        %v2122 = vadd.s32 %v2118, %v2120
        %v2123 = vadd.s32 %v2122, %v2112
        %v2124 = vadd.s32 %v2123, %v2114
        %v2125 = vand.u32 %v2102, 65535
        %v2126 = vshrl.u32 %v2102, 16
        %v2127 = vand.u32 %v2097, 65535
        %v2128 = vshrl.u32 %v2097, 16
        %v2129 = vmul.u32 %v2125, %v2127
        %v2130 = vmul.u32 %v2125, %v2128
        %v2131 = vmul.u32 %v2126, %v2127
        %v2132 = vmul.u32 %v2126, %v2128
        %v2133 = vshll.u32 %v2130, 16
        %v2134 = vshrl.u32 %v2130, 16
        %v2135 = vshll.u32 %v2131, 16
        %v2136 = vshrl.u32 %v2131, 16
        %vm2137 = vc.u32 %v2129, %v2133
        %v2138 = vsel %vm2137, 1, 0
        %v2139 = vadd.s32 %v2129, %v2133
        %v2140 = vadd.s32 %v2132, %v2138
        %vm2141 = vc.u32 %v2139, %v2135
        %v2142 = vsel %vm2141, 1, 0
        %v2143 = vadd.s32 %v2139, %v2135
        %v2144 = vadd.s32 %v2140, %v2142
        %v2145 = vadd.s32 %v2144, %v2134
        %v2146 = vadd.s32 %v2145, %v2136
        %v2147 = vmul.u32 %v2102, %v2093
        %v2148 = vadd.s32 %v2124, %v2143
        %vm2149 = vc.u32 %v2124, %v2143
        %v2150 = vadd.s32 %v2146, 1
        %v2151 = vsel %vm2149, %v2150, %v2146
        %v2152 = vadd.s32 %v2147, %v2151
        %v2153 = vadd.s32 %v2152, 536870912
        %v2154 = vshrl.u32 %v2153, 30
        %v2155 = vshll.u32 %v2154, 30
        %v2156 = vsub.s32 %v2152, %v2155
        %vm2157 = vcmp.lt.s32.totalorder %v2156, 0
        %v2158 = vsub.s32 0, %v2156
        %v2159 = vsel %vm2157, %v2158, %v2156
        %v2160 = vclz %v2159
        %v2161 = vsub.s32 %v2160, 2
        %vm2162 = vcmp.gt.s32.totalorder 0, %v2161
        %v2163 = vsel %vm2162, 0, %v2161
        %v2164 = vsub.s32 32, %v2163
        %v2165 = vshll.u32 %v2156, %v2163
        %v2166 = vshrl.u32 %v2148, %v2164
        %v2167 = vor.u32 %v2165, %v2166
        %v2168 = vsub.s32 4294967266, %v2163
        %v2169 = vadd.s32 %v2168, 127
        %v2170 = vshll.u32 %v2169, 23
        %v2171 = vor.u32 4788187, %v2170
        %v2172 = vand.u32 2147483647, %v2171
        %v2174 = vcvt.s32.f32 %v2167
        %v2175 = vmul.f32 %v2174, %v2172
        %v2176 = vxor.u32 %v2175, 2147483648
        %v2177 = vsel %vm2056, %v2176, %v2175
        %v2178 = vsub.s32 4, %v2154
        %v2179 = vsel %vm2056, %v2178, %v2154
        %v2180 = vsel %vm2055, %v1898, %v2177
        %v2181 = vsel %vm2055, 0, %v2179
        %v2182 = vmul.f32 %v2180, %v2180
        %v2183 = vmul.f32 %v2182, -0.001358992
        %v2184 = vadd.f32 %v2183, 0.041655596
        %v2185 = vmul.f32 %v2182, %v2184
        %v2186 = vadd.f32 %v2185, -0.4999988
        %v2187 = vmul.f32 %v2182, %v2186
        %v2188 = vadd.f32 1.0, %v2187
        %v2189 = vmul.f32 %v2180, %v2180
        %v2190 = vmul.f32 %v2189, -0.00019511016
        %v2191 = vadd.f32 %v2190, 0.008332121
        %v2192 = vmul.f32 %v2189, %v2191
        %v2193 = vadd.f32 %v2192, -0.16666654
        %v2194 = vmul.f32 %v2189, %v2193
        %v2195 = vadd.f32 %v2194, 1.0
        %v2196 = vmul.f32 %v2195, %v2180
        %vm2197 = vweird.f32 %v1898
        %v2198 = vadd.s32 %v2181, 3
        %v2199 = vand.u32 %v2198, 3
        %vm2200 = vcmp.lt.s32.totalorder %v2199, 2
        %vm2201 = vcmp.eq.s32.totalorder %v2199, 0
        %v2202 = vxor.u32 %v2196, 2147483648
        %v2203 = vsel %vm2201, %v2188, %v2202
        %vm2204 = vcmp.eq.s32.totalorder %v2199, 2
        %v2205 = vxor.u32 %v2188, 2147483648
        %v2206 = vsel %vm2204, %v2205, %v2196
        %v2207 = vsel %vm2200, %v2203, %v2206
        %v2208 = vsel %vm2197, nan, %v2207
        %2209 = vst [vmem:[%s237 + $0xa0] sm:$0xff] %v2053
        %2210 = vst [vmem:[%s237 + $0xa8] sm:$0xff] %v2208
        %2212 = vset.pattern.permute.xlu0 0
        %2213 = vperm.xlu0 %2212, %v260
        %v2214 = vpop.permute.xlu0 %2213
        %v2216 = vmul.f32 %v275, %v2214
        %v2217 = vmul.f32 %v276, %v2214
        %2219 = vset.pattern.permute.xlu0 0
        %2220 = vperm.xlu0 %2219, %v268
        %v2221 = vpop.permute.xlu0 %2220
        %v2223 = vadd.f32 %v2216, %v2221
        %v2224 = vadd.f32 %v2217, %v2221
        %v2225 = vand.u32 2147483647, %v2223
        %vm2226 = vcmp.le.f32.partialorder %v2225, 0.7853982
        %vm2227 = vcmp.lt.s32.totalorder %v2223, 0
        %v2228 = vand.u32 %v2223, 2139095040
        %v2229 = vshrl.u32 %v2228, 23
        %v2230 = vsub.s32 %v2229, 127
        %v2231 = vand.u32 2147483647, %v2223
        %v2232 = vand.u32 %v2231, 8388607
        %v2233 = vor.u32 %v2232, 8388608
        %v2234 = vsub.s32 0, %v2233
        %v2235 = vadd.s32 %v2230, 1
        %vm2236 = vcmp.gt.s32.totalorder %v2235, 0
        %v2237 = vsel %vm2236, %v2235, 0
        %v2238 = vshrl.u32 %v2237, 5
        %v2239 = vand.u32 %v2237, 31
        %v2240 = vsub.s32 32, %v2239
        %v2241 = vshrl.u32 683565275, %v2240
        %v2242 = vshll.u32 683565275, %v2239
        %v2243 = vshrl.u32 2475754826, %v2240
        %v2244 = vor.u32 %v2242, %v2243
        %v2245 = vshll.u32 2475754826, %v2239
        %v2246 = vshrl.u32 2131351028, %v2240
        %v2247 = vor.u32 %v2245, %v2246
        %v2248 = vshll.u32 2131351028, %v2239
        %v2249 = vshrl.u32 2102212464, %v2240
        %v2250 = vor.u32 %v2248, %v2249
        %v2251 = vshll.u32 2102212464, %v2239
        %v2252 = vshrl.u32 920167782, %v2240
        %v2253 = vor.u32 %v2251, %v2252
        %v2254 = vshll.u32 920167782, %v2239
        %v2255 = vshrl.u32 1326507024, %v2240
        %v2256 = vor.u32 %v2254, %v2255
        %vm2257 = vcmp.lt.s32.totalorder %v2238, 1
        %vm2258 = vcmp.lt.s32.totalorder %v2238, 2
        %vm2259 = vcmp.lt.s32.totalorder %v2238, 3
        %vm2260 = vcmp.lt.s32.totalorder %v2238, 4
        %v2261 = vsel %vm2257, %v2241, %v2244
        %v2262 = vsel %vm2260, %v2250, 2102212464
        %v2263 = vsel %vm2259, %v2247, %v2262
        %v2264 = vsel %vm2258, %v2261, %v2263
        %v2265 = vsel %vm2257, %v2244, %v2247
        %v2266 = vsel %vm2260, %v2253, 920167782
        %v2267 = vsel %vm2259, %v2250, %v2266
        %v2268 = vsel %vm2258, %v2265, %v2267
        %v2269 = vsel %vm2257, %v2247, %v2250
        %v2270 = vsel %vm2260, %v2256, 1326507024
        %v2271 = vsel %vm2259, %v2253, %v2270
        %v2272 = vsel %vm2258, %v2269, %v2271
        %v2273 = vshll.u32 %v2233, 8
        %v2274 = vand.u32 %v2273, 65535
        %v2275 = vshrl.u32 %v2273, 16
        %v2276 = vand.u32 %v2272, 65535
        %v2277 = vshrl.u32 %v2272, 16
        %v2278 = vmul.u32 %v2274, %v2276
        %v2279 = vmul.u32 %v2274, %v2277
        %v2280 = vmul.u32 %v2275, %v2276
        %v2281 = vmul.u32 %v2275, %v2277
        %v2282 = vshll.u32 %v2279, 16
        %v2283 = vshrl.u32 %v2279, 16
        %v2284 = vshll.u32 %v2280, 16
        %v2285 = vshrl.u32 %v2280, 16
        %vm2286 = vc.u32 %v2278, %v2282
        %v2287 = vsel %vm2286, 1, 0
        %v2288 = vadd.s32 %v2278, %v2282
        %v2289 = vadd.s32 %v2281, %v2287
        %vm2290 = vc.u32 %v2288, %v2284
        %v2291 = vsel %vm2290, 1, 0
        %v2292 = vadd.s32 %v2288, %v2284
        %v2293 = vadd.s32 %v2289, %v2291
        %v2294 = vadd.s32 %v2293, %v2283
        %v2295 = vadd.s32 %v2294, %v2285
        %v2296 = vand.u32 %v2273, 65535
        %v2297 = vshrl.u32 %v2273, 16
        %v2298 = vand.u32 %v2268, 65535
        %v2299 = vshrl.u32 %v2268, 16
        %v2300 = vmul.u32 %v2296, %v2298
        %v2301 = vmul.u32 %v2296, %v2299
        %v2302 = vmul.u32 %v2297, %v2298
        %v2303 = vmul.u32 %v2297, %v2299
        %v2304 = vshll.u32 %v2301, 16
        %v2305 = vshrl.u32 %v2301, 16
        %v2306 = vshll.u32 %v2302, 16
        %v2307 = vshrl.u32 %v2302, 16
        %vm2308 = vc.u32 %v2300, %v2304
        %v2309 = vsel %vm2308, 1, 0
        %v2310 = vadd.s32 %v2300, %v2304
        %v2311 = vadd.s32 %v2303, %v2309
        %vm2312 = vc.u32 %v2310, %v2306
        %v2313 = vsel %vm2312, 1, 0
        %v2314 = vadd.s32 %v2310, %v2306
        %v2315 = vadd.s32 %v2311, %v2313
        %v2316 = vadd.s32 %v2315, %v2305
        %v2317 = vadd.s32 %v2316, %v2307
        %v2318 = vmul.u32 %v2273, %v2264
        %v2319 = vadd.s32 %v2295, %v2314
        %vm2320 = vc.u32 %v2295, %v2314
        %v2321 = vadd.s32 %v2317, 1
        %v2322 = vsel %vm2320, %v2321, %v2317
        %v2323 = vadd.s32 %v2318, %v2322
        %v2324 = vadd.s32 %v2323, 536870912
        %v2325 = vshrl.u32 %v2324, 30
        %v2326 = vshll.u32 %v2325, 30
        %v2327 = vsub.s32 %v2323, %v2326
        %vm2328 = vcmp.lt.s32.totalorder %v2327, 0
        %v2329 = vsub.s32 0, %v2327
        %v2330 = vsel %vm2328, %v2329, %v2327
        %v2331 = vclz %v2330
        %v2332 = vsub.s32 %v2331, 2
        %vm2333 = vcmp.gt.s32.totalorder 0, %v2332
        %v2334 = vsel %vm2333, 0, %v2332
        %v2335 = vsub.s32 32, %v2334
        %v2336 = vshll.u32 %v2327, %v2334
        %v2337 = vshrl.u32 %v2319, %v2335
        %v2338 = vor.u32 %v2336, %v2337
        %v2339 = vsub.s32 4294967266, %v2334
        %v2340 = vadd.s32 %v2339, 127
        %v2341 = vshll.u32 %v2340, 23
        %v2342 = vor.u32 4788187, %v2341
        %v2343 = vand.u32 2147483647, %v2342
        %v2345 = vcvt.s32.f32 %v2338
        %v2346 = vmul.f32 %v2345, %v2343
        %v2347 = vxor.u32 %v2346, 2147483648
        %v2348 = vsel %vm2227, %v2347, %v2346
        %v2349 = vsub.s32 4, %v2325
        %v2350 = vsel %vm2227, %v2349, %v2325
        %v2351 = vsel %vm2226, %v2223, %v2348
        %v2352 = vsel %vm2226, 0, %v2350
        %v2353 = vmul.f32 %v2351, %v2351
        %v2354 = vmul.f32 %v2353, -0.001358992
        %v2355 = vadd.f32 %v2354, 0.041655596
        %v2356 = vmul.f32 %v2353, %v2355
        %v2357 = vadd.f32 %v2356, -0.4999988
        %v2358 = vmul.f32 %v2353, %v2357
        %v2359 = vadd.f32 1.0, %v2358
        %v2360 = vmul.f32 %v2351, %v2351
        %v2361 = vmul.f32 %v2360, -0.00019511016
        %v2362 = vadd.f32 %v2361, 0.008332121
        %v2363 = vmul.f32 %v2360, %v2362
        %v2364 = vadd.f32 %v2363, -0.16666654
        %v2365 = vmul.f32 %v2360, %v2364
        %v2366 = vadd.f32 %v2365, 1.0
        %v2367 = vmul.f32 %v2366, %v2351
        %vm2368 = vweird.f32 %v2223
        %v2369 = vadd.s32 %v2352, 3
        %v2370 = vand.u32 %v2369, 3
        %vm2371 = vcmp.lt.s32.totalorder %v2370, 2
        %vm2372 = vcmp.eq.s32.totalorder %v2370, 0
        %v2373 = vxor.u32 %v2367, 2147483648
        %v2374 = vsel %vm2372, %v2359, %v2373
        %vm2375 = vcmp.eq.s32.totalorder %v2370, 2
        %v2376 = vxor.u32 %v2359, 2147483648
        %v2377 = vsel %vm2375, %v2376, %v2367
        %v2378 = vsel %vm2371, %v2374, %v2377
        %v2379 = vsel %vm2368, nan, %v2378
        %v2380 = vand.u32 2147483647, %v2224
        %vm2381 = vcmp.le.f32.partialorder %v2380, 0.7853982
        %vm2382 = vcmp.lt.s32.totalorder %v2224, 0
        %v2383 = vand.u32 %v2224, 2139095040
        %v2384 = vshrl.u32 %v2383, 23
        %v2385 = vsub.s32 %v2384, 127
        %v2386 = vand.u32 2147483647, %v2224
        %v2387 = vand.u32 %v2386, 8388607
        %v2388 = vor.u32 %v2387, 8388608
        %v2389 = vsub.s32 0, %v2388
        %v2390 = vadd.s32 %v2385, 1
        %vm2391 = vcmp.gt.s32.totalorder %v2390, 0
        %v2392 = vsel %vm2391, %v2390, 0
        %v2393 = vshrl.u32 %v2392, 5
        %v2394 = vand.u32 %v2392, 31
        %v2395 = vsub.s32 32, %v2394
        %v2396 = vshrl.u32 683565275, %v2395
        %v2397 = vshll.u32 683565275, %v2394
        %v2398 = vshrl.u32 2475754826, %v2395
        %v2399 = vor.u32 %v2397, %v2398
        %v2400 = vshll.u32 2475754826, %v2394
        %v2401 = vshrl.u32 2131351028, %v2395
        %v2402 = vor.u32 %v2400, %v2401
        %v2403 = vshll.u32 2131351028, %v2394
        %v2404 = vshrl.u32 2102212464, %v2395
        %v2405 = vor.u32 %v2403, %v2404
        %v2406 = vshll.u32 2102212464, %v2394
        %v2407 = vshrl.u32 920167782, %v2395
        %v2408 = vor.u32 %v2406, %v2407
        %v2409 = vshll.u32 920167782, %v2394
        %v2410 = vshrl.u32 1326507024, %v2395
        %v2411 = vor.u32 %v2409, %v2410
        %vm2412 = vcmp.lt.s32.totalorder %v2393, 1
        %vm2413 = vcmp.lt.s32.totalorder %v2393, 2
        %vm2414 = vcmp.lt.s32.totalorder %v2393, 3
        %vm2415 = vcmp.lt.s32.totalorder %v2393, 4
        %v2416 = vsel %vm2412, %v2396, %v2399
        %v2417 = vsel %vm2415, %v2405, 2102212464
        %v2418 = vsel %vm2414, %v2402, %v2417
        %v2419 = vsel %vm2413, %v2416, %v2418
        %v2420 = vsel %vm2412, %v2399, %v2402
        %v2421 = vsel %vm2415, %v2408, 920167782
        %v2422 = vsel %vm2414, %v2405, %v2421
        %v2423 = vsel %vm2413, %v2420, %v2422
        %v2424 = vsel %vm2412, %v2402, %v2405
        %v2425 = vsel %vm2415, %v2411, 1326507024
        %v2426 = vsel %vm2414, %v2408, %v2425
        %v2427 = vsel %vm2413, %v2424, %v2426
        %v2428 = vshll.u32 %v2388, 8
        %v2429 = vand.u32 %v2428, 65535
        %v2430 = vshrl.u32 %v2428, 16
        %v2431 = vand.u32 %v2427, 65535
        %v2432 = vshrl.u32 %v2427, 16
        %v2433 = vmul.u32 %v2429, %v2431
        %v2434 = vmul.u32 %v2429, %v2432
        %v2435 = vmul.u32 %v2430, %v2431
        %v2436 = vmul.u32 %v2430, %v2432
        %v2437 = vshll.u32 %v2434, 16
        %v2438 = vshrl.u32 %v2434, 16
        %v2439 = vshll.u32 %v2435, 16
        %v2440 = vshrl.u32 %v2435, 16
        %vm2441 = vc.u32 %v2433, %v2437
        %v2442 = vsel %vm2441, 1, 0
        %v2443 = vadd.s32 %v2433, %v2437
        %v2444 = vadd.s32 %v2436, %v2442
        %vm2445 = vc.u32 %v2443, %v2439
        %v2446 = vsel %vm2445, 1, 0
        %v2447 = vadd.s32 %v2443, %v2439
        %v2448 = vadd.s32 %v2444, %v2446
        %v2449 = vadd.s32 %v2448, %v2438
        %v2450 = vadd.s32 %v2449, %v2440
        %v2451 = vand.u32 %v2428, 65535
        %v2452 = vshrl.u32 %v2428, 16
        %v2453 = vand.u32 %v2423, 65535
        %v2454 = vshrl.u32 %v2423, 16
        %v2455 = vmul.u32 %v2451, %v2453
        %v2456 = vmul.u32 %v2451, %v2454
        %v2457 = vmul.u32 %v2452, %v2453
        %v2458 = vmul.u32 %v2452, %v2454
        %v2459 = vshll.u32 %v2456, 16
        %v2460 = vshrl.u32 %v2456, 16
        %v2461 = vshll.u32 %v2457, 16
        %v2462 = vshrl.u32 %v2457, 16
        %vm2463 = vc.u32 %v2455, %v2459
        %v2464 = vsel %vm2463, 1, 0
        %v2465 = vadd.s32 %v2455, %v2459
        %v2466 = vadd.s32 %v2458, %v2464
        %vm2467 = vc.u32 %v2465, %v2461
        %v2468 = vsel %vm2467, 1, 0
        %v2469 = vadd.s32 %v2465, %v2461
        %v2470 = vadd.s32 %v2466, %v2468
        %v2471 = vadd.s32 %v2470, %v2460
        %v2472 = vadd.s32 %v2471, %v2462
        %v2473 = vmul.u32 %v2428, %v2419
        %v2474 = vadd.s32 %v2450, %v2469
        %vm2475 = vc.u32 %v2450, %v2469
        %v2476 = vadd.s32 %v2472, 1
        %v2477 = vsel %vm2475, %v2476, %v2472
        %v2478 = vadd.s32 %v2473, %v2477
        %v2479 = vadd.s32 %v2478, 536870912
        %v2480 = vshrl.u32 %v2479, 30
        %v2481 = vshll.u32 %v2480, 30
        %v2482 = vsub.s32 %v2478, %v2481
        %vm2483 = vcmp.lt.s32.totalorder %v2482, 0
        %v2484 = vsub.s32 0, %v2482
        %v2485 = vsel %vm2483, %v2484, %v2482
        %v2486 = vclz %v2485
        %v2487 = vsub.s32 %v2486, 2
        %vm2488 = vcmp.gt.s32.totalorder 0, %v2487
        %v2489 = vsel %vm2488, 0, %v2487
        %v2490 = vsub.s32 32, %v2489
        %v2491 = vshll.u32 %v2482, %v2489
        %v2492 = vshrl.u32 %v2474, %v2490
        %v2493 = vor.u32 %v2491, %v2492
        %v2494 = vsub.s32 4294967266, %v2489
        %v2495 = vadd.s32 %v2494, 127
        %v2496 = vshll.u32 %v2495, 23
        %v2497 = vor.u32 4788187, %v2496
        %v2498 = vand.u32 2147483647, %v2497
        %v2500 = vcvt.s32.f32 %v2493
        %v2501 = vmul.f32 %v2500, %v2498
        %v2502 = vxor.u32 %v2501, 2147483648
        %v2503 = vsel %vm2382, %v2502, %v2501
        %v2504 = vsub.s32 4, %v2480
        %v2505 = vsel %vm2382, %v2504, %v2480
        %v2506 = vsel %vm2381, %v2224, %v2503
        %v2507 = vsel %vm2381, 0, %v2505
        %v2508 = vmul.f32 %v2506, %v2506
        %v2509 = vmul.f32 %v2508, -0.001358992
        %v2510 = vadd.f32 %v2509, 0.041655596
        %v2511 = vmul.f32 %v2508, %v2510
        %v2512 = vadd.f32 %v2511, -0.4999988
        %v2513 = vmul.f32 %v2508, %v2512
        %v2514 = vadd.f32 1.0, %v2513
        %v2515 = vmul.f32 %v2506, %v2506
        %v2516 = vmul.f32 %v2515, -0.00019511016
        %v2517 = vadd.f32 %v2516, 0.008332121
        %v2518 = vmul.f32 %v2515, %v2517
        %v2519 = vadd.f32 %v2518, -0.16666654
        %v2520 = vmul.f32 %v2515, %v2519
        %v2521 = vadd.f32 %v2520, 1.0
        %v2522 = vmul.f32 %v2521, %v2506
        %vm2523 = vweird.f32 %v2224
        %v2524 = vadd.s32 %v2507, 3
        %v2525 = vand.u32 %v2524, 3
        %vm2526 = vcmp.lt.s32.totalorder %v2525, 2
        %vm2527 = vcmp.eq.s32.totalorder %v2525, 0
        %v2528 = vxor.u32 %v2522, 2147483648
        %v2529 = vsel %vm2527, %v2514, %v2528
        %vm2530 = vcmp.eq.s32.totalorder %v2525, 2
        %v2531 = vxor.u32 %v2514, 2147483648
        %v2532 = vsel %vm2530, %v2531, %v2522
        %v2533 = vsel %vm2526, %v2529, %v2532
        %v2534 = vsel %vm2523, nan, %v2533
        %2535 = vst [vmem:[%s237 + $0x30] sm:$0xff] %v2379
        %2536 = vst [vmem:[%s237 + $0x38] sm:$0xff] %v2534
        %v2537 = vmul.f32 %v281, %v2214
        %v2538 = vmul.f32 %v282, %v2214
        %v2539 = vadd.f32 %v2537, %v2221
        %v2540 = vadd.f32 %v2538, %v2221
        %v2541 = vand.u32 2147483647, %v2539
        %vm2542 = vcmp.le.f32.partialorder %v2541, 0.7853982
        %vm2543 = vcmp.lt.s32.totalorder %v2539, 0
        %v2544 = vand.u32 %v2539, 2139095040
        %v2545 = vshrl.u32 %v2544, 23
        %v2546 = vsub.s32 %v2545, 127
        %v2547 = vand.u32 2147483647, %v2539
        %v2548 = vand.u32 %v2547, 8388607
        %v2549 = vor.u32 %v2548, 8388608
        %v2550 = vsub.s32 0, %v2549
        %v2551 = vadd.s32 %v2546, 1
        %vm2552 = vcmp.gt.s32.totalorder %v2551, 0
        %v2553 = vsel %vm2552, %v2551, 0
        %v2554 = vshrl.u32 %v2553, 5
        %v2555 = vand.u32 %v2553, 31
        %v2556 = vsub.s32 32, %v2555
        %v2557 = vshrl.u32 683565275, %v2556
        %v2558 = vshll.u32 683565275, %v2555
        %v2559 = vshrl.u32 2475754826, %v2556
        %v2560 = vor.u32 %v2558, %v2559
        %v2561 = vshll.u32 2475754826, %v2555
        %v2562 = vshrl.u32 2131351028, %v2556
        %v2563 = vor.u32 %v2561, %v2562
        %v2564 = vshll.u32 2131351028, %v2555
        %v2565 = vshrl.u32 2102212464, %v2556
        %v2566 = vor.u32 %v2564, %v2565
        %v2567 = vshll.u32 2102212464, %v2555
        %v2568 = vshrl.u32 920167782, %v2556
        %v2569 = vor.u32 %v2567, %v2568
        %v2570 = vshll.u32 920167782, %v2555
        %v2571 = vshrl.u32 1326507024, %v2556
        %v2572 = vor.u32 %v2570, %v2571
        %vm2573 = vcmp.lt.s32.totalorder %v2554, 1
        %vm2574 = vcmp.lt.s32.totalorder %v2554, 2
        %vm2575 = vcmp.lt.s32.totalorder %v2554, 3
        %vm2576 = vcmp.lt.s32.totalorder %v2554, 4
        %v2577 = vsel %vm2573, %v2557, %v2560
        %v2578 = vsel %vm2576, %v2566, 2102212464
        %v2579 = vsel %vm2575, %v2563, %v2578
        %v2580 = vsel %vm2574, %v2577, %v2579
        %v2581 = vsel %vm2573, %v2560, %v2563
        %v2582 = vsel %vm2576, %v2569, 920167782
        %v2583 = vsel %vm2575, %v2566, %v2582
        %v2584 = vsel %vm2574, %v2581, %v2583
        %v2585 = vsel %vm2573, %v2563, %v2566
        %v2586 = vsel %vm2576, %v2572, 1326507024
        %v2587 = vsel %vm2575, %v2569, %v2586
        %v2588 = vsel %vm2574, %v2585, %v2587
        %v2589 = vshll.u32 %v2549, 8
        %v2590 = vand.u32 %v2589, 65535
        %v2591 = vshrl.u32 %v2589, 16
        %v2592 = vand.u32 %v2588, 65535
        %v2593 = vshrl.u32 %v2588, 16
        %v2594 = vmul.u32 %v2590, %v2592
        %v2595 = vmul.u32 %v2590, %v2593
        %v2596 = vmul.u32 %v2591, %v2592
        %v2597 = vmul.u32 %v2591, %v2593
        %v2598 = vshll.u32 %v2595, 16
        %v2599 = vshrl.u32 %v2595, 16
        %v2600 = vshll.u32 %v2596, 16
        %v2601 = vshrl.u32 %v2596, 16
        %vm2602 = vc.u32 %v2594, %v2598
        %v2603 = vsel %vm2602, 1, 0
        %v2604 = vadd.s32 %v2594, %v2598
        %v2605 = vadd.s32 %v2597, %v2603
        %vm2606 = vc.u32 %v2604, %v2600
        %v2607 = vsel %vm2606, 1, 0
        %v2608 = vadd.s32 %v2604, %v2600
        %v2609 = vadd.s32 %v2605, %v2607
        %v2610 = vadd.s32 %v2609, %v2599
        %v2611 = vadd.s32 %v2610, %v2601
        %v2612 = vand.u32 %v2589, 65535
        %v2613 = vshrl.u32 %v2589, 16
        %v2614 = vand.u32 %v2584, 65535
        %v2615 = vshrl.u32 %v2584, 16
        %v2616 = vmul.u32 %v2612, %v2614
        %v2617 = vmul.u32 %v2612, %v2615
        %v2618 = vmul.u32 %v2613, %v2614
        %v2619 = vmul.u32 %v2613, %v2615
        %v2620 = vshll.u32 %v2617, 16
        %v2621 = vshrl.u32 %v2617, 16
        %v2622 = vshll.u32 %v2618, 16
        %v2623 = vshrl.u32 %v2618, 16
        %vm2624 = vc.u32 %v2616, %v2620
        %v2625 = vsel %vm2624, 1, 0
        %v2626 = vadd.s32 %v2616, %v2620
        %v2627 = vadd.s32 %v2619, %v2625
        %vm2628 = vc.u32 %v2626, %v2622
        %v2629 = vsel %vm2628, 1, 0
        %v2630 = vadd.s32 %v2626, %v2622
        %v2631 = vadd.s32 %v2627, %v2629
        %v2632 = vadd.s32 %v2631, %v2621
        %v2633 = vadd.s32 %v2632, %v2623
        %v2634 = vmul.u32 %v2589, %v2580
        %v2635 = vadd.s32 %v2611, %v2630
        %vm2636 = vc.u32 %v2611, %v2630
        %v2637 = vadd.s32 %v2633, 1
        %v2638 = vsel %vm2636, %v2637, %v2633
        %v2639 = vadd.s32 %v2634, %v2638
        %v2640 = vadd.s32 %v2639, 536870912
        %v2641 = vshrl.u32 %v2640, 30
        %v2642 = vshll.u32 %v2641, 30
        %v2643 = vsub.s32 %v2639, %v2642
        %vm2644 = vcmp.lt.s32.totalorder %v2643, 0
        %v2645 = vsub.s32 0, %v2643
        %v2646 = vsel %vm2644, %v2645, %v2643
        %v2647 = vclz %v2646
        %v2648 = vsub.s32 %v2647, 2
        %vm2649 = vcmp.gt.s32.totalorder 0, %v2648
        %v2650 = vsel %vm2649, 0, %v2648
        %v2651 = vsub.s32 32, %v2650
        %v2652 = vshll.u32 %v2643, %v2650
        %v2653 = vshrl.u32 %v2635, %v2651
        %v2654 = vor.u32 %v2652, %v2653
        %v2655 = vsub.s32 4294967266, %v2650
        %v2656 = vadd.s32 %v2655, 127
        %v2657 = vshll.u32 %v2656, 23
        %v2658 = vor.u32 4788187, %v2657
        %v2659 = vand.u32 2147483647, %v2658
        %v2661 = vcvt.s32.f32 %v2654
        %v2662 = vmul.f32 %v2661, %v2659
        %v2663 = vxor.u32 %v2662, 2147483648
        %v2664 = vsel %vm2543, %v2663, %v2662
        %v2665 = vsub.s32 4, %v2641
        %v2666 = vsel %vm2543, %v2665, %v2641
        %v2667 = vsel %vm2542, %v2539, %v2664
        %v2668 = vsel %vm2542, 0, %v2666
        %v2669 = vmul.f32 %v2667, %v2667
        %v2670 = vmul.f32 %v2669, -0.001358992
        %v2671 = vadd.f32 %v2670, 0.041655596
        %v2672 = vmul.f32 %v2669, %v2671
        %v2673 = vadd.f32 %v2672, -0.4999988
        %v2674 = vmul.f32 %v2669, %v2673
        %v2675 = vadd.f32 1.0, %v2674
        %v2676 = vmul.f32 %v2667, %v2667
        %v2677 = vmul.f32 %v2676, -0.00019511016
        %v2678 = vadd.f32 %v2677, 0.008332121
        %v2679 = vmul.f32 %v2676, %v2678
        %v2680 = vadd.f32 %v2679, -0.16666654
        %v2681 = vmul.f32 %v2676, %v2680
        %v2682 = vadd.f32 %v2681, 1.0
        %v2683 = vmul.f32 %v2682, %v2667
        %vm2684 = vweird.f32 %v2539
        %v2685 = vadd.s32 %v2668, 3
        %v2686 = vand.u32 %v2685, 3
        %vm2687 = vcmp.lt.s32.totalorder %v2686, 2
        %vm2688 = vcmp.eq.s32.totalorder %v2686, 0
        %v2689 = vxor.u32 %v2683, 2147483648
        %v2690 = vsel %vm2688, %v2675, %v2689
        %vm2691 = vcmp.eq.s32.totalorder %v2686, 2
        %v2692 = vxor.u32 %v2675, 2147483648
        %v2693 = vsel %vm2691, %v2692, %v2683
        %v2694 = vsel %vm2687, %v2690, %v2693
        %v2695 = vsel %vm2684, nan, %v2694
        %v2696 = vand.u32 2147483647, %v2540
        %vm2697 = vcmp.le.f32.partialorder %v2696, 0.7853982
        %vm2698 = vcmp.lt.s32.totalorder %v2540, 0
        %v2699 = vand.u32 %v2540, 2139095040
        %v2700 = vshrl.u32 %v2699, 23
        %v2701 = vsub.s32 %v2700, 127
        %v2702 = vand.u32 2147483647, %v2540
        %v2703 = vand.u32 %v2702, 8388607
        %v2704 = vor.u32 %v2703, 8388608
        %v2705 = vsub.s32 0, %v2704
        %v2706 = vadd.s32 %v2701, 1
        %vm2707 = vcmp.gt.s32.totalorder %v2706, 0
        %v2708 = vsel %vm2707, %v2706, 0
        %v2709 = vshrl.u32 %v2708, 5
        %v2710 = vand.u32 %v2708, 31
        %v2711 = vsub.s32 32, %v2710
        %v2712 = vshrl.u32 683565275, %v2711
        %v2713 = vshll.u32 683565275, %v2710
        %v2714 = vshrl.u32 2475754826, %v2711
        %v2715 = vor.u32 %v2713, %v2714
        %v2716 = vshll.u32 2475754826, %v2710
        %v2717 = vshrl.u32 2131351028, %v2711
        %v2718 = vor.u32 %v2716, %v2717
        %v2719 = vshll.u32 2131351028, %v2710
        %v2720 = vshrl.u32 2102212464, %v2711
        %v2721 = vor.u32 %v2719, %v2720
        %v2722 = vshll.u32 2102212464, %v2710
        %v2723 = vshrl.u32 920167782, %v2711
        %v2724 = vor.u32 %v2722, %v2723
        %v2725 = vshll.u32 920167782, %v2710
        %v2726 = vshrl.u32 1326507024, %v2711
        %v2727 = vor.u32 %v2725, %v2726
        %vm2728 = vcmp.lt.s32.totalorder %v2709, 1
        %vm2729 = vcmp.lt.s32.totalorder %v2709, 2
        %vm2730 = vcmp.lt.s32.totalorder %v2709, 3
        %vm2731 = vcmp.lt.s32.totalorder %v2709, 4
        %v2732 = vsel %vm2728, %v2712, %v2715
        %v2733 = vsel %vm2731, %v2721, 2102212464
        %v2734 = vsel %vm2730, %v2718, %v2733
        %v2735 = vsel %vm2729, %v2732, %v2734
        %v2736 = vsel %vm2728, %v2715, %v2718
        %v2737 = vsel %vm2731, %v2724, 920167782
        %v2738 = vsel %vm2730, %v2721, %v2737
        %v2739 = vsel %vm2729, %v2736, %v2738
        %v2740 = vsel %vm2728, %v2718, %v2721
        %v2741 = vsel %vm2731, %v2727, 1326507024
        %v2742 = vsel %vm2730, %v2724, %v2741
        %v2743 = vsel %vm2729, %v2740, %v2742
        %v2744 = vshll.u32 %v2704, 8
        %v2745 = vand.u32 %v2744, 65535
        %v2746 = vshrl.u32 %v2744, 16
        %v2747 = vand.u32 %v2743, 65535
        %v2748 = vshrl.u32 %v2743, 16
        %v2749 = vmul.u32 %v2745, %v2747
        %v2750 = vmul.u32 %v2745, %v2748
        %v2751 = vmul.u32 %v2746, %v2747
        %v2752 = vmul.u32 %v2746, %v2748
        %v2753 = vshll.u32 %v2750, 16
        %v2754 = vshrl.u32 %v2750, 16
        %v2755 = vshll.u32 %v2751, 16
        %v2756 = vshrl.u32 %v2751, 16
        %vm2757 = vc.u32 %v2749, %v2753
        %v2758 = vsel %vm2757, 1, 0
        %v2759 = vadd.s32 %v2749, %v2753
        %v2760 = vadd.s32 %v2752, %v2758
        %vm2761 = vc.u32 %v2759, %v2755
        %v2762 = vsel %vm2761, 1, 0
        %v2763 = vadd.s32 %v2759, %v2755
        %v2764 = vadd.s32 %v2760, %v2762
        %v2765 = vadd.s32 %v2764, %v2754
        %v2766 = vadd.s32 %v2765, %v2756
        %v2767 = vand.u32 %v2744, 65535
        %v2768 = vshrl.u32 %v2744, 16
        %v2769 = vand.u32 %v2739, 65535
        %v2770 = vshrl.u32 %v2739, 16
        %v2771 = vmul.u32 %v2767, %v2769
        %v2772 = vmul.u32 %v2767, %v2770
        %v2773 = vmul.u32 %v2768, %v2769
        %v2774 = vmul.u32 %v2768, %v2770
        %v2775 = vshll.u32 %v2772, 16
        %v2776 = vshrl.u32 %v2772, 16
        %v2777 = vshll.u32 %v2773, 16
        %v2778 = vshrl.u32 %v2773, 16
        %vm2779 = vc.u32 %v2771, %v2775
        %v2780 = vsel %vm2779, 1, 0
        %v2781 = vadd.s32 %v2771, %v2775
        %v2782 = vadd.s32 %v2774, %v2780
        %vm2783 = vc.u32 %v2781, %v2777
        %v2784 = vsel %vm2783, 1, 0
        %v2785 = vadd.s32 %v2781, %v2777
        %v2786 = vadd.s32 %v2782, %v2784
        %v2787 = vadd.s32 %v2786, %v2776
        %v2788 = vadd.s32 %v2787, %v2778
        %v2789 = vmul.u32 %v2744, %v2735
        %v2790 = vadd.s32 %v2766, %v2785
        %vm2791 = vc.u32 %v2766, %v2785
        %v2792 = vadd.s32 %v2788, 1
        %v2793 = vsel %vm2791, %v2792, %v2788
        %v2794 = vadd.s32 %v2789, %v2793
        %v2795 = vadd.s32 %v2794, 536870912
        %v2796 = vshrl.u32 %v2795, 30
        %v2797 = vshll.u32 %v2796, 30
        %v2798 = vsub.s32 %v2794, %v2797
        %vm2799 = vcmp.lt.s32.totalorder %v2798, 0
        %v2800 = vsub.s32 0, %v2798
        %v2801 = vsel %vm2799, %v2800, %v2798
        %v2802 = vclz %v2801
        %v2803 = vsub.s32 %v2802, 2
        %vm2804 = vcmp.gt.s32.totalorder 0, %v2803
        %v2805 = vsel %vm2804, 0, %v2803
        %v2806 = vsub.s32 32, %v2805
        %v2807 = vshll.u32 %v2798, %v2805
        %v2808 = vshrl.u32 %v2790, %v2806
        %v2809 = vor.u32 %v2807, %v2808
        %v2810 = vsub.s32 4294967266, %v2805
        %v2811 = vadd.s32 %v2810, 127
        %v2812 = vshll.u32 %v2811, 23
        %v2813 = vor.u32 4788187, %v2812
        %v2814 = vand.u32 2147483647, %v2813
        %v2816 = vcvt.s32.f32 %v2809
        %v2817 = vmul.f32 %v2816, %v2814
        %v2818 = vxor.u32 %v2817, 2147483648
        %v2819 = vsel %vm2698, %v2818, %v2817
        %v2820 = vsub.s32 4, %v2796
        %v2821 = vsel %vm2698, %v2820, %v2796
        %v2822 = vsel %vm2697, %v2540, %v2819
        %v2823 = vsel %vm2697, 0, %v2821
        %v2824 = vmul.f32 %v2822, %v2822
        %v2825 = vmul.f32 %v2824, -0.001358992
        %v2826 = vadd.f32 %v2825, 0.041655596
        %v2827 = vmul.f32 %v2824, %v2826
        %v2828 = vadd.f32 %v2827, -0.4999988
        %v2829 = vmul.f32 %v2824, %v2828
        %v2830 = vadd.f32 1.0, %v2829
        %v2831 = vmul.f32 %v2822, %v2822
        %v2832 = vmul.f32 %v2831, -0.00019511016
        %v2833 = vadd.f32 %v2832, 0.008332121
        %v2834 = vmul.f32 %v2831, %v2833
        %v2835 = vadd.f32 %v2834, -0.16666654
        %v2836 = vmul.f32 %v2831, %v2835
        %v2837 = vadd.f32 %v2836, 1.0
        %v2838 = vmul.f32 %v2837, %v2822
        %vm2839 = vweird.f32 %v2540
        %v2840 = vadd.s32 %v2823, 3
        %v2841 = vand.u32 %v2840, 3
        %vm2842 = vcmp.lt.s32.totalorder %v2841, 2
        %vm2843 = vcmp.eq.s32.totalorder %v2841, 0
        %v2844 = vxor.u32 %v2838, 2147483648
        %v2845 = vsel %vm2843, %v2830, %v2844
        %vm2846 = vcmp.eq.s32.totalorder %v2841, 2
        %v2847 = vxor.u32 %v2830, 2147483648
        %v2848 = vsel %vm2846, %v2847, %v2838
        %v2849 = vsel %vm2842, %v2845, %v2848
        %v2850 = vsel %vm2839, nan, %v2849
        %2851 = vst [vmem:[%s237 + $0xb0] sm:$0xff] %v2695
        %2852 = vst [vmem:[%s237 + $0xb8] sm:$0xff] %v2850
        %2854 = vset.pattern.permute.xlu0 0
        %2855 = vperm.xlu0 %2854, %v261
        %v2856 = vpop.permute.xlu0 %2855
        %v2858 = vmul.f32 %v275, %v2856
        %v2859 = vmul.f32 %v276, %v2856
        %2861 = vset.pattern.permute.xlu0 0
        %2862 = vperm.xlu0 %2861, %v269
        %v2863 = vpop.permute.xlu0 %2862
        %v2865 = vadd.f32 %v2858, %v2863
        %v2866 = vadd.f32 %v2859, %v2863
        %v2867 = vand.u32 2147483647, %v2865
        %vm2868 = vcmp.le.f32.partialorder %v2867, 0.7853982
        %vm2869 = vcmp.lt.s32.totalorder %v2865, 0
        %v2870 = vand.u32 %v2865, 2139095040
        %v2871 = vshrl.u32 %v2870, 23
        %v2872 = vsub.s32 %v2871, 127
        %v2873 = vand.u32 2147483647, %v2865
        %v2874 = vand.u32 %v2873, 8388607
        %v2875 = vor.u32 %v2874, 8388608
        %v2876 = vsub.s32 0, %v2875
        %v2877 = vadd.s32 %v2872, 1
        %vm2878 = vcmp.gt.s32.totalorder %v2877, 0
        %v2879 = vsel %vm2878, %v2877, 0
        %v2880 = vshrl.u32 %v2879, 5
        %v2881 = vand.u32 %v2879, 31
        %v2882 = vsub.s32 32, %v2881
        %v2883 = vshrl.u32 683565275, %v2882
        %v2884 = vshll.u32 683565275, %v2881
        %v2885 = vshrl.u32 2475754826, %v2882
        %v2886 = vor.u32 %v2884, %v2885
        %v2887 = vshll.u32 2475754826, %v2881
        %v2888 = vshrl.u32 2131351028, %v2882
        %v2889 = vor.u32 %v2887, %v2888
        %v2890 = vshll.u32 2131351028, %v2881
        %v2891 = vshrl.u32 2102212464, %v2882
        %v2892 = vor.u32 %v2890, %v2891
        %v2893 = vshll.u32 2102212464, %v2881
        %v2894 = vshrl.u32 920167782, %v2882
        %v2895 = vor.u32 %v2893, %v2894
        %v2896 = vshll.u32 920167782, %v2881
        %v2897 = vshrl.u32 1326507024, %v2882
        %v2898 = vor.u32 %v2896, %v2897
        %vm2899 = vcmp.lt.s32.totalorder %v2880, 1
        %vm2900 = vcmp.lt.s32.totalorder %v2880, 2
        %vm2901 = vcmp.lt.s32.totalorder %v2880, 3
        %vm2902 = vcmp.lt.s32.totalorder %v2880, 4
        %v2903 = vsel %vm2899, %v2883, %v2886
        %v2904 = vsel %vm2902, %v2892, 2102212464
        %v2905 = vsel %vm2901, %v2889, %v2904
        %v2906 = vsel %vm2900, %v2903, %v2905
        %v2907 = vsel %vm2899, %v2886, %v2889
        %v2908 = vsel %vm2902, %v2895, 920167782
        %v2909 = vsel %vm2901, %v2892, %v2908
        %v2910 = vsel %vm2900, %v2907, %v2909
        %v2911 = vsel %vm2899, %v2889, %v2892
        %v2912 = vsel %vm2902, %v2898, 1326507024
        %v2913 = vsel %vm2901, %v2895, %v2912
        %v2914 = vsel %vm2900, %v2911, %v2913
        %v2915 = vshll.u32 %v2875, 8
        %v2916 = vand.u32 %v2915, 65535
        %v2917 = vshrl.u32 %v2915, 16
        %v2918 = vand.u32 %v2914, 65535
        %v2919 = vshrl.u32 %v2914, 16
        %v2920 = vmul.u32 %v2916, %v2918
        %v2921 = vmul.u32 %v2916, %v2919
        %v2922 = vmul.u32 %v2917, %v2918
        %v2923 = vmul.u32 %v2917, %v2919
        %v2924 = vshll.u32 %v2921, 16
        %v2925 = vshrl.u32 %v2921, 16
        %v2926 = vshll.u32 %v2922, 16
        %v2927 = vshrl.u32 %v2922, 16
        %vm2928 = vc.u32 %v2920, %v2924
        %v2929 = vsel %vm2928, 1, 0
        %v2930 = vadd.s32 %v2920, %v2924
        %v2931 = vadd.s32 %v2923, %v2929
        %vm2932 = vc.u32 %v2930, %v2926
        %v2933 = vsel %vm2932, 1, 0
        %v2934 = vadd.s32 %v2930, %v2926
        %v2935 = vadd.s32 %v2931, %v2933
        %v2936 = vadd.s32 %v2935, %v2925
        %v2937 = vadd.s32 %v2936, %v2927
        %v2938 = vand.u32 %v2915, 65535
        %v2939 = vshrl.u32 %v2915, 16
        %v2940 = vand.u32 %v2910, 65535
        %v2941 = vshrl.u32 %v2910, 16
        %v2942 = vmul.u32 %v2938, %v2940
        %v2943 = vmul.u32 %v2938, %v2941
        %v2944 = vmul.u32 %v2939, %v2940
        %v2945 = vmul.u32 %v2939, %v2941
        %v2946 = vshll.u32 %v2943, 16
        %v2947 = vshrl.u32 %v2943, 16
        %v2948 = vshll.u32 %v2944, 16
        %v2949 = vshrl.u32 %v2944, 16
        %vm2950 = vc.u32 %v2942, %v2946
        %v2951 = vsel %vm2950, 1, 0
        %v2952 = vadd.s32 %v2942, %v2946
        %v2953 = vadd.s32 %v2945, %v2951
        %vm2954 = vc.u32 %v2952, %v2948
        %v2955 = vsel %vm2954, 1, 0
        %v2956 = vadd.s32 %v2952, %v2948
        %v2957 = vadd.s32 %v2953, %v2955
        %v2958 = vadd.s32 %v2957, %v2947
        %v2959 = vadd.s32 %v2958, %v2949
        %v2960 = vmul.u32 %v2915, %v2906
        %v2961 = vadd.s32 %v2937, %v2956
        %vm2962 = vc.u32 %v2937, %v2956
        %v2963 = vadd.s32 %v2959, 1
        %v2964 = vsel %vm2962, %v2963, %v2959
        %v2965 = vadd.s32 %v2960, %v2964
        %v2966 = vadd.s32 %v2965, 536870912
        %v2967 = vshrl.u32 %v2966, 30
        %v2968 = vshll.u32 %v2967, 30
        %v2969 = vsub.s32 %v2965, %v2968
        %vm2970 = vcmp.lt.s32.totalorder %v2969, 0
        %v2971 = vsub.s32 0, %v2969
        %v2972 = vsel %vm2970, %v2971, %v2969
        %v2973 = vclz %v2972
        %v2974 = vsub.s32 %v2973, 2
        %vm2975 = vcmp.gt.s32.totalorder 0, %v2974
        %v2976 = vsel %vm2975, 0, %v2974
        %v2977 = vsub.s32 32, %v2976
        %v2978 = vshll.u32 %v2969, %v2976
        %v2979 = vshrl.u32 %v2961, %v2977
        %v2980 = vor.u32 %v2978, %v2979
        %v2981 = vsub.s32 4294967266, %v2976
        %v2982 = vadd.s32 %v2981, 127
        %v2983 = vshll.u32 %v2982, 23
        %v2984 = vor.u32 4788187, %v2983
        %v2985 = vand.u32 2147483647, %v2984
        %v2987 = vcvt.s32.f32 %v2980
        %v2988 = vmul.f32 %v2987, %v2985
        %v2989 = vxor.u32 %v2988, 2147483648
        %v2990 = vsel %vm2869, %v2989, %v2988
        %v2991 = vsub.s32 4, %v2967
        %v2992 = vsel %vm2869, %v2991, %v2967
        %v2993 = vsel %vm2868, %v2865, %v2990
        %v2994 = vsel %vm2868, 0, %v2992
        %v2995 = vmul.f32 %v2993, %v2993
        %v2996 = vmul.f32 %v2995, -0.001358992
        %v2997 = vadd.f32 %v2996, 0.041655596
        %v2998 = vmul.f32 %v2995, %v2997
        %v2999 = vadd.f32 %v2998, -0.4999988
        %v3000 = vmul.f32 %v2995, %v2999
        %v3001 = vadd.f32 1.0, %v3000
        %v3002 = vmul.f32 %v2993, %v2993
        %v3003 = vmul.f32 %v3002, -0.00019511016
        %v3004 = vadd.f32 %v3003, 0.008332121
        %v3005 = vmul.f32 %v3002, %v3004
        %v3006 = vadd.f32 %v3005, -0.16666654
        %v3007 = vmul.f32 %v3002, %v3006
        %v3008 = vadd.f32 %v3007, 1.0
        %v3009 = vmul.f32 %v3008, %v2993
        %vm3010 = vweird.f32 %v2865
        %v3011 = vadd.s32 %v2994, 3
        %v3012 = vand.u32 %v3011, 3
        %vm3013 = vcmp.lt.s32.totalorder %v3012, 2
        %vm3014 = vcmp.eq.s32.totalorder %v3012, 0
        %v3015 = vxor.u32 %v3009, 2147483648
        %v3016 = vsel %vm3014, %v3001, %v3015
        %vm3017 = vcmp.eq.s32.totalorder %v3012, 2
        %v3018 = vxor.u32 %v3001, 2147483648
        %v3019 = vsel %vm3017, %v3018, %v3009
        %v3020 = vsel %vm3013, %v3016, %v3019
        %v3021 = vsel %vm3010, nan, %v3020
        %v3022 = vand.u32 2147483647, %v2866
        %vm3023 = vcmp.le.f32.partialorder %v3022, 0.7853982
        %vm3024 = vcmp.lt.s32.totalorder %v2866, 0
        %v3025 = vand.u32 %v2866, 2139095040
        %v3026 = vshrl.u32 %v3025, 23
        %v3027 = vsub.s32 %v3026, 127
        %v3028 = vand.u32 2147483647, %v2866
        %v3029 = vand.u32 %v3028, 8388607
        %v3030 = vor.u32 %v3029, 8388608
        %v3031 = vsub.s32 0, %v3030
        %v3032 = vadd.s32 %v3027, 1
        %vm3033 = vcmp.gt.s32.totalorder %v3032, 0
        %v3034 = vsel %vm3033, %v3032, 0
        %v3035 = vshrl.u32 %v3034, 5
        %v3036 = vand.u32 %v3034, 31
        %v3037 = vsub.s32 32, %v3036
        %v3038 = vshrl.u32 683565275, %v3037
        %v3039 = vshll.u32 683565275, %v3036
        %v3040 = vshrl.u32 2475754826, %v3037
        %v3041 = vor.u32 %v3039, %v3040
        %v3042 = vshll.u32 2475754826, %v3036
        %v3043 = vshrl.u32 2131351028, %v3037
        %v3044 = vor.u32 %v3042, %v3043
        %v3045 = vshll.u32 2131351028, %v3036
        %v3046 = vshrl.u32 2102212464, %v3037
        %v3047 = vor.u32 %v3045, %v3046
        %v3048 = vshll.u32 2102212464, %v3036
        %v3049 = vshrl.u32 920167782, %v3037
        %v3050 = vor.u32 %v3048, %v3049
        %v3051 = vshll.u32 920167782, %v3036
        %v3052 = vshrl.u32 1326507024, %v3037
        %v3053 = vor.u32 %v3051, %v3052
        %vm3054 = vcmp.lt.s32.totalorder %v3035, 1
        %vm3055 = vcmp.lt.s32.totalorder %v3035, 2
        %vm3056 = vcmp.lt.s32.totalorder %v3035, 3
        %vm3057 = vcmp.lt.s32.totalorder %v3035, 4
        %v3058 = vsel %vm3054, %v3038, %v3041
        %v3059 = vsel %vm3057, %v3047, 2102212464
        %v3060 = vsel %vm3056, %v3044, %v3059
        %v3061 = vsel %vm3055, %v3058, %v3060
        %v3062 = vsel %vm3054, %v3041, %v3044
        %v3063 = vsel %vm3057, %v3050, 920167782
        %v3064 = vsel %vm3056, %v3047, %v3063
        %v3065 = vsel %vm3055, %v3062, %v3064
        %v3066 = vsel %vm3054, %v3044, %v3047
        %v3067 = vsel %vm3057, %v3053, 1326507024
        %v3068 = vsel %vm3056, %v3050, %v3067
        %v3069 = vsel %vm3055, %v3066, %v3068
        %v3070 = vshll.u32 %v3030, 8
        %v3071 = vand.u32 %v3070, 65535
        %v3072 = vshrl.u32 %v3070, 16
        %v3073 = vand.u32 %v3069, 65535
        %v3074 = vshrl.u32 %v3069, 16
        %v3075 = vmul.u32 %v3071, %v3073
        %v3076 = vmul.u32 %v3071, %v3074
        %v3077 = vmul.u32 %v3072, %v3073
        %v3078 = vmul.u32 %v3072, %v3074
        %v3079 = vshll.u32 %v3076, 16
        %v3080 = vshrl.u32 %v3076, 16
        %v3081 = vshll.u32 %v3077, 16
        %v3082 = vshrl.u32 %v3077, 16
        %vm3083 = vc.u32 %v3075, %v3079
        %v3084 = vsel %vm3083, 1, 0
        %v3085 = vadd.s32 %v3075, %v3079
        %v3086 = vadd.s32 %v3078, %v3084
        %vm3087 = vc.u32 %v3085, %v3081
        %v3088 = vsel %vm3087, 1, 0
        %v3089 = vadd.s32 %v3085, %v3081
        %v3090 = vadd.s32 %v3086, %v3088
        %v3091 = vadd.s32 %v3090, %v3080
        %v3092 = vadd.s32 %v3091, %v3082
        %v3093 = vand.u32 %v3070, 65535
        %v3094 = vshrl.u32 %v3070, 16
        %v3095 = vand.u32 %v3065, 65535
        %v3096 = vshrl.u32 %v3065, 16
        %v3097 = vmul.u32 %v3093, %v3095
        %v3098 = vmul.u32 %v3093, %v3096
        %v3099 = vmul.u32 %v3094, %v3095
        %v3100 = vmul.u32 %v3094, %v3096
        %v3101 = vshll.u32 %v3098, 16
        %v3102 = vshrl.u32 %v3098, 16
        %v3103 = vshll.u32 %v3099, 16
        %v3104 = vshrl.u32 %v3099, 16
        %vm3105 = vc.u32 %v3097, %v3101
        %v3106 = vsel %vm3105, 1, 0
        %v3107 = vadd.s32 %v3097, %v3101
        %v3108 = vadd.s32 %v3100, %v3106
        %vm3109 = vc.u32 %v3107, %v3103
        %v3110 = vsel %vm3109, 1, 0
        %v3111 = vadd.s32 %v3107, %v3103
        %v3112 = vadd.s32 %v3108, %v3110
        %v3113 = vadd.s32 %v3112, %v3102
        %v3114 = vadd.s32 %v3113, %v3104
        %v3115 = vmul.u32 %v3070, %v3061
        %v3116 = vadd.s32 %v3092, %v3111
        %vm3117 = vc.u32 %v3092, %v3111
        %v3118 = vadd.s32 %v3114, 1
        %v3119 = vsel %vm3117, %v3118, %v3114
        %v3120 = vadd.s32 %v3115, %v3119
        %v3121 = vadd.s32 %v3120, 536870912
        %v3122 = vshrl.u32 %v3121, 30
        %v3123 = vshll.u32 %v3122, 30
        %v3124 = vsub.s32 %v3120, %v3123
        %vm3125 = vcmp.lt.s32.totalorder %v3124, 0
        %v3126 = vsub.s32 0, %v3124
        %v3127 = vsel %vm3125, %v3126, %v3124
        %v3128 = vclz %v3127
        %v3129 = vsub.s32 %v3128, 2
        %vm3130 = vcmp.gt.s32.totalorder 0, %v3129
        %v3131 = vsel %vm3130, 0, %v3129
        %v3132 = vsub.s32 32, %v3131
        %v3133 = vshll.u32 %v3124, %v3131
        %v3134 = vshrl.u32 %v3116, %v3132
        %v3135 = vor.u32 %v3133, %v3134
        %v3136 = vsub.s32 4294967266, %v3131
        %v3137 = vadd.s32 %v3136, 127
        %v3138 = vshll.u32 %v3137, 23
        %v3139 = vor.u32 4788187, %v3138
        %v3140 = vand.u32 2147483647, %v3139
        %v3142 = vcvt.s32.f32 %v3135
        %v3143 = vmul.f32 %v3142, %v3140
        %v3144 = vxor.u32 %v3143, 2147483648
        %v3145 = vsel %vm3024, %v3144, %v3143
        %v3146 = vsub.s32 4, %v3122
        %v3147 = vsel %vm3024, %v3146, %v3122
        %v3148 = vsel %vm3023, %v2866, %v3145
        %v3149 = vsel %vm3023, 0, %v3147
        %v3150 = vmul.f32 %v3148, %v3148
        %v3151 = vmul.f32 %v3150, -0.001358992
        %v3152 = vadd.f32 %v3151, 0.041655596
        %v3153 = vmul.f32 %v3150, %v3152
        %v3154 = vadd.f32 %v3153, -0.4999988
        %v3155 = vmul.f32 %v3150, %v3154
        %v3156 = vadd.f32 1.0, %v3155
        %v3157 = vmul.f32 %v3148, %v3148
        %v3158 = vmul.f32 %v3157, -0.00019511016
        %v3159 = vadd.f32 %v3158, 0.008332121
        %v3160 = vmul.f32 %v3157, %v3159
        %v3161 = vadd.f32 %v3160, -0.16666654
        %v3162 = vmul.f32 %v3157, %v3161
        %v3163 = vadd.f32 %v3162, 1.0
        %v3164 = vmul.f32 %v3163, %v3148
        %vm3165 = vweird.f32 %v2866
        %v3166 = vadd.s32 %v3149, 3
        %v3167 = vand.u32 %v3166, 3
        %vm3168 = vcmp.lt.s32.totalorder %v3167, 2
        %vm3169 = vcmp.eq.s32.totalorder %v3167, 0
        %v3170 = vxor.u32 %v3164, 2147483648
        %v3171 = vsel %vm3169, %v3156, %v3170
        %vm3172 = vcmp.eq.s32.totalorder %v3167, 2
        %v3173 = vxor.u32 %v3156, 2147483648
        %v3174 = vsel %vm3172, %v3173, %v3164
        %v3175 = vsel %vm3168, %v3171, %v3174
        %v3176 = vsel %vm3165, nan, %v3175
        %3177 = vst [vmem:[%s237 + $0x40] sm:$0xff] %v3021
        %3178 = vst [vmem:[%s237 + $0x48] sm:$0xff] %v3176
        %v3179 = vmul.f32 %v281, %v2856
        %v3180 = vmul.f32 %v282, %v2856
        %v3181 = vadd.f32 %v3179, %v2863
        %v3182 = vadd.f32 %v3180, %v2863
        %v3183 = vand.u32 2147483647, %v3181
        %vm3184 = vcmp.le.f32.partialorder %v3183, 0.7853982
        %vm3185 = vcmp.lt.s32.totalorder %v3181, 0
        %v3186 = vand.u32 %v3181, 2139095040
        %v3187 = vshrl.u32 %v3186, 23
        %v3188 = vsub.s32 %v3187, 127
        %v3189 = vand.u32 2147483647, %v3181
        %v3190 = vand.u32 %v3189, 8388607
        %v3191 = vor.u32 %v3190, 8388608
        %v3192 = vsub.s32 0, %v3191
        %v3193 = vadd.s32 %v3188, 1
        %vm3194 = vcmp.gt.s32.totalorder %v3193, 0
        %v3195 = vsel %vm3194, %v3193, 0
        %v3196 = vshrl.u32 %v3195, 5
        %v3197 = vand.u32 %v3195, 31
        %v3198 = vsub.s32 32, %v3197
        %v3199 = vshrl.u32 683565275, %v3198
        %v3200 = vshll.u32 683565275, %v3197
        %v3201 = vshrl.u32 2475754826, %v3198
        %v3202 = vor.u32 %v3200, %v3201
        %v3203 = vshll.u32 2475754826, %v3197
        %v3204 = vshrl.u32 2131351028, %v3198
        %v3205 = vor.u32 %v3203, %v3204
        %v3206 = vshll.u32 2131351028, %v3197
        %v3207 = vshrl.u32 2102212464, %v3198
        %v3208 = vor.u32 %v3206, %v3207
        %v3209 = vshll.u32 2102212464, %v3197
        %v3210 = vshrl.u32 920167782, %v3198
        %v3211 = vor.u32 %v3209, %v3210
        %v3212 = vshll.u32 920167782, %v3197
        %v3213 = vshrl.u32 1326507024, %v3198
        %v3214 = vor.u32 %v3212, %v3213
        %vm3215 = vcmp.lt.s32.totalorder %v3196, 1
        %vm3216 = vcmp.lt.s32.totalorder %v3196, 2
        %vm3217 = vcmp.lt.s32.totalorder %v3196, 3
        %vm3218 = vcmp.lt.s32.totalorder %v3196, 4
        %v3219 = vsel %vm3215, %v3199, %v3202
        %v3220 = vsel %vm3218, %v3208, 2102212464
        %v3221 = vsel %vm3217, %v3205, %v3220
        %v3222 = vsel %vm3216, %v3219, %v3221
        %v3223 = vsel %vm3215, %v3202, %v3205
        %v3224 = vsel %vm3218, %v3211, 920167782
        %v3225 = vsel %vm3217, %v3208, %v3224
        %v3226 = vsel %vm3216, %v3223, %v3225
        %v3227 = vsel %vm3215, %v3205, %v3208
        %v3228 = vsel %vm3218, %v3214, 1326507024
        %v3229 = vsel %vm3217, %v3211, %v3228
        %v3230 = vsel %vm3216, %v3227, %v3229
        %v3231 = vshll.u32 %v3191, 8
        %v3232 = vand.u32 %v3231, 65535
        %v3233 = vshrl.u32 %v3231, 16
        %v3234 = vand.u32 %v3230, 65535
        %v3235 = vshrl.u32 %v3230, 16
        %v3236 = vmul.u32 %v3232, %v3234
        %v3237 = vmul.u32 %v3232, %v3235
        %v3238 = vmul.u32 %v3233, %v3234
        %v3239 = vmul.u32 %v3233, %v3235
        %v3240 = vshll.u32 %v3237, 16
        %v3241 = vshrl.u32 %v3237, 16
        %v3242 = vshll.u32 %v3238, 16
        %v3243 = vshrl.u32 %v3238, 16
        %vm3244 = vc.u32 %v3236, %v3240
        %v3245 = vsel %vm3244, 1, 0
        %v3246 = vadd.s32 %v3236, %v3240
        %v3247 = vadd.s32 %v3239, %v3245
        %vm3248 = vc.u32 %v3246, %v3242
        %v3249 = vsel %vm3248, 1, 0
        %v3250 = vadd.s32 %v3246, %v3242
        %v3251 = vadd.s32 %v3247, %v3249
        %v3252 = vadd.s32 %v3251, %v3241
        %v3253 = vadd.s32 %v3252, %v3243
        %v3254 = vand.u32 %v3231, 65535
        %v3255 = vshrl.u32 %v3231, 16
        %v3256 = vand.u32 %v3226, 65535
        %v3257 = vshrl.u32 %v3226, 16
        %v3258 = vmul.u32 %v3254, %v3256
        %v3259 = vmul.u32 %v3254, %v3257
        %v3260 = vmul.u32 %v3255, %v3256
        %v3261 = vmul.u32 %v3255, %v3257
        %v3262 = vshll.u32 %v3259, 16
        %v3263 = vshrl.u32 %v3259, 16
        %v3264 = vshll.u32 %v3260, 16
        %v3265 = vshrl.u32 %v3260, 16
        %vm3266 = vc.u32 %v3258, %v3262
        %v3267 = vsel %vm3266, 1, 0
        %v3268 = vadd.s32 %v3258, %v3262
        %v3269 = vadd.s32 %v3261, %v3267
        %vm3270 = vc.u32 %v3268, %v3264
        %v3271 = vsel %vm3270, 1, 0
        %v3272 = vadd.s32 %v3268, %v3264
        %v3273 = vadd.s32 %v3269, %v3271
        %v3274 = vadd.s32 %v3273, %v3263
        %v3275 = vadd.s32 %v3274, %v3265
        %v3276 = vmul.u32 %v3231, %v3222
        %v3277 = vadd.s32 %v3253, %v3272
        %vm3278 = vc.u32 %v3253, %v3272
        %v3279 = vadd.s32 %v3275, 1
        %v3280 = vsel %vm3278, %v3279, %v3275
        %v3281 = vadd.s32 %v3276, %v3280
        %v3282 = vadd.s32 %v3281, 536870912
        %v3283 = vshrl.u32 %v3282, 30
        %v3284 = vshll.u32 %v3283, 30
        %v3285 = vsub.s32 %v3281, %v3284
        %vm3286 = vcmp.lt.s32.totalorder %v3285, 0
        %v3287 = vsub.s32 0, %v3285
        %v3288 = vsel %vm3286, %v3287, %v3285
        %v3289 = vclz %v3288
        %v3290 = vsub.s32 %v3289, 2
        %vm3291 = vcmp.gt.s32.totalorder 0, %v3290
        %v3292 = vsel %vm3291, 0, %v3290
        %v3293 = vsub.s32 32, %v3292
        %v3294 = vshll.u32 %v3285, %v3292
        %v3295 = vshrl.u32 %v3277, %v3293
        %v3296 = vor.u32 %v3294, %v3295
        %v3297 = vsub.s32 4294967266, %v3292
        %v3298 = vadd.s32 %v3297, 127
        %v3299 = vshll.u32 %v3298, 23
        %v3300 = vor.u32 4788187, %v3299
        %v3301 = vand.u32 2147483647, %v3300
        %v3303 = vcvt.s32.f32 %v3296
        %v3304 = vmul.f32 %v3303, %v3301
        %v3305 = vxor.u32 %v3304, 2147483648
        %v3306 = vsel %vm3185, %v3305, %v3304
        %v3307 = vsub.s32 4, %v3283
        %v3308 = vsel %vm3185, %v3307, %v3283
        %v3309 = vsel %vm3184, %v3181, %v3306
        %v3310 = vsel %vm3184, 0, %v3308
        %v3311 = vmul.f32 %v3309, %v3309
        %v3312 = vmul.f32 %v3311, -0.001358992
        %v3313 = vadd.f32 %v3312, 0.041655596
        %v3314 = vmul.f32 %v3311, %v3313
        %v3315 = vadd.f32 %v3314, -0.4999988
        %v3316 = vmul.f32 %v3311, %v3315
        %v3317 = vadd.f32 1.0, %v3316
        %v3318 = vmul.f32 %v3309, %v3309
        %v3319 = vmul.f32 %v3318, -0.00019511016
        %v3320 = vadd.f32 %v3319, 0.008332121
        %v3321 = vmul.f32 %v3318, %v3320
        %v3322 = vadd.f32 %v3321, -0.16666654
        %v3323 = vmul.f32 %v3318, %v3322
        %v3324 = vadd.f32 %v3323, 1.0
        %v3325 = vmul.f32 %v3324, %v3309
        %vm3326 = vweird.f32 %v3181
        %v3327 = vadd.s32 %v3310, 3
        %v3328 = vand.u32 %v3327, 3
        %vm3329 = vcmp.lt.s32.totalorder %v3328, 2
        %vm3330 = vcmp.eq.s32.totalorder %v3328, 0
        %v3331 = vxor.u32 %v3325, 2147483648
        %v3332 = vsel %vm3330, %v3317, %v3331
        %vm3333 = vcmp.eq.s32.totalorder %v3328, 2
        %v3334 = vxor.u32 %v3317, 2147483648
        %v3335 = vsel %vm3333, %v3334, %v3325
        %v3336 = vsel %vm3329, %v3332, %v3335
        %v3337 = vsel %vm3326, nan, %v3336
        %v3338 = vand.u32 2147483647, %v3182
        %vm3339 = vcmp.le.f32.partialorder %v3338, 0.7853982
        %vm3340 = vcmp.lt.s32.totalorder %v3182, 0
        %v3341 = vand.u32 %v3182, 2139095040
        %v3342 = vshrl.u32 %v3341, 23
        %v3343 = vsub.s32 %v3342, 127
        %v3344 = vand.u32 2147483647, %v3182
        %v3345 = vand.u32 %v3344, 8388607
        %v3346 = vor.u32 %v3345, 8388608
        %v3347 = vsub.s32 0, %v3346
        %v3348 = vadd.s32 %v3343, 1
        %vm3349 = vcmp.gt.s32.totalorder %v3348, 0
        %v3350 = vsel %vm3349, %v3348, 0
        %v3351 = vshrl.u32 %v3350, 5
        %v3352 = vand.u32 %v3350, 31
        %v3353 = vsub.s32 32, %v3352
        %v3354 = vshrl.u32 683565275, %v3353
        %v3355 = vshll.u32 683565275, %v3352
        %v3356 = vshrl.u32 2475754826, %v3353
        %v3357 = vor.u32 %v3355, %v3356
        %v3358 = vshll.u32 2475754826, %v3352
        %v3359 = vshrl.u32 2131351028, %v3353
        %v3360 = vor.u32 %v3358, %v3359
        %v3361 = vshll.u32 2131351028, %v3352
        %v3362 = vshrl.u32 2102212464, %v3353
        %v3363 = vor.u32 %v3361, %v3362
        %v3364 = vshll.u32 2102212464, %v3352
        %v3365 = vshrl.u32 920167782, %v3353
        %v3366 = vor.u32 %v3364, %v3365
        %v3367 = vshll.u32 920167782, %v3352
        %v3368 = vshrl.u32 1326507024, %v3353
        %v3369 = vor.u32 %v3367, %v3368
        %vm3370 = vcmp.lt.s32.totalorder %v3351, 1
        %vm3371 = vcmp.lt.s32.totalorder %v3351, 2
        %vm3372 = vcmp.lt.s32.totalorder %v3351, 3
        %vm3373 = vcmp.lt.s32.totalorder %v3351, 4
        %v3374 = vsel %vm3370, %v3354, %v3357
        %v3375 = vsel %vm3373, %v3363, 2102212464
        %v3376 = vsel %vm3372, %v3360, %v3375
        %v3377 = vsel %vm3371, %v3374, %v3376
        %v3378 = vsel %vm3370, %v3357, %v3360
        %v3379 = vsel %vm3373, %v3366, 920167782
        %v3380 = vsel %vm3372, %v3363, %v3379
        %v3381 = vsel %vm3371, %v3378, %v3380
        %v3382 = vsel %vm3370, %v3360, %v3363
        %v3383 = vsel %vm3373, %v3369, 1326507024
        %v3384 = vsel %vm3372, %v3366, %v3383
        %v3385 = vsel %vm3371, %v3382, %v3384
        %v3386 = vshll.u32 %v3346, 8
        %v3387 = vand.u32 %v3386, 65535
        %v3388 = vshrl.u32 %v3386, 16
        %v3389 = vand.u32 %v3385, 65535
        %v3390 = vshrl.u32 %v3385, 16
        %v3391 = vmul.u32 %v3387, %v3389
        %v3392 = vmul.u32 %v3387, %v3390
        %v3393 = vmul.u32 %v3388, %v3389
        %v3394 = vmul.u32 %v3388, %v3390
        %v3395 = vshll.u32 %v3392, 16
        %v3396 = vshrl.u32 %v3392, 16
        %v3397 = vshll.u32 %v3393, 16
        %v3398 = vshrl.u32 %v3393, 16
        %vm3399 = vc.u32 %v3391, %v3395
        %v3400 = vsel %vm3399, 1, 0
        %v3401 = vadd.s32 %v3391, %v3395
        %v3402 = vadd.s32 %v3394, %v3400
        %vm3403 = vc.u32 %v3401, %v3397
        %v3404 = vsel %vm3403, 1, 0
        %v3405 = vadd.s32 %v3401, %v3397
        %v3406 = vadd.s32 %v3402, %v3404
        %v3407 = vadd.s32 %v3406, %v3396
        %v3408 = vadd.s32 %v3407, %v3398
        %v3409 = vand.u32 %v3386, 65535
        %v3410 = vshrl.u32 %v3386, 16
        %v3411 = vand.u32 %v3381, 65535
        %v3412 = vshrl.u32 %v3381, 16
        %v3413 = vmul.u32 %v3409, %v3411
        %v3414 = vmul.u32 %v3409, %v3412
        %v3415 = vmul.u32 %v3410, %v3411
        %v3416 = vmul.u32 %v3410, %v3412
        %v3417 = vshll.u32 %v3414, 16
        %v3418 = vshrl.u32 %v3414, 16
        %v3419 = vshll.u32 %v3415, 16
        %v3420 = vshrl.u32 %v3415, 16
        %vm3421 = vc.u32 %v3413, %v3417
        %v3422 = vsel %vm3421, 1, 0
        %v3423 = vadd.s32 %v3413, %v3417
        %v3424 = vadd.s32 %v3416, %v3422
        %vm3425 = vc.u32 %v3423, %v3419
        %v3426 = vsel %vm3425, 1, 0
        %v3427 = vadd.s32 %v3423, %v3419
        %v3428 = vadd.s32 %v3424, %v3426
        %v3429 = vadd.s32 %v3428, %v3418
        %v3430 = vadd.s32 %v3429, %v3420
        %v3431 = vmul.u32 %v3386, %v3377
        %v3432 = vadd.s32 %v3408, %v3427
        %vm3433 = vc.u32 %v3408, %v3427
        %v3434 = vadd.s32 %v3430, 1
        %v3435 = vsel %vm3433, %v3434, %v3430
        %v3436 = vadd.s32 %v3431, %v3435
        %v3437 = vadd.s32 %v3436, 536870912
        %v3438 = vshrl.u32 %v3437, 30
        %v3439 = vshll.u32 %v3438, 30
        %v3440 = vsub.s32 %v3436, %v3439
        %vm3441 = vcmp.lt.s32.totalorder %v3440, 0
        %v3442 = vsub.s32 0, %v3440
        %v3443 = vsel %vm3441, %v3442, %v3440
        %v3444 = vclz %v3443
        %v3445 = vsub.s32 %v3444, 2
        %vm3446 = vcmp.gt.s32.totalorder 0, %v3445
        %v3447 = vsel %vm3446, 0, %v3445
        %v3448 = vsub.s32 32, %v3447
        %v3449 = vshll.u32 %v3440, %v3447
        %v3450 = vshrl.u32 %v3432, %v3448
        %v3451 = vor.u32 %v3449, %v3450
        %v3452 = vsub.s32 4294967266, %v3447
        %v3453 = vadd.s32 %v3452, 127
        %v3454 = vshll.u32 %v3453, 23
        %v3455 = vor.u32 4788187, %v3454
        %v3456 = vand.u32 2147483647, %v3455
        %v3458 = vcvt.s32.f32 %v3451
        %v3459 = vmul.f32 %v3458, %v3456
        %v3460 = vxor.u32 %v3459, 2147483648
        %v3461 = vsel %vm3340, %v3460, %v3459
        %v3462 = vsub.s32 4, %v3438
        %v3463 = vsel %vm3340, %v3462, %v3438
        %v3464 = vsel %vm3339, %v3182, %v3461
        %v3465 = vsel %vm3339, 0, %v3463
        %v3466 = vmul.f32 %v3464, %v3464
        %v3467 = vmul.f32 %v3466, -0.001358992
        %v3468 = vadd.f32 %v3467, 0.041655596
        %v3469 = vmul.f32 %v3466, %v3468
        %v3470 = vadd.f32 %v3469, -0.4999988
        %v3471 = vmul.f32 %v3466, %v3470
        %v3472 = vadd.f32 1.0, %v3471
        %v3473 = vmul.f32 %v3464, %v3464
        %v3474 = vmul.f32 %v3473, -0.00019511016
        %v3475 = vadd.f32 %v3474, 0.008332121
        %v3476 = vmul.f32 %v3473, %v3475
        %v3477 = vadd.f32 %v3476, -0.16666654
        %v3478 = vmul.f32 %v3473, %v3477
        %v3479 = vadd.f32 %v3478, 1.0
        %v3480 = vmul.f32 %v3479, %v3464
        %vm3481 = vweird.f32 %v3182
        %v3482 = vadd.s32 %v3465, 3
        %v3483 = vand.u32 %v3482, 3
        %vm3484 = vcmp.lt.s32.totalorder %v3483, 2
        %vm3485 = vcmp.eq.s32.totalorder %v3483, 0
        %v3486 = vxor.u32 %v3480, 2147483648
        %v3487 = vsel %vm3485, %v3472, %v3486
        %vm3488 = vcmp.eq.s32.totalorder %v3483, 2
        %v3489 = vxor.u32 %v3472, 2147483648
        %v3490 = vsel %vm3488, %v3489, %v3480
        %v3491 = vsel %vm3484, %v3487, %v3490
        %v3492 = vsel %vm3481, nan, %v3491
        %3493 = vst [vmem:[%s237 + $0xc0] sm:$0xff] %v3337
        %3494 = vst [vmem:[%s237 + $0xc8] sm:$0xff] %v3492
        %3496 = vset.pattern.permute.xlu0 0
        %3497 = vperm.xlu0 %3496, %v262
        %v3498 = vpop.permute.xlu0 %3497
        %v3500 = vmul.f32 %v275, %v3498
        %v3501 = vmul.f32 %v276, %v3498
        %3503 = vset.pattern.permute.xlu0 0
        %3504 = vperm.xlu0 %3503, %v270
        %v3505 = vpop.permute.xlu0 %3504
        %v3507 = vadd.f32 %v3500, %v3505
        %v3508 = vadd.f32 %v3501, %v3505
        %v3509 = vand.u32 2147483647, %v3507
        %vm3510 = vcmp.le.f32.partialorder %v3509, 0.7853982
        %vm3511 = vcmp.lt.s32.totalorder %v3507, 0
        %v3512 = vand.u32 %v3507, 2139095040
        %v3513 = vshrl.u32 %v3512, 23
        %v3514 = vsub.s32 %v3513, 127
        %v3515 = vand.u32 2147483647, %v3507
        %v3516 = vand.u32 %v3515, 8388607
        %v3517 = vor.u32 %v3516, 8388608
        %v3518 = vsub.s32 0, %v3517
        %v3519 = vadd.s32 %v3514, 1
        %vm3520 = vcmp.gt.s32.totalorder %v3519, 0
        %v3521 = vsel %vm3520, %v3519, 0
        %v3522 = vshrl.u32 %v3521, 5
        %v3523 = vand.u32 %v3521, 31
        %v3524 = vsub.s32 32, %v3523
        %v3525 = vshrl.u32 683565275, %v3524
        %v3526 = vshll.u32 683565275, %v3523
        %v3527 = vshrl.u32 2475754826, %v3524
        %v3528 = vor.u32 %v3526, %v3527
        %v3529 = vshll.u32 2475754826, %v3523
        %v3530 = vshrl.u32 2131351028, %v3524
        %v3531 = vor.u32 %v3529, %v3530
        %v3532 = vshll.u32 2131351028, %v3523
        %v3533 = vshrl.u32 2102212464, %v3524
        %v3534 = vor.u32 %v3532, %v3533
        %v3535 = vshll.u32 2102212464, %v3523
        %v3536 = vshrl.u32 920167782, %v3524
        %v3537 = vor.u32 %v3535, %v3536
        %v3538 = vshll.u32 920167782, %v3523
        %v3539 = vshrl.u32 1326507024, %v3524
        %v3540 = vor.u32 %v3538, %v3539
        %vm3541 = vcmp.lt.s32.totalorder %v3522, 1
        %vm3542 = vcmp.lt.s32.totalorder %v3522, 2
        %vm3543 = vcmp.lt.s32.totalorder %v3522, 3
        %vm3544 = vcmp.lt.s32.totalorder %v3522, 4
        %v3545 = vsel %vm3541, %v3525, %v3528
        %v3546 = vsel %vm3544, %v3534, 2102212464
        %v3547 = vsel %vm3543, %v3531, %v3546
        %v3548 = vsel %vm3542, %v3545, %v3547
        %v3549 = vsel %vm3541, %v3528, %v3531
        %v3550 = vsel %vm3544, %v3537, 920167782
        %v3551 = vsel %vm3543, %v3534, %v3550
        %v3552 = vsel %vm3542, %v3549, %v3551
        %v3553 = vsel %vm3541, %v3531, %v3534
        %v3554 = vsel %vm3544, %v3540, 1326507024
        %v3555 = vsel %vm3543, %v3537, %v3554
        %v3556 = vsel %vm3542, %v3553, %v3555
        %v3557 = vshll.u32 %v3517, 8
        %v3558 = vand.u32 %v3557, 65535
        %v3559 = vshrl.u32 %v3557, 16
        %v3560 = vand.u32 %v3556, 65535
        %v3561 = vshrl.u32 %v3556, 16
        %v3562 = vmul.u32 %v3558, %v3560
        %v3563 = vmul.u32 %v3558, %v3561
        %v3564 = vmul.u32 %v3559, %v3560
        %v3565 = vmul.u32 %v3559, %v3561
        %v3566 = vshll.u32 %v3563, 16
        %v3567 = vshrl.u32 %v3563, 16
        %v3568 = vshll.u32 %v3564, 16
        %v3569 = vshrl.u32 %v3564, 16
        %vm3570 = vc.u32 %v3562, %v3566
        %v3571 = vsel %vm3570, 1, 0
        %v3572 = vadd.s32 %v3562, %v3566
        %v3573 = vadd.s32 %v3565, %v3571
        %vm3574 = vc.u32 %v3572, %v3568
        %v3575 = vsel %vm3574, 1, 0
        %v3576 = vadd.s32 %v3572, %v3568
        %v3577 = vadd.s32 %v3573, %v3575
        %v3578 = vadd.s32 %v3577, %v3567
        %v3579 = vadd.s32 %v3578, %v3569
        %v3580 = vand.u32 %v3557, 65535
        %v3581 = vshrl.u32 %v3557, 16
        %v3582 = vand.u32 %v3552, 65535
        %v3583 = vshrl.u32 %v3552, 16
        %v3584 = vmul.u32 %v3580, %v3582
        %v3585 = vmul.u32 %v3580, %v3583
        %v3586 = vmul.u32 %v3581, %v3582
        %v3587 = vmul.u32 %v3581, %v3583
        %v3588 = vshll.u32 %v3585, 16
        %v3589 = vshrl.u32 %v3585, 16
        %v3590 = vshll.u32 %v3586, 16
        %v3591 = vshrl.u32 %v3586, 16
        %vm3592 = vc.u32 %v3584, %v3588
        %v3593 = vsel %vm3592, 1, 0
        %v3594 = vadd.s32 %v3584, %v3588
        %v3595 = vadd.s32 %v3587, %v3593
        %vm3596 = vc.u32 %v3594, %v3590
        %v3597 = vsel %vm3596, 1, 0
        %v3598 = vadd.s32 %v3594, %v3590
        %v3599 = vadd.s32 %v3595, %v3597
        %v3600 = vadd.s32 %v3599, %v3589
        %v3601 = vadd.s32 %v3600, %v3591
        %v3602 = vmul.u32 %v3557, %v3548
        %v3603 = vadd.s32 %v3579, %v3598
        %vm3604 = vc.u32 %v3579, %v3598
        %v3605 = vadd.s32 %v3601, 1
        %v3606 = vsel %vm3604, %v3605, %v3601
        %v3607 = vadd.s32 %v3602, %v3606
        %v3608 = vadd.s32 %v3607, 536870912
        %v3609 = vshrl.u32 %v3608, 30
        %v3610 = vshll.u32 %v3609, 30
        %v3611 = vsub.s32 %v3607, %v3610
        %vm3612 = vcmp.lt.s32.totalorder %v3611, 0
        %v3613 = vsub.s32 0, %v3611
        %v3614 = vsel %vm3612, %v3613, %v3611
        %v3615 = vclz %v3614
        %v3616 = vsub.s32 %v3615, 2
        %vm3617 = vcmp.gt.s32.totalorder 0, %v3616
        %v3618 = vsel %vm3617, 0, %v3616
        %v3619 = vsub.s32 32, %v3618
        %v3620 = vshll.u32 %v3611, %v3618
        %v3621 = vshrl.u32 %v3603, %v3619
        %v3622 = vor.u32 %v3620, %v3621
        %v3623 = vsub.s32 4294967266, %v3618
        %v3624 = vadd.s32 %v3623, 127
        %v3625 = vshll.u32 %v3624, 23
        %v3626 = vor.u32 4788187, %v3625
        %v3627 = vand.u32 2147483647, %v3626
        %v3629 = vcvt.s32.f32 %v3622
        %v3630 = vmul.f32 %v3629, %v3627
        %v3631 = vxor.u32 %v3630, 2147483648
        %v3632 = vsel %vm3511, %v3631, %v3630
        %v3633 = vsub.s32 4, %v3609
        %v3634 = vsel %vm3511, %v3633, %v3609
        %v3635 = vsel %vm3510, %v3507, %v3632
        %v3636 = vsel %vm3510, 0, %v3634
        %v3637 = vmul.f32 %v3635, %v3635
        %v3638 = vmul.f32 %v3637, -0.001358992
        %v3639 = vadd.f32 %v3638, 0.041655596
        %v3640 = vmul.f32 %v3637, %v3639
        %v3641 = vadd.f32 %v3640, -0.4999988
        %v3642 = vmul.f32 %v3637, %v3641
        %v3643 = vadd.f32 1.0, %v3642
        %v3644 = vmul.f32 %v3635, %v3635
        %v3645 = vmul.f32 %v3644, -0.00019511016
        %v3646 = vadd.f32 %v3645, 0.008332121
        %v3647 = vmul.f32 %v3644, %v3646
        %v3648 = vadd.f32 %v3647, -0.16666654
        %v3649 = vmul.f32 %v3644, %v3648
        %v3650 = vadd.f32 %v3649, 1.0
        %v3651 = vmul.f32 %v3650, %v3635
        %vm3652 = vweird.f32 %v3507
        %v3653 = vadd.s32 %v3636, 3
        %v3654 = vand.u32 %v3653, 3
        %vm3655 = vcmp.lt.s32.totalorder %v3654, 2
        %vm3656 = vcmp.eq.s32.totalorder %v3654, 0
        %v3657 = vxor.u32 %v3651, 2147483648
        %v3658 = vsel %vm3656, %v3643, %v3657
        %vm3659 = vcmp.eq.s32.totalorder %v3654, 2
        %v3660 = vxor.u32 %v3643, 2147483648
        %v3661 = vsel %vm3659, %v3660, %v3651
        %v3662 = vsel %vm3655, %v3658, %v3661
        %v3663 = vsel %vm3652, nan, %v3662
        %v3664 = vand.u32 2147483647, %v3508
        %vm3665 = vcmp.le.f32.partialorder %v3664, 0.7853982
        %vm3666 = vcmp.lt.s32.totalorder %v3508, 0
        %v3667 = vand.u32 %v3508, 2139095040
        %v3668 = vshrl.u32 %v3667, 23
        %v3669 = vsub.s32 %v3668, 127
        %v3670 = vand.u32 2147483647, %v3508
        %v3671 = vand.u32 %v3670, 8388607
        %v3672 = vor.u32 %v3671, 8388608
        %v3673 = vsub.s32 0, %v3672
        %v3674 = vadd.s32 %v3669, 1
        %vm3675 = vcmp.gt.s32.totalorder %v3674, 0
        %v3676 = vsel %vm3675, %v3674, 0
        %v3677 = vshrl.u32 %v3676, 5
        %v3678 = vand.u32 %v3676, 31
        %v3679 = vsub.s32 32, %v3678
        %v3680 = vshrl.u32 683565275, %v3679
        %v3681 = vshll.u32 683565275, %v3678
        %v3682 = vshrl.u32 2475754826, %v3679
        %v3683 = vor.u32 %v3681, %v3682
        %v3684 = vshll.u32 2475754826, %v3678
        %v3685 = vshrl.u32 2131351028, %v3679
        %v3686 = vor.u32 %v3684, %v3685
        %v3687 = vshll.u32 2131351028, %v3678
        %v3688 = vshrl.u32 2102212464, %v3679
        %v3689 = vor.u32 %v3687, %v3688
        %v3690 = vshll.u32 2102212464, %v3678
        %v3691 = vshrl.u32 920167782, %v3679
        %v3692 = vor.u32 %v3690, %v3691
        %v3693 = vshll.u32 920167782, %v3678
        %v3694 = vshrl.u32 1326507024, %v3679
        %v3695 = vor.u32 %v3693, %v3694
        %vm3696 = vcmp.lt.s32.totalorder %v3677, 1
        %vm3697 = vcmp.lt.s32.totalorder %v3677, 2
        %vm3698 = vcmp.lt.s32.totalorder %v3677, 3
        %vm3699 = vcmp.lt.s32.totalorder %v3677, 4
        %v3700 = vsel %vm3696, %v3680, %v3683
        %v3701 = vsel %vm3699, %v3689, 2102212464
        %v3702 = vsel %vm3698, %v3686, %v3701
        %v3703 = vsel %vm3697, %v3700, %v3702
        %v3704 = vsel %vm3696, %v3683, %v3686
        %v3705 = vsel %vm3699, %v3692, 920167782
        %v3706 = vsel %vm3698, %v3689, %v3705
        %v3707 = vsel %vm3697, %v3704, %v3706
        %v3708 = vsel %vm3696, %v3686, %v3689
        %v3709 = vsel %vm3699, %v3695, 1326507024
        %v3710 = vsel %vm3698, %v3692, %v3709
        %v3711 = vsel %vm3697, %v3708, %v3710
        %v3712 = vshll.u32 %v3672, 8
        %v3713 = vand.u32 %v3712, 65535
        %v3714 = vshrl.u32 %v3712, 16
        %v3715 = vand.u32 %v3711, 65535
        %v3716 = vshrl.u32 %v3711, 16
        %v3717 = vmul.u32 %v3713, %v3715
        %v3718 = vmul.u32 %v3713, %v3716
        %v3719 = vmul.u32 %v3714, %v3715
        %v3720 = vmul.u32 %v3714, %v3716
        %v3721 = vshll.u32 %v3718, 16
        %v3722 = vshrl.u32 %v3718, 16
        %v3723 = vshll.u32 %v3719, 16
        %v3724 = vshrl.u32 %v3719, 16
        %vm3725 = vc.u32 %v3717, %v3721
        %v3726 = vsel %vm3725, 1, 0
        %v3727 = vadd.s32 %v3717, %v3721
        %v3728 = vadd.s32 %v3720, %v3726
        %vm3729 = vc.u32 %v3727, %v3723
        %v3730 = vsel %vm3729, 1, 0
        %v3731 = vadd.s32 %v3727, %v3723
        %v3732 = vadd.s32 %v3728, %v3730
        %v3733 = vadd.s32 %v3732, %v3722
        %v3734 = vadd.s32 %v3733, %v3724
        %v3735 = vand.u32 %v3712, 65535
        %v3736 = vshrl.u32 %v3712, 16
        %v3737 = vand.u32 %v3707, 65535
        %v3738 = vshrl.u32 %v3707, 16
        %v3739 = vmul.u32 %v3735, %v3737
        %v3740 = vmul.u32 %v3735, %v3738
        %v3741 = vmul.u32 %v3736, %v3737
        %v3742 = vmul.u32 %v3736, %v3738
        %v3743 = vshll.u32 %v3740, 16
        %v3744 = vshrl.u32 %v3740, 16
        %v3745 = vshll.u32 %v3741, 16
        %v3746 = vshrl.u32 %v3741, 16
        %vm3747 = vc.u32 %v3739, %v3743
        %v3748 = vsel %vm3747, 1, 0
        %v3749 = vadd.s32 %v3739, %v3743
        %v3750 = vadd.s32 %v3742, %v3748
        %vm3751 = vc.u32 %v3749, %v3745
        %v3752 = vsel %vm3751, 1, 0
        %v3753 = vadd.s32 %v3749, %v3745
        %v3754 = vadd.s32 %v3750, %v3752
        %v3755 = vadd.s32 %v3754, %v3744
        %v3756 = vadd.s32 %v3755, %v3746
        %v3757 = vmul.u32 %v3712, %v3703
        %v3758 = vadd.s32 %v3734, %v3753
        %vm3759 = vc.u32 %v3734, %v3753
        %v3760 = vadd.s32 %v3756, 1
        %v3761 = vsel %vm3759, %v3760, %v3756
        %v3762 = vadd.s32 %v3757, %v3761
        %v3763 = vadd.s32 %v3762, 536870912
        %v3764 = vshrl.u32 %v3763, 30
        %v3765 = vshll.u32 %v3764, 30
        %v3766 = vsub.s32 %v3762, %v3765
        %vm3767 = vcmp.lt.s32.totalorder %v3766, 0
        %v3768 = vsub.s32 0, %v3766
        %v3769 = vsel %vm3767, %v3768, %v3766
        %v3770 = vclz %v3769
        %v3771 = vsub.s32 %v3770, 2
        %vm3772 = vcmp.gt.s32.totalorder 0, %v3771
        %v3773 = vsel %vm3772, 0, %v3771
        %v3774 = vsub.s32 32, %v3773
        %v3775 = vshll.u32 %v3766, %v3773
        %v3776 = vshrl.u32 %v3758, %v3774
        %v3777 = vor.u32 %v3775, %v3776
        %v3778 = vsub.s32 4294967266, %v3773
        %v3779 = vadd.s32 %v3778, 127
        %v3780 = vshll.u32 %v3779, 23
        %v3781 = vor.u32 4788187, %v3780
        %v3782 = vand.u32 2147483647, %v3781
        %v3784 = vcvt.s32.f32 %v3777
        %v3785 = vmul.f32 %v3784, %v3782
        %v3786 = vxor.u32 %v3785, 2147483648
        %v3787 = vsel %vm3666, %v3786, %v3785
        %v3788 = vsub.s32 4, %v3764
        %v3789 = vsel %vm3666, %v3788, %v3764
        %v3790 = vsel %vm3665, %v3508, %v3787
        %v3791 = vsel %vm3665, 0, %v3789
        %v3792 = vmul.f32 %v3790, %v3790
        %v3793 = vmul.f32 %v3792, -0.001358992
        %v3794 = vadd.f32 %v3793, 0.041655596
        %v3795 = vmul.f32 %v3792, %v3794
        %v3796 = vadd.f32 %v3795, -0.4999988
        %v3797 = vmul.f32 %v3792, %v3796
        %v3798 = vadd.f32 1.0, %v3797
        %v3799 = vmul.f32 %v3790, %v3790
        %v3800 = vmul.f32 %v3799, -0.00019511016
        %v3801 = vadd.f32 %v3800, 0.008332121
        %v3802 = vmul.f32 %v3799, %v3801
        %v3803 = vadd.f32 %v3802, -0.16666654
        %v3804 = vmul.f32 %v3799, %v3803
        %v3805 = vadd.f32 %v3804, 1.0
        %v3806 = vmul.f32 %v3805, %v3790
        %vm3807 = vweird.f32 %v3508
        %v3808 = vadd.s32 %v3791, 3
        %v3809 = vand.u32 %v3808, 3
        %vm3810 = vcmp.lt.s32.totalorder %v3809, 2
        %vm3811 = vcmp.eq.s32.totalorder %v3809, 0
        %v3812 = vxor.u32 %v3806, 2147483648
        %v3813 = vsel %vm3811, %v3798, %v3812
        %vm3814 = vcmp.eq.s32.totalorder %v3809, 2
        %v3815 = vxor.u32 %v3798, 2147483648
        %v3816 = vsel %vm3814, %v3815, %v3806
        %v3817 = vsel %vm3810, %v3813, %v3816
        %v3818 = vsel %vm3807, nan, %v3817
        %3819 = vst [vmem:[%s237 + $0x50] sm:$0xff] %v3663
        %3820 = vst [vmem:[%s237 + $0x58] sm:$0xff] %v3818
        %v3821 = vmul.f32 %v281, %v3498
        %v3822 = vmul.f32 %v282, %v3498
        %v3823 = vadd.f32 %v3821, %v3505
        %v3824 = vadd.f32 %v3822, %v3505
        %v3825 = vand.u32 2147483647, %v3823
        %vm3826 = vcmp.le.f32.partialorder %v3825, 0.7853982
        %vm3827 = vcmp.lt.s32.totalorder %v3823, 0
        %v3828 = vand.u32 %v3823, 2139095040
        %v3829 = vshrl.u32 %v3828, 23
        %v3830 = vsub.s32 %v3829, 127
        %v3831 = vand.u32 2147483647, %v3823
        %v3832 = vand.u32 %v3831, 8388607
        %v3833 = vor.u32 %v3832, 8388608
        %v3834 = vsub.s32 0, %v3833
        %v3835 = vadd.s32 %v3830, 1
        %vm3836 = vcmp.gt.s32.totalorder %v3835, 0
        %v3837 = vsel %vm3836, %v3835, 0
        %v3838 = vshrl.u32 %v3837, 5
        %v3839 = vand.u32 %v3837, 31
        %v3840 = vsub.s32 32, %v3839
        %v3841 = vshrl.u32 683565275, %v3840
        %v3842 = vshll.u32 683565275, %v3839
        %v3843 = vshrl.u32 2475754826, %v3840
        %v3844 = vor.u32 %v3842, %v3843
        %v3845 = vshll.u32 2475754826, %v3839
        %v3846 = vshrl.u32 2131351028, %v3840
        %v3847 = vor.u32 %v3845, %v3846
        %v3848 = vshll.u32 2131351028, %v3839
        %v3849 = vshrl.u32 2102212464, %v3840
        %v3850 = vor.u32 %v3848, %v3849
        %v3851 = vshll.u32 2102212464, %v3839
        %v3852 = vshrl.u32 920167782, %v3840
        %v3853 = vor.u32 %v3851, %v3852
        %v3854 = vshll.u32 920167782, %v3839
        %v3855 = vshrl.u32 1326507024, %v3840
        %v3856 = vor.u32 %v3854, %v3855
        %vm3857 = vcmp.lt.s32.totalorder %v3838, 1
        %vm3858 = vcmp.lt.s32.totalorder %v3838, 2
        %vm3859 = vcmp.lt.s32.totalorder %v3838, 3
        %vm3860 = vcmp.lt.s32.totalorder %v3838, 4
        %v3861 = vsel %vm3857, %v3841, %v3844
        %v3862 = vsel %vm3860, %v3850, 2102212464
        %v3863 = vsel %vm3859, %v3847, %v3862
        %v3864 = vsel %vm3858, %v3861, %v3863
        %v3865 = vsel %vm3857, %v3844, %v3847
        %v3866 = vsel %vm3860, %v3853, 920167782
        %v3867 = vsel %vm3859, %v3850, %v3866
        %v3868 = vsel %vm3858, %v3865, %v3867
        %v3869 = vsel %vm3857, %v3847, %v3850
        %v3870 = vsel %vm3860, %v3856, 1326507024
        %v3871 = vsel %vm3859, %v3853, %v3870
        %v3872 = vsel %vm3858, %v3869, %v3871
        %v3873 = vshll.u32 %v3833, 8
        %v3874 = vand.u32 %v3873, 65535
        %v3875 = vshrl.u32 %v3873, 16
        %v3876 = vand.u32 %v3872, 65535
        %v3877 = vshrl.u32 %v3872, 16
        %v3878 = vmul.u32 %v3874, %v3876
        %v3879 = vmul.u32 %v3874, %v3877
        %v3880 = vmul.u32 %v3875, %v3876
        %v3881 = vmul.u32 %v3875, %v3877
        %v3882 = vshll.u32 %v3879, 16
        %v3883 = vshrl.u32 %v3879, 16
        %v3884 = vshll.u32 %v3880, 16
        %v3885 = vshrl.u32 %v3880, 16
        %vm3886 = vc.u32 %v3878, %v3882
        %v3887 = vsel %vm3886, 1, 0
        %v3888 = vadd.s32 %v3878, %v3882
        %v3889 = vadd.s32 %v3881, %v3887
        %vm3890 = vc.u32 %v3888, %v3884
        %v3891 = vsel %vm3890, 1, 0
        %v3892 = vadd.s32 %v3888, %v3884
        %v3893 = vadd.s32 %v3889, %v3891
        %v3894 = vadd.s32 %v3893, %v3883
        %v3895 = vadd.s32 %v3894, %v3885
        %v3896 = vand.u32 %v3873, 65535
        %v3897 = vshrl.u32 %v3873, 16
        %v3898 = vand.u32 %v3868, 65535
        %v3899 = vshrl.u32 %v3868, 16
        %v3900 = vmul.u32 %v3896, %v3898
        %v3901 = vmul.u32 %v3896, %v3899
        %v3902 = vmul.u32 %v3897, %v3898
        %v3903 = vmul.u32 %v3897, %v3899
        %v3904 = vshll.u32 %v3901, 16
        %v3905 = vshrl.u32 %v3901, 16
        %v3906 = vshll.u32 %v3902, 16
        %v3907 = vshrl.u32 %v3902, 16
        %vm3908 = vc.u32 %v3900, %v3904
        %v3909 = vsel %vm3908, 1, 0
        %v3910 = vadd.s32 %v3900, %v3904
        %v3911 = vadd.s32 %v3903, %v3909
        %vm3912 = vc.u32 %v3910, %v3906
        %v3913 = vsel %vm3912, 1, 0
        %v3914 = vadd.s32 %v3910, %v3906
        %v3915 = vadd.s32 %v3911, %v3913
        %v3916 = vadd.s32 %v3915, %v3905
        %v3917 = vadd.s32 %v3916, %v3907
        %v3918 = vmul.u32 %v3873, %v3864
        %v3919 = vadd.s32 %v3895, %v3914
        %vm3920 = vc.u32 %v3895, %v3914
        %v3921 = vadd.s32 %v3917, 1
        %v3922 = vsel %vm3920, %v3921, %v3917
        %v3923 = vadd.s32 %v3918, %v3922
        %v3924 = vadd.s32 %v3923, 536870912
        %v3925 = vshrl.u32 %v3924, 30
        %v3926 = vshll.u32 %v3925, 30
        %v3927 = vsub.s32 %v3923, %v3926
        %vm3928 = vcmp.lt.s32.totalorder %v3927, 0
        %v3929 = vsub.s32 0, %v3927
        %v3930 = vsel %vm3928, %v3929, %v3927
        %v3931 = vclz %v3930
        %v3932 = vsub.s32 %v3931, 2
        %vm3933 = vcmp.gt.s32.totalorder 0, %v3932
        %v3934 = vsel %vm3933, 0, %v3932
        %v3935 = vsub.s32 32, %v3934
        %v3936 = vshll.u32 %v3927, %v3934
        %v3937 = vshrl.u32 %v3919, %v3935
        %v3938 = vor.u32 %v3936, %v3937
        %v3939 = vsub.s32 4294967266, %v3934
        %v3940 = vadd.s32 %v3939, 127
        %v3941 = vshll.u32 %v3940, 23
        %v3942 = vor.u32 4788187, %v3941
        %v3943 = vand.u32 2147483647, %v3942
        %v3945 = vcvt.s32.f32 %v3938
        %v3946 = vmul.f32 %v3945, %v3943
        %v3947 = vxor.u32 %v3946, 2147483648
        %v3948 = vsel %vm3827, %v3947, %v3946
        %v3949 = vsub.s32 4, %v3925
        %v3950 = vsel %vm3827, %v3949, %v3925
        %v3951 = vsel %vm3826, %v3823, %v3948
        %v3952 = vsel %vm3826, 0, %v3950
        %v3953 = vmul.f32 %v3951, %v3951
        %v3954 = vmul.f32 %v3953, -0.001358992
        %v3955 = vadd.f32 %v3954, 0.041655596
        %v3956 = vmul.f32 %v3953, %v3955
        %v3957 = vadd.f32 %v3956, -0.4999988
        %v3958 = vmul.f32 %v3953, %v3957
        %v3959 = vadd.f32 1.0, %v3958
        %v3960 = vmul.f32 %v3951, %v3951
        %v3961 = vmul.f32 %v3960, -0.00019511016
        %v3962 = vadd.f32 %v3961, 0.008332121
        %v3963 = vmul.f32 %v3960, %v3962
        %v3964 = vadd.f32 %v3963, -0.16666654
        %v3965 = vmul.f32 %v3960, %v3964
        %v3966 = vadd.f32 %v3965, 1.0
        %v3967 = vmul.f32 %v3966, %v3951
        %vm3968 = vweird.f32 %v3823
        %v3969 = vadd.s32 %v3952, 3
        %v3970 = vand.u32 %v3969, 3
        %vm3971 = vcmp.lt.s32.totalorder %v3970, 2
        %vm3972 = vcmp.eq.s32.totalorder %v3970, 0
        %v3973 = vxor.u32 %v3967, 2147483648
        %v3974 = vsel %vm3972, %v3959, %v3973
        %vm3975 = vcmp.eq.s32.totalorder %v3970, 2
        %v3976 = vxor.u32 %v3959, 2147483648
        %v3977 = vsel %vm3975, %v3976, %v3967
        %v3978 = vsel %vm3971, %v3974, %v3977
        %v3979 = vsel %vm3968, nan, %v3978
        %v3980 = vand.u32 2147483647, %v3824
        %vm3981 = vcmp.le.f32.partialorder %v3980, 0.7853982
        %vm3982 = vcmp.lt.s32.totalorder %v3824, 0
        %v3983 = vand.u32 %v3824, 2139095040
        %v3984 = vshrl.u32 %v3983, 23
        %v3985 = vsub.s32 %v3984, 127
        %v3986 = vand.u32 2147483647, %v3824
        %v3987 = vand.u32 %v3986, 8388607
        %v3988 = vor.u32 %v3987, 8388608
        %v3989 = vsub.s32 0, %v3988
        %v3990 = vadd.s32 %v3985, 1
        %vm3991 = vcmp.gt.s32.totalorder %v3990, 0
        %v3992 = vsel %vm3991, %v3990, 0
        %v3993 = vshrl.u32 %v3992, 5
        %v3994 = vand.u32 %v3992, 31
        %v3995 = vsub.s32 32, %v3994
        %v3996 = vshrl.u32 683565275, %v3995
        %v3997 = vshll.u32 683565275, %v3994
        %v3998 = vshrl.u32 2475754826, %v3995
        %v3999 = vor.u32 %v3997, %v3998
        %v4000 = vshll.u32 2475754826, %v3994
        %v4001 = vshrl.u32 2131351028, %v3995
        %v4002 = vor.u32 %v4000, %v4001
        %v4003 = vshll.u32 2131351028, %v3994
        %v4004 = vshrl.u32 2102212464, %v3995
        %v4005 = vor.u32 %v4003, %v4004
        %v4006 = vshll.u32 2102212464, %v3994
        %v4007 = vshrl.u32 920167782, %v3995
        %v4008 = vor.u32 %v4006, %v4007
        %v4009 = vshll.u32 920167782, %v3994
        %v4010 = vshrl.u32 1326507024, %v3995
        %v4011 = vor.u32 %v4009, %v4010
        %vm4012 = vcmp.lt.s32.totalorder %v3993, 1
        %vm4013 = vcmp.lt.s32.totalorder %v3993, 2
        %vm4014 = vcmp.lt.s32.totalorder %v3993, 3
        %vm4015 = vcmp.lt.s32.totalorder %v3993, 4
        %v4016 = vsel %vm4012, %v3996, %v3999
        %v4017 = vsel %vm4015, %v4005, 2102212464
        %v4018 = vsel %vm4014, %v4002, %v4017
        %v4019 = vsel %vm4013, %v4016, %v4018
        %v4020 = vsel %vm4012, %v3999, %v4002
        %v4021 = vsel %vm4015, %v4008, 920167782
        %v4022 = vsel %vm4014, %v4005, %v4021
        %v4023 = vsel %vm4013, %v4020, %v4022
        %v4024 = vsel %vm4012, %v4002, %v4005
        %v4025 = vsel %vm4015, %v4011, 1326507024
        %v4026 = vsel %vm4014, %v4008, %v4025
        %v4027 = vsel %vm4013, %v4024, %v4026
        %v4028 = vshll.u32 %v3988, 8
        %v4029 = vand.u32 %v4028, 65535
        %v4030 = vshrl.u32 %v4028, 16
        %v4031 = vand.u32 %v4027, 65535
        %v4032 = vshrl.u32 %v4027, 16
        %v4033 = vmul.u32 %v4029, %v4031
        %v4034 = vmul.u32 %v4029, %v4032
        %v4035 = vmul.u32 %v4030, %v4031
        %v4036 = vmul.u32 %v4030, %v4032
        %v4037 = vshll.u32 %v4034, 16
        %v4038 = vshrl.u32 %v4034, 16
        %v4039 = vshll.u32 %v4035, 16
        %v4040 = vshrl.u32 %v4035, 16
        %vm4041 = vc.u32 %v4033, %v4037
        %v4042 = vsel %vm4041, 1, 0
        %v4043 = vadd.s32 %v4033, %v4037
        %v4044 = vadd.s32 %v4036, %v4042
        %vm4045 = vc.u32 %v4043, %v4039
        %v4046 = vsel %vm4045, 1, 0
        %v4047 = vadd.s32 %v4043, %v4039
        %v4048 = vadd.s32 %v4044, %v4046
        %v4049 = vadd.s32 %v4048, %v4038
        %v4050 = vadd.s32 %v4049, %v4040
        %v4051 = vand.u32 %v4028, 65535
        %v4052 = vshrl.u32 %v4028, 16
        %v4053 = vand.u32 %v4023, 65535
        %v4054 = vshrl.u32 %v4023, 16
        %v4055 = vmul.u32 %v4051, %v4053
        %v4056 = vmul.u32 %v4051, %v4054
        %v4057 = vmul.u32 %v4052, %v4053
        %v4058 = vmul.u32 %v4052, %v4054
        %v4059 = vshll.u32 %v4056, 16
        %v4060 = vshrl.u32 %v4056, 16
        %v4061 = vshll.u32 %v4057, 16
        %v4062 = vshrl.u32 %v4057, 16
        %vm4063 = vc.u32 %v4055, %v4059
        %v4064 = vsel %vm4063, 1, 0
        %v4065 = vadd.s32 %v4055, %v4059
        %v4066 = vadd.s32 %v4058, %v4064
        %vm4067 = vc.u32 %v4065, %v4061
        %v4068 = vsel %vm4067, 1, 0
        %v4069 = vadd.s32 %v4065, %v4061
        %v4070 = vadd.s32 %v4066, %v4068
        %v4071 = vadd.s32 %v4070, %v4060
        %v4072 = vadd.s32 %v4071, %v4062
        %v4073 = vmul.u32 %v4028, %v4019
        %v4074 = vadd.s32 %v4050, %v4069
        %vm4075 = vc.u32 %v4050, %v4069
        %v4076 = vadd.s32 %v4072, 1
        %v4077 = vsel %vm4075, %v4076, %v4072
        %v4078 = vadd.s32 %v4073, %v4077
        %v4079 = vadd.s32 %v4078, 536870912
        %v4080 = vshrl.u32 %v4079, 30
        %v4081 = vshll.u32 %v4080, 30
        %v4082 = vsub.s32 %v4078, %v4081
        %vm4083 = vcmp.lt.s32.totalorder %v4082, 0
        %v4084 = vsub.s32 0, %v4082
        %v4085 = vsel %vm4083, %v4084, %v4082
        %v4086 = vclz %v4085
        %v4087 = vsub.s32 %v4086, 2
        %vm4088 = vcmp.gt.s32.totalorder 0, %v4087
        %v4089 = vsel %vm4088, 0, %v4087
        %v4090 = vsub.s32 32, %v4089
        %v4091 = vshll.u32 %v4082, %v4089
        %v4092 = vshrl.u32 %v4074, %v4090
        %v4093 = vor.u32 %v4091, %v4092
        %v4094 = vsub.s32 4294967266, %v4089
        %v4095 = vadd.s32 %v4094, 127
        %v4096 = vshll.u32 %v4095, 23
        %v4097 = vor.u32 4788187, %v4096
        %v4098 = vand.u32 2147483647, %v4097
        %v4100 = vcvt.s32.f32 %v4093
        %v4101 = vmul.f32 %v4100, %v4098
        %v4102 = vxor.u32 %v4101, 2147483648
        %v4103 = vsel %vm3982, %v4102, %v4101
        %v4104 = vsub.s32 4, %v4080
        %v4105 = vsel %vm3982, %v4104, %v4080
        %v4106 = vsel %vm3981, %v3824, %v4103
        %v4107 = vsel %vm3981, 0, %v4105
        %v4108 = vmul.f32 %v4106, %v4106
        %v4109 = vmul.f32 %v4108, -0.001358992
        %v4110 = vadd.f32 %v4109, 0.041655596
        %v4111 = vmul.f32 %v4108, %v4110
        %v4112 = vadd.f32 %v4111, -0.4999988
        %v4113 = vmul.f32 %v4108, %v4112
        %v4114 = vadd.f32 1.0, %v4113
        %v4115 = vmul.f32 %v4106, %v4106
        %v4116 = vmul.f32 %v4115, -0.00019511016
        %v4117 = vadd.f32 %v4116, 0.008332121
        %v4118 = vmul.f32 %v4115, %v4117
        %v4119 = vadd.f32 %v4118, -0.16666654
        %v4120 = vmul.f32 %v4115, %v4119
        %v4121 = vadd.f32 %v4120, 1.0
        %v4122 = vmul.f32 %v4121, %v4106
        %vm4123 = vweird.f32 %v3824
        %v4124 = vadd.s32 %v4107, 3
        %v4125 = vand.u32 %v4124, 3
        %vm4126 = vcmp.lt.s32.totalorder %v4125, 2
        %vm4127 = vcmp.eq.s32.totalorder %v4125, 0
        %v4128 = vxor.u32 %v4122, 2147483648
        %v4129 = vsel %vm4127, %v4114, %v4128
        %vm4130 = vcmp.eq.s32.totalorder %v4125, 2
        %v4131 = vxor.u32 %v4114, 2147483648
        %v4132 = vsel %vm4130, %v4131, %v4122
        %v4133 = vsel %vm4126, %v4129, %v4132
        %v4134 = vsel %vm4123, nan, %v4133
        %4135 = vst [vmem:[%s237 + $0xd0] sm:$0xff] %v3979
        %4136 = vst [vmem:[%s237 + $0xd8] sm:$0xff] %v4134
        %4138 = vset.pattern.permute.xlu0 0
        %4139 = vperm.xlu0 %4138, %v263
        %v4140 = vpop.permute.xlu0 %4139
        %v4142 = vmul.f32 %v275, %v4140
        %v4143 = vmul.f32 %v276, %v4140
        %4145 = vset.pattern.permute.xlu0 0
        %4146 = vperm.xlu0 %4145, %v271
        %v4147 = vpop.permute.xlu0 %4146
        %v4149 = vadd.f32 %v4142, %v4147
        %v4150 = vadd.f32 %v4143, %v4147
        %v4151 = vand.u32 2147483647, %v4149
        %vm4152 = vcmp.le.f32.partialorder %v4151, 0.7853982
        %vm4153 = vcmp.lt.s32.totalorder %v4149, 0
        %v4154 = vand.u32 %v4149, 2139095040
        %v4155 = vshrl.u32 %v4154, 23
        %v4156 = vsub.s32 %v4155, 127
        %v4157 = vand.u32 2147483647, %v4149
        %v4158 = vand.u32 %v4157, 8388607
        %v4159 = vor.u32 %v4158, 8388608
        %v4160 = vsub.s32 0, %v4159
        %v4161 = vadd.s32 %v4156, 1
        %vm4162 = vcmp.gt.s32.totalorder %v4161, 0
        %v4163 = vsel %vm4162, %v4161, 0
        %v4164 = vshrl.u32 %v4163, 5
        %v4165 = vand.u32 %v4163, 31
        %v4166 = vsub.s32 32, %v4165
        %v4167 = vshrl.u32 683565275, %v4166
        %v4168 = vshll.u32 683565275, %v4165
        %v4169 = vshrl.u32 2475754826, %v4166
        %v4170 = vor.u32 %v4168, %v4169
        %v4171 = vshll.u32 2475754826, %v4165
        %v4172 = vshrl.u32 2131351028, %v4166
        %v4173 = vor.u32 %v4171, %v4172
        %v4174 = vshll.u32 2131351028, %v4165
        %v4175 = vshrl.u32 2102212464, %v4166
        %v4176 = vor.u32 %v4174, %v4175
        %v4177 = vshll.u32 2102212464, %v4165
        %v4178 = vshrl.u32 920167782, %v4166
        %v4179 = vor.u32 %v4177, %v4178
        %v4180 = vshll.u32 920167782, %v4165
        %v4181 = vshrl.u32 1326507024, %v4166
        %v4182 = vor.u32 %v4180, %v4181
        %vm4183 = vcmp.lt.s32.totalorder %v4164, 1
        %vm4184 = vcmp.lt.s32.totalorder %v4164, 2
        %vm4185 = vcmp.lt.s32.totalorder %v4164, 3
        %vm4186 = vcmp.lt.s32.totalorder %v4164, 4
        %v4187 = vsel %vm4183, %v4167, %v4170
        %v4188 = vsel %vm4186, %v4176, 2102212464
        %v4189 = vsel %vm4185, %v4173, %v4188
        %v4190 = vsel %vm4184, %v4187, %v4189
        %v4191 = vsel %vm4183, %v4170, %v4173
        %v4192 = vsel %vm4186, %v4179, 920167782
        %v4193 = vsel %vm4185, %v4176, %v4192
        %v4194 = vsel %vm4184, %v4191, %v4193
        %v4195 = vsel %vm4183, %v4173, %v4176
        %v4196 = vsel %vm4186, %v4182, 1326507024
        %v4197 = vsel %vm4185, %v4179, %v4196
        %v4198 = vsel %vm4184, %v4195, %v4197
        %v4199 = vshll.u32 %v4159, 8
        %v4200 = vand.u32 %v4199, 65535
        %v4201 = vshrl.u32 %v4199, 16
        %v4202 = vand.u32 %v4198, 65535
        %v4203 = vshrl.u32 %v4198, 16
        %v4204 = vmul.u32 %v4200, %v4202
        %v4205 = vmul.u32 %v4200, %v4203
        %v4206 = vmul.u32 %v4201, %v4202
        %v4207 = vmul.u32 %v4201, %v4203
        %v4208 = vshll.u32 %v4205, 16
        %v4209 = vshrl.u32 %v4205, 16
        %v4210 = vshll.u32 %v4206, 16
        %v4211 = vshrl.u32 %v4206, 16
        %vm4212 = vc.u32 %v4204, %v4208
        %v4213 = vsel %vm4212, 1, 0
        %v4214 = vadd.s32 %v4204, %v4208
        %v4215 = vadd.s32 %v4207, %v4213
        %vm4216 = vc.u32 %v4214, %v4210
        %v4217 = vsel %vm4216, 1, 0
        %v4218 = vadd.s32 %v4214, %v4210
        %v4219 = vadd.s32 %v4215, %v4217
        %v4220 = vadd.s32 %v4219, %v4209
        %v4221 = vadd.s32 %v4220, %v4211
        %v4222 = vand.u32 %v4199, 65535
        %v4223 = vshrl.u32 %v4199, 16
        %v4224 = vand.u32 %v4194, 65535
        %v4225 = vshrl.u32 %v4194, 16
        %v4226 = vmul.u32 %v4222, %v4224
        %v4227 = vmul.u32 %v4222, %v4225
        %v4228 = vmul.u32 %v4223, %v4224
        %v4229 = vmul.u32 %v4223, %v4225
        %v4230 = vshll.u32 %v4227, 16
        %v4231 = vshrl.u32 %v4227, 16
        %v4232 = vshll.u32 %v4228, 16
        %v4233 = vshrl.u32 %v4228, 16
        %vm4234 = vc.u32 %v4226, %v4230
        %v4235 = vsel %vm4234, 1, 0
        %v4236 = vadd.s32 %v4226, %v4230
        %v4237 = vadd.s32 %v4229, %v4235
        %vm4238 = vc.u32 %v4236, %v4232
        %v4239 = vsel %vm4238, 1, 0
        %v4240 = vadd.s32 %v4236, %v4232
        %v4241 = vadd.s32 %v4237, %v4239
        %v4242 = vadd.s32 %v4241, %v4231
        %v4243 = vadd.s32 %v4242, %v4233
        %v4244 = vmul.u32 %v4199, %v4190
        %v4245 = vadd.s32 %v4221, %v4240
        %vm4246 = vc.u32 %v4221, %v4240
        %v4247 = vadd.s32 %v4243, 1
        %v4248 = vsel %vm4246, %v4247, %v4243
        %v4249 = vadd.s32 %v4244, %v4248
        %v4250 = vadd.s32 %v4249, 536870912
        %v4251 = vshrl.u32 %v4250, 30
        %v4252 = vshll.u32 %v4251, 30
        %v4253 = vsub.s32 %v4249, %v4252
        %vm4254 = vcmp.lt.s32.totalorder %v4253, 0
        %v4255 = vsub.s32 0, %v4253
        %v4256 = vsel %vm4254, %v4255, %v4253
        %v4257 = vclz %v4256
        %v4258 = vsub.s32 %v4257, 2
        %vm4259 = vcmp.gt.s32.totalorder 0, %v4258
        %v4260 = vsel %vm4259, 0, %v4258
        %v4261 = vsub.s32 32, %v4260
        %v4262 = vshll.u32 %v4253, %v4260
        %v4263 = vshrl.u32 %v4245, %v4261
        %v4264 = vor.u32 %v4262, %v4263
        %v4265 = vsub.s32 4294967266, %v4260
        %v4266 = vadd.s32 %v4265, 127
        %v4267 = vshll.u32 %v4266, 23
        %v4268 = vor.u32 4788187, %v4267
        %v4269 = vand.u32 2147483647, %v4268
        %v4271 = vcvt.s32.f32 %v4264
        %v4272 = vmul.f32 %v4271, %v4269
        %v4273 = vxor.u32 %v4272, 2147483648
        %v4274 = vsel %vm4153, %v4273, %v4272
        %v4275 = vsub.s32 4, %v4251
        %v4276 = vsel %vm4153, %v4275, %v4251
        %v4277 = vsel %vm4152, %v4149, %v4274
        %v4278 = vsel %vm4152, 0, %v4276
        %v4279 = vmul.f32 %v4277, %v4277
        %v4280 = vmul.f32 %v4279, -0.001358992
        %v4281 = vadd.f32 %v4280, 0.041655596
        %v4282 = vmul.f32 %v4279, %v4281
        %v4283 = vadd.f32 %v4282, -0.4999988
        %v4284 = vmul.f32 %v4279, %v4283
        %v4285 = vadd.f32 1.0, %v4284
        %v4286 = vmul.f32 %v4277, %v4277
        %v4287 = vmul.f32 %v4286, -0.00019511016
        %v4288 = vadd.f32 %v4287, 0.008332121
        %v4289 = vmul.f32 %v4286, %v4288
        %v4290 = vadd.f32 %v4289, -0.16666654
        %v4291 = vmul.f32 %v4286, %v4290
        %v4292 = vadd.f32 %v4291, 1.0
        %v4293 = vmul.f32 %v4292, %v4277
        %vm4294 = vweird.f32 %v4149
        %v4295 = vadd.s32 %v4278, 3
        %v4296 = vand.u32 %v4295, 3
        %vm4297 = vcmp.lt.s32.totalorder %v4296, 2
        %vm4298 = vcmp.eq.s32.totalorder %v4296, 0
        %v4299 = vxor.u32 %v4293, 2147483648
        %v4300 = vsel %vm4298, %v4285, %v4299
        %vm4301 = vcmp.eq.s32.totalorder %v4296, 2
        %v4302 = vxor.u32 %v4285, 2147483648
        %v4303 = vsel %vm4301, %v4302, %v4293
        %v4304 = vsel %vm4297, %v4300, %v4303
        %v4305 = vsel %vm4294, nan, %v4304
        %v4306 = vand.u32 2147483647, %v4150
        %vm4307 = vcmp.le.f32.partialorder %v4306, 0.7853982
        %vm4308 = vcmp.lt.s32.totalorder %v4150, 0
        %v4309 = vand.u32 %v4150, 2139095040
        %v4310 = vshrl.u32 %v4309, 23
        %v4311 = vsub.s32 %v4310, 127
        %v4312 = vand.u32 2147483647, %v4150
        %v4313 = vand.u32 %v4312, 8388607
        %v4314 = vor.u32 %v4313, 8388608
        %v4315 = vsub.s32 0, %v4314
        %v4316 = vadd.s32 %v4311, 1
        %vm4317 = vcmp.gt.s32.totalorder %v4316, 0
        %v4318 = vsel %vm4317, %v4316, 0
        %v4319 = vshrl.u32 %v4318, 5
        %v4320 = vand.u32 %v4318, 31
        %v4321 = vsub.s32 32, %v4320
        %v4322 = vshrl.u32 683565275, %v4321
        %v4323 = vshll.u32 683565275, %v4320
        %v4324 = vshrl.u32 2475754826, %v4321
        %v4325 = vor.u32 %v4323, %v4324
        %v4326 = vshll.u32 2475754826, %v4320
        %v4327 = vshrl.u32 2131351028, %v4321
        %v4328 = vor.u32 %v4326, %v4327
        %v4329 = vshll.u32 2131351028, %v4320
        %v4330 = vshrl.u32 2102212464, %v4321
        %v4331 = vor.u32 %v4329, %v4330
        %v4332 = vshll.u32 2102212464, %v4320
        %v4333 = vshrl.u32 920167782, %v4321
        %v4334 = vor.u32 %v4332, %v4333
        %v4335 = vshll.u32 920167782, %v4320
        %v4336 = vshrl.u32 1326507024, %v4321
        %v4337 = vor.u32 %v4335, %v4336
        %vm4338 = vcmp.lt.s32.totalorder %v4319, 1
        %vm4339 = vcmp.lt.s32.totalorder %v4319, 2
        %vm4340 = vcmp.lt.s32.totalorder %v4319, 3
        %vm4341 = vcmp.lt.s32.totalorder %v4319, 4
        %v4342 = vsel %vm4338, %v4322, %v4325
        %v4343 = vsel %vm4341, %v4331, 2102212464
        %v4344 = vsel %vm4340, %v4328, %v4343
        %v4345 = vsel %vm4339, %v4342, %v4344
        %v4346 = vsel %vm4338, %v4325, %v4328
        %v4347 = vsel %vm4341, %v4334, 920167782
        %v4348 = vsel %vm4340, %v4331, %v4347
        %v4349 = vsel %vm4339, %v4346, %v4348
        %v4350 = vsel %vm4338, %v4328, %v4331
        %v4351 = vsel %vm4341, %v4337, 1326507024
        %v4352 = vsel %vm4340, %v4334, %v4351
        %v4353 = vsel %vm4339, %v4350, %v4352
        %v4354 = vshll.u32 %v4314, 8
        %v4355 = vand.u32 %v4354, 65535
        %v4356 = vshrl.u32 %v4354, 16
        %v4357 = vand.u32 %v4353, 65535
        %v4358 = vshrl.u32 %v4353, 16
        %v4359 = vmul.u32 %v4355, %v4357
        %v4360 = vmul.u32 %v4355, %v4358
        %v4361 = vmul.u32 %v4356, %v4357
        %v4362 = vmul.u32 %v4356, %v4358
        %v4363 = vshll.u32 %v4360, 16
        %v4364 = vshrl.u32 %v4360, 16
        %v4365 = vshll.u32 %v4361, 16
        %v4366 = vshrl.u32 %v4361, 16
        %vm4367 = vc.u32 %v4359, %v4363
        %v4368 = vsel %vm4367, 1, 0
        %v4369 = vadd.s32 %v4359, %v4363
        %v4370 = vadd.s32 %v4362, %v4368
        %vm4371 = vc.u32 %v4369, %v4365
        %v4372 = vsel %vm4371, 1, 0
        %v4373 = vadd.s32 %v4369, %v4365
        %v4374 = vadd.s32 %v4370, %v4372
        %v4375 = vadd.s32 %v4374, %v4364
        %v4376 = vadd.s32 %v4375, %v4366
        %v4377 = vand.u32 %v4354, 65535
        %v4378 = vshrl.u32 %v4354, 16
        %v4379 = vand.u32 %v4349, 65535
        %v4380 = vshrl.u32 %v4349, 16
        %v4381 = vmul.u32 %v4377, %v4379
        %v4382 = vmul.u32 %v4377, %v4380
        %v4383 = vmul.u32 %v4378, %v4379
        %v4384 = vmul.u32 %v4378, %v4380
        %v4385 = vshll.u32 %v4382, 16
        %v4386 = vshrl.u32 %v4382, 16
        %v4387 = vshll.u32 %v4383, 16
        %v4388 = vshrl.u32 %v4383, 16
        %vm4389 = vc.u32 %v4381, %v4385
        %v4390 = vsel %vm4389, 1, 0
        %v4391 = vadd.s32 %v4381, %v4385
        %v4392 = vadd.s32 %v4384, %v4390
        %vm4393 = vc.u32 %v4391, %v4387
        %v4394 = vsel %vm4393, 1, 0
        %v4395 = vadd.s32 %v4391, %v4387
        %v4396 = vadd.s32 %v4392, %v4394
        %v4397 = vadd.s32 %v4396, %v4386
        %v4398 = vadd.s32 %v4397, %v4388
        %v4399 = vmul.u32 %v4354, %v4345
        %v4400 = vadd.s32 %v4376, %v4395
        %vm4401 = vc.u32 %v4376, %v4395
        %v4402 = vadd.s32 %v4398, 1
        %v4403 = vsel %vm4401, %v4402, %v4398
        %v4404 = vadd.s32 %v4399, %v4403
        %v4405 = vadd.s32 %v4404, 536870912
        %v4406 = vshrl.u32 %v4405, 30
        %v4407 = vshll.u32 %v4406, 30
        %v4408 = vsub.s32 %v4404, %v4407
        %vm4409 = vcmp.lt.s32.totalorder %v4408, 0
        %v4410 = vsub.s32 0, %v4408
        %v4411 = vsel %vm4409, %v4410, %v4408
        %v4412 = vclz %v4411
        %v4413 = vsub.s32 %v4412, 2
        %vm4414 = vcmp.gt.s32.totalorder 0, %v4413
        %v4415 = vsel %vm4414, 0, %v4413
        %v4416 = vsub.s32 32, %v4415
        %v4417 = vshll.u32 %v4408, %v4415
        %v4418 = vshrl.u32 %v4400, %v4416
        %v4419 = vor.u32 %v4417, %v4418
        %v4420 = vsub.s32 4294967266, %v4415
        %v4421 = vadd.s32 %v4420, 127
        %v4422 = vshll.u32 %v4421, 23
        %v4423 = vor.u32 4788187, %v4422
        %v4424 = vand.u32 2147483647, %v4423
        %v4426 = vcvt.s32.f32 %v4419
        %v4427 = vmul.f32 %v4426, %v4424
        %v4428 = vxor.u32 %v4427, 2147483648
        %v4429 = vsel %vm4308, %v4428, %v4427
        %v4430 = vsub.s32 4, %v4406
        %v4431 = vsel %vm4308, %v4430, %v4406
        %v4432 = vsel %vm4307, %v4150, %v4429
        %v4433 = vsel %vm4307, 0, %v4431
        %v4434 = vmul.f32 %v4432, %v4432
        %v4435 = vmul.f32 %v4434, -0.001358992
        %v4436 = vadd.f32 %v4435, 0.041655596
        %v4437 = vmul.f32 %v4434, %v4436
        %v4438 = vadd.f32 %v4437, -0.4999988
        %v4439 = vmul.f32 %v4434, %v4438
        %v4440 = vadd.f32 1.0, %v4439
        %v4441 = vmul.f32 %v4432, %v4432
        %v4442 = vmul.f32 %v4441, -0.00019511016
        %v4443 = vadd.f32 %v4442, 0.008332121
        %v4444 = vmul.f32 %v4441, %v4443
        %v4445 = vadd.f32 %v4444, -0.16666654
        %v4446 = vmul.f32 %v4441, %v4445
        %v4447 = vadd.f32 %v4446, 1.0
        %v4448 = vmul.f32 %v4447, %v4432
        %vm4449 = vweird.f32 %v4150
        %v4450 = vadd.s32 %v4433, 3
        %v4451 = vand.u32 %v4450, 3
        %vm4452 = vcmp.lt.s32.totalorder %v4451, 2
        %vm4453 = vcmp.eq.s32.totalorder %v4451, 0
        %v4454 = vxor.u32 %v4448, 2147483648
        %v4455 = vsel %vm4453, %v4440, %v4454
        %vm4456 = vcmp.eq.s32.totalorder %v4451, 2
        %v4457 = vxor.u32 %v4440, 2147483648
        %v4458 = vsel %vm4456, %v4457, %v4448
        %v4459 = vsel %vm4452, %v4455, %v4458
        %v4460 = vsel %vm4449, nan, %v4459
        %4461 = vst [vmem:[%s237 + $0x60] sm:$0xff] %v4305
        %4462 = vst [vmem:[%s237 + $0x68] sm:$0xff] %v4460
        %v4463 = vmul.f32 %v281, %v4140
        %v4464 = vmul.f32 %v282, %v4140
        %v4465 = vadd.f32 %v4463, %v4147
        %v4466 = vadd.f32 %v4464, %v4147
        %v4467 = vand.u32 2147483647, %v4465
        %vm4468 = vcmp.le.f32.partialorder %v4467, 0.7853982
        %vm4469 = vcmp.lt.s32.totalorder %v4465, 0
        %v4470 = vand.u32 %v4465, 2139095040
        %v4471 = vshrl.u32 %v4470, 23
        %v4472 = vsub.s32 %v4471, 127
        %v4473 = vand.u32 2147483647, %v4465
        %v4474 = vand.u32 %v4473, 8388607
        %v4475 = vor.u32 %v4474, 8388608
        %v4476 = vsub.s32 0, %v4475
        %v4477 = vadd.s32 %v4472, 1
        %vm4478 = vcmp.gt.s32.totalorder %v4477, 0
        %v4479 = vsel %vm4478, %v4477, 0
        %v4480 = vshrl.u32 %v4479, 5
        %v4481 = vand.u32 %v4479, 31
        %v4482 = vsub.s32 32, %v4481
        %v4483 = vshrl.u32 683565275, %v4482
        %v4484 = vshll.u32 683565275, %v4481
        %v4485 = vshrl.u32 2475754826, %v4482
        %v4486 = vor.u32 %v4484, %v4485
        %v4487 = vshll.u32 2475754826, %v4481
        %v4488 = vshrl.u32 2131351028, %v4482
        %v4489 = vor.u32 %v4487, %v4488
        %v4490 = vshll.u32 2131351028, %v4481
        %v4491 = vshrl.u32 2102212464, %v4482
        %v4492 = vor.u32 %v4490, %v4491
        %v4493 = vshll.u32 2102212464, %v4481
        %v4494 = vshrl.u32 920167782, %v4482
        %v4495 = vor.u32 %v4493, %v4494
        %v4496 = vshll.u32 920167782, %v4481
        %v4497 = vshrl.u32 1326507024, %v4482
        %v4498 = vor.u32 %v4496, %v4497
        %vm4499 = vcmp.lt.s32.totalorder %v4480, 1
        %vm4500 = vcmp.lt.s32.totalorder %v4480, 2
        %vm4501 = vcmp.lt.s32.totalorder %v4480, 3
        %vm4502 = vcmp.lt.s32.totalorder %v4480, 4
        %v4503 = vsel %vm4499, %v4483, %v4486
        %v4504 = vsel %vm4502, %v4492, 2102212464
        %v4505 = vsel %vm4501, %v4489, %v4504
        %v4506 = vsel %vm4500, %v4503, %v4505
        %v4507 = vsel %vm4499, %v4486, %v4489
        %v4508 = vsel %vm4502, %v4495, 920167782
        %v4509 = vsel %vm4501, %v4492, %v4508
        %v4510 = vsel %vm4500, %v4507, %v4509
        %v4511 = vsel %vm4499, %v4489, %v4492
        %v4512 = vsel %vm4502, %v4498, 1326507024
        %v4513 = vsel %vm4501, %v4495, %v4512
        %v4514 = vsel %vm4500, %v4511, %v4513
        %v4515 = vshll.u32 %v4475, 8
        %v4516 = vand.u32 %v4515, 65535
        %v4517 = vshrl.u32 %v4515, 16
        %v4518 = vand.u32 %v4514, 65535
        %v4519 = vshrl.u32 %v4514, 16
        %v4520 = vmul.u32 %v4516, %v4518
        %v4521 = vmul.u32 %v4516, %v4519
        %v4522 = vmul.u32 %v4517, %v4518
        %v4523 = vmul.u32 %v4517, %v4519
        %v4524 = vshll.u32 %v4521, 16
        %v4525 = vshrl.u32 %v4521, 16
        %v4526 = vshll.u32 %v4522, 16
        %v4527 = vshrl.u32 %v4522, 16
        %vm4528 = vc.u32 %v4520, %v4524
        %v4529 = vsel %vm4528, 1, 0
        %v4530 = vadd.s32 %v4520, %v4524
        %v4531 = vadd.s32 %v4523, %v4529
        %vm4532 = vc.u32 %v4530, %v4526
        %v4533 = vsel %vm4532, 1, 0
        %v4534 = vadd.s32 %v4530, %v4526
        %v4535 = vadd.s32 %v4531, %v4533
        %v4536 = vadd.s32 %v4535, %v4525
        %v4537 = vadd.s32 %v4536, %v4527
        %v4538 = vand.u32 %v4515, 65535
        %v4539 = vshrl.u32 %v4515, 16
        %v4540 = vand.u32 %v4510, 65535
        %v4541 = vshrl.u32 %v4510, 16
        %v4542 = vmul.u32 %v4538, %v4540
        %v4543 = vmul.u32 %v4538, %v4541
        %v4544 = vmul.u32 %v4539, %v4540
        %v4545 = vmul.u32 %v4539, %v4541
        %v4546 = vshll.u32 %v4543, 16
        %v4547 = vshrl.u32 %v4543, 16
        %v4548 = vshll.u32 %v4544, 16
        %v4549 = vshrl.u32 %v4544, 16
        %vm4550 = vc.u32 %v4542, %v4546
        %v4551 = vsel %vm4550, 1, 0
        %v4552 = vadd.s32 %v4542, %v4546
        %v4553 = vadd.s32 %v4545, %v4551
        %vm4554 = vc.u32 %v4552, %v4548
        %v4555 = vsel %vm4554, 1, 0
        %v4556 = vadd.s32 %v4552, %v4548
        %v4557 = vadd.s32 %v4553, %v4555
        %v4558 = vadd.s32 %v4557, %v4547
        %v4559 = vadd.s32 %v4558, %v4549
        %v4560 = vmul.u32 %v4515, %v4506
        %v4561 = vadd.s32 %v4537, %v4556
        %vm4562 = vc.u32 %v4537, %v4556
        %v4563 = vadd.s32 %v4559, 1
        %v4564 = vsel %vm4562, %v4563, %v4559
        %v4565 = vadd.s32 %v4560, %v4564
        %v4566 = vadd.s32 %v4565, 536870912
        %v4567 = vshrl.u32 %v4566, 30
        %v4568 = vshll.u32 %v4567, 30
        %v4569 = vsub.s32 %v4565, %v4568
        %vm4570 = vcmp.lt.s32.totalorder %v4569, 0
        %v4571 = vsub.s32 0, %v4569
        %v4572 = vsel %vm4570, %v4571, %v4569
        %v4573 = vclz %v4572
        %v4574 = vsub.s32 %v4573, 2
        %vm4575 = vcmp.gt.s32.totalorder 0, %v4574
        %v4576 = vsel %vm4575, 0, %v4574
        %v4577 = vsub.s32 32, %v4576
        %v4578 = vshll.u32 %v4569, %v4576
        %v4579 = vshrl.u32 %v4561, %v4577
        %v4580 = vor.u32 %v4578, %v4579
        %v4581 = vsub.s32 4294967266, %v4576
        %v4582 = vadd.s32 %v4581, 127
        %v4583 = vshll.u32 %v4582, 23
        %v4584 = vor.u32 4788187, %v4583
        %v4585 = vand.u32 2147483647, %v4584
        %v4587 = vcvt.s32.f32 %v4580
        %v4588 = vmul.f32 %v4587, %v4585
        %v4589 = vxor.u32 %v4588, 2147483648
        %v4590 = vsel %vm4469, %v4589, %v4588
        %v4591 = vsub.s32 4, %v4567
        %v4592 = vsel %vm4469, %v4591, %v4567
        %v4593 = vsel %vm4468, %v4465, %v4590
        %v4594 = vsel %vm4468, 0, %v4592
        %v4595 = vmul.f32 %v4593, %v4593
        %v4596 = vmul.f32 %v4595, -0.001358992
        %v4597 = vadd.f32 %v4596, 0.041655596
        %v4598 = vmul.f32 %v4595, %v4597
        %v4599 = vadd.f32 %v4598, -0.4999988
        %v4600 = vmul.f32 %v4595, %v4599
        %v4601 = vadd.f32 1.0, %v4600
        %v4602 = vmul.f32 %v4593, %v4593
        %v4603 = vmul.f32 %v4602, -0.00019511016
        %v4604 = vadd.f32 %v4603, 0.008332121
        %v4605 = vmul.f32 %v4602, %v4604
        %v4606 = vadd.f32 %v4605, -0.16666654
        %v4607 = vmul.f32 %v4602, %v4606
        %v4608 = vadd.f32 %v4607, 1.0
        %v4609 = vmul.f32 %v4608, %v4593
        %vm4610 = vweird.f32 %v4465
        %v4611 = vadd.s32 %v4594, 3
        %v4612 = vand.u32 %v4611, 3
        %vm4613 = vcmp.lt.s32.totalorder %v4612, 2
        %vm4614 = vcmp.eq.s32.totalorder %v4612, 0
        %v4615 = vxor.u32 %v4609, 2147483648
        %v4616 = vsel %vm4614, %v4601, %v4615
        %vm4617 = vcmp.eq.s32.totalorder %v4612, 2
        %v4618 = vxor.u32 %v4601, 2147483648
        %v4619 = vsel %vm4617, %v4618, %v4609
        %v4620 = vsel %vm4613, %v4616, %v4619
        %v4621 = vsel %vm4610, nan, %v4620
        %v4622 = vand.u32 2147483647, %v4466
        %vm4623 = vcmp.le.f32.partialorder %v4622, 0.7853982
        %vm4624 = vcmp.lt.s32.totalorder %v4466, 0
        %v4625 = vand.u32 %v4466, 2139095040
        %v4626 = vshrl.u32 %v4625, 23
        %v4627 = vsub.s32 %v4626, 127
        %v4628 = vand.u32 2147483647, %v4466
        %v4629 = vand.u32 %v4628, 8388607
        %v4630 = vor.u32 %v4629, 8388608
        %v4631 = vsub.s32 0, %v4630
        %v4632 = vadd.s32 %v4627, 1
        %vm4633 = vcmp.gt.s32.totalorder %v4632, 0
        %v4634 = vsel %vm4633, %v4632, 0
        %v4635 = vshrl.u32 %v4634, 5
        %v4636 = vand.u32 %v4634, 31
        %v4637 = vsub.s32 32, %v4636
        %v4638 = vshrl.u32 683565275, %v4637
        %v4639 = vshll.u32 683565275, %v4636
        %v4640 = vshrl.u32 2475754826, %v4637
        %v4641 = vor.u32 %v4639, %v4640
        %v4642 = vshll.u32 2475754826, %v4636
        %v4643 = vshrl.u32 2131351028, %v4637
        %v4644 = vor.u32 %v4642, %v4643
        %v4645 = vshll.u32 2131351028, %v4636
        %v4646 = vshrl.u32 2102212464, %v4637
        %v4647 = vor.u32 %v4645, %v4646
        %v4648 = vshll.u32 2102212464, %v4636
        %v4649 = vshrl.u32 920167782, %v4637
        %v4650 = vor.u32 %v4648, %v4649
        %v4651 = vshll.u32 920167782, %v4636
        %v4652 = vshrl.u32 1326507024, %v4637
        %v4653 = vor.u32 %v4651, %v4652
        %vm4654 = vcmp.lt.s32.totalorder %v4635, 1
        %vm4655 = vcmp.lt.s32.totalorder %v4635, 2
        %vm4656 = vcmp.lt.s32.totalorder %v4635, 3
        %vm4657 = vcmp.lt.s32.totalorder %v4635, 4
        %v4658 = vsel %vm4654, %v4638, %v4641
        %v4659 = vsel %vm4657, %v4647, 2102212464
        %v4660 = vsel %vm4656, %v4644, %v4659
        %v4661 = vsel %vm4655, %v4658, %v4660
        %v4662 = vsel %vm4654, %v4641, %v4644
        %v4663 = vsel %vm4657, %v4650, 920167782
        %v4664 = vsel %vm4656, %v4647, %v4663
        %v4665 = vsel %vm4655, %v4662, %v4664
        %v4666 = vsel %vm4654, %v4644, %v4647
        %v4667 = vsel %vm4657, %v4653, 1326507024
        %v4668 = vsel %vm4656, %v4650, %v4667
        %v4669 = vsel %vm4655, %v4666, %v4668
        %v4670 = vshll.u32 %v4630, 8
        %v4671 = vand.u32 %v4670, 65535
        %v4672 = vshrl.u32 %v4670, 16
        %v4673 = vand.u32 %v4669, 65535
        %v4674 = vshrl.u32 %v4669, 16
        %v4675 = vmul.u32 %v4671, %v4673
        %v4676 = vmul.u32 %v4671, %v4674
        %v4677 = vmul.u32 %v4672, %v4673
        %v4678 = vmul.u32 %v4672, %v4674
        %v4679 = vshll.u32 %v4676, 16
        %v4680 = vshrl.u32 %v4676, 16
        %v4681 = vshll.u32 %v4677, 16
        %v4682 = vshrl.u32 %v4677, 16
        %vm4683 = vc.u32 %v4675, %v4679
        %v4684 = vsel %vm4683, 1, 0
        %v4685 = vadd.s32 %v4675, %v4679
        %v4686 = vadd.s32 %v4678, %v4684
        %vm4687 = vc.u32 %v4685, %v4681
        %v4688 = vsel %vm4687, 1, 0
        %v4689 = vadd.s32 %v4685, %v4681
        %v4690 = vadd.s32 %v4686, %v4688
        %v4691 = vadd.s32 %v4690, %v4680
        %v4692 = vadd.s32 %v4691, %v4682
        %v4693 = vand.u32 %v4670, 65535
        %v4694 = vshrl.u32 %v4670, 16
        %v4695 = vand.u32 %v4665, 65535
        %v4696 = vshrl.u32 %v4665, 16
        %v4697 = vmul.u32 %v4693, %v4695
        %v4698 = vmul.u32 %v4693, %v4696
        %v4699 = vmul.u32 %v4694, %v4695
        %v4700 = vmul.u32 %v4694, %v4696
        %v4701 = vshll.u32 %v4698, 16
        %v4702 = vshrl.u32 %v4698, 16
        %v4703 = vshll.u32 %v4699, 16
        %v4704 = vshrl.u32 %v4699, 16
        %vm4705 = vc.u32 %v4697, %v4701
        %v4706 = vsel %vm4705, 1, 0
        %v4707 = vadd.s32 %v4697, %v4701
        %v4708 = vadd.s32 %v4700, %v4706
        %vm4709 = vc.u32 %v4707, %v4703
        %v4710 = vsel %vm4709, 1, 0
        %v4711 = vadd.s32 %v4707, %v4703
        %v4712 = vadd.s32 %v4708, %v4710
        %v4713 = vadd.s32 %v4712, %v4702
        %v4714 = vadd.s32 %v4713, %v4704
        %v4715 = vmul.u32 %v4670, %v4661
        %v4716 = vadd.s32 %v4692, %v4711
        %vm4717 = vc.u32 %v4692, %v4711
        %v4718 = vadd.s32 %v4714, 1
        %v4719 = vsel %vm4717, %v4718, %v4714
        %v4720 = vadd.s32 %v4715, %v4719
        %v4721 = vadd.s32 %v4720, 536870912
        %v4722 = vshrl.u32 %v4721, 30
        %v4723 = vshll.u32 %v4722, 30
        %v4724 = vsub.s32 %v4720, %v4723
        %vm4725 = vcmp.lt.s32.totalorder %v4724, 0
        %v4726 = vsub.s32 0, %v4724
        %v4727 = vsel %vm4725, %v4726, %v4724
        %v4728 = vclz %v4727
        %v4729 = vsub.s32 %v4728, 2
        %vm4730 = vcmp.gt.s32.totalorder 0, %v4729
        %v4731 = vsel %vm4730, 0, %v4729
        %v4732 = vsub.s32 32, %v4731
        %v4733 = vshll.u32 %v4724, %v4731
        %v4734 = vshrl.u32 %v4716, %v4732
        %v4735 = vor.u32 %v4733, %v4734
        %v4736 = vsub.s32 4294967266, %v4731
        %v4737 = vadd.s32 %v4736, 127
        %v4738 = vshll.u32 %v4737, 23
        %v4739 = vor.u32 4788187, %v4738
        %v4740 = vand.u32 2147483647, %v4739
        %v4742 = vcvt.s32.f32 %v4735
        %v4743 = vmul.f32 %v4742, %v4740
        %v4744 = vxor.u32 %v4743, 2147483648
        %v4745 = vsel %vm4624, %v4744, %v4743
        %v4746 = vsub.s32 4, %v4722
        %v4747 = vsel %vm4624, %v4746, %v4722
        %v4748 = vsel %vm4623, %v4466, %v4745
        %v4749 = vsel %vm4623, 0, %v4747
        %v4750 = vmul.f32 %v4748, %v4748
        %v4751 = vmul.f32 %v4750, -0.001358992
        %v4752 = vadd.f32 %v4751, 0.041655596
        %v4753 = vmul.f32 %v4750, %v4752
        %v4754 = vadd.f32 %v4753, -0.4999988
        %v4755 = vmul.f32 %v4750, %v4754
        %v4756 = vadd.f32 1.0, %v4755
        %v4757 = vmul.f32 %v4748, %v4748
        %v4758 = vmul.f32 %v4757, -0.00019511016
        %v4759 = vadd.f32 %v4758, 0.008332121
        %v4760 = vmul.f32 %v4757, %v4759
        %v4761 = vadd.f32 %v4760, -0.16666654
        %v4762 = vmul.f32 %v4757, %v4761
        %v4763 = vadd.f32 %v4762, 1.0
        %v4764 = vmul.f32 %v4763, %v4748
        %vm4765 = vweird.f32 %v4466
        %v4766 = vadd.s32 %v4749, 3
        %v4767 = vand.u32 %v4766, 3
        %vm4768 = vcmp.lt.s32.totalorder %v4767, 2
        %vm4769 = vcmp.eq.s32.totalorder %v4767, 0
        %v4770 = vxor.u32 %v4764, 2147483648
        %v4771 = vsel %vm4769, %v4756, %v4770
        %vm4772 = vcmp.eq.s32.totalorder %v4767, 2
        %v4773 = vxor.u32 %v4756, 2147483648
        %v4774 = vsel %vm4772, %v4773, %v4764
        %v4775 = vsel %vm4768, %v4771, %v4774
        %v4776 = vsel %vm4765, nan, %v4775
        %4777 = vst [vmem:[%s237 + $0xe0] sm:$0xff] %v4621
        %4778 = vst [vmem:[%s237 + $0xe8] sm:$0xff] %v4776
        %4780 = vset.pattern.permute.xlu0 0
        %4781 = vperm.xlu0 %4780, %v264
        %v4782 = vpop.permute.xlu0 %4781
        %v4784 = vmul.f32 %v275, %v4782
        %v4785 = vmul.f32 %v276, %v4782
        %4787 = vset.pattern.permute.xlu0 0
        %4788 = vperm.xlu0 %4787, %v272
        %v4789 = vpop.permute.xlu0 %4788
        %v4791 = vadd.f32 %v4784, %v4789
        %v4792 = vadd.f32 %v4785, %v4789
        %v4793 = vand.u32 2147483647, %v4791
        %vm4794 = vcmp.le.f32.partialorder %v4793, 0.7853982
        %vm4795 = vcmp.lt.s32.totalorder %v4791, 0
        %v4796 = vand.u32 %v4791, 2139095040
        %v4797 = vshrl.u32 %v4796, 23
        %v4798 = vsub.s32 %v4797, 127
        %v4799 = vand.u32 2147483647, %v4791
        %v4800 = vand.u32 %v4799, 8388607
        %v4801 = vor.u32 %v4800, 8388608
        %v4802 = vsub.s32 0, %v4801
        %v4803 = vadd.s32 %v4798, 1
        %vm4804 = vcmp.gt.s32.totalorder %v4803, 0
        %v4805 = vsel %vm4804, %v4803, 0
        %v4806 = vshrl.u32 %v4805, 5
        %v4807 = vand.u32 %v4805, 31
        %v4808 = vsub.s32 32, %v4807
        %v4809 = vshrl.u32 683565275, %v4808
        %v4810 = vshll.u32 683565275, %v4807
        %v4811 = vshrl.u32 2475754826, %v4808
        %v4812 = vor.u32 %v4810, %v4811
        %v4813 = vshll.u32 2475754826, %v4807
        %v4814 = vshrl.u32 2131351028, %v4808
        %v4815 = vor.u32 %v4813, %v4814
        %v4816 = vshll.u32 2131351028, %v4807
        %v4817 = vshrl.u32 2102212464, %v4808
        %v4818 = vor.u32 %v4816, %v4817
        %v4819 = vshll.u32 2102212464, %v4807
        %v4820 = vshrl.u32 920167782, %v4808
        %v4821 = vor.u32 %v4819, %v4820
        %v4822 = vshll.u32 920167782, %v4807
        %v4823 = vshrl.u32 1326507024, %v4808
        %v4824 = vor.u32 %v4822, %v4823
        %vm4825 = vcmp.lt.s32.totalorder %v4806, 1
        %vm4826 = vcmp.lt.s32.totalorder %v4806, 2
        %vm4827 = vcmp.lt.s32.totalorder %v4806, 3
        %vm4828 = vcmp.lt.s32.totalorder %v4806, 4
        %v4829 = vsel %vm4825, %v4809, %v4812
        %v4830 = vsel %vm4828, %v4818, 2102212464
        %v4831 = vsel %vm4827, %v4815, %v4830
        %v4832 = vsel %vm4826, %v4829, %v4831
        %v4833 = vsel %vm4825, %v4812, %v4815
        %v4834 = vsel %vm4828, %v4821, 920167782
        %v4835 = vsel %vm4827, %v4818, %v4834
        %v4836 = vsel %vm4826, %v4833, %v4835
        %v4837 = vsel %vm4825, %v4815, %v4818
        %v4838 = vsel %vm4828, %v4824, 1326507024
        %v4839 = vsel %vm4827, %v4821, %v4838
        %v4840 = vsel %vm4826, %v4837, %v4839
        %v4841 = vshll.u32 %v4801, 8
        %v4842 = vand.u32 %v4841, 65535
        %v4843 = vshrl.u32 %v4841, 16
        %v4844 = vand.u32 %v4840, 65535
        %v4845 = vshrl.u32 %v4840, 16
        %v4846 = vmul.u32 %v4842, %v4844
        %v4847 = vmul.u32 %v4842, %v4845
        %v4848 = vmul.u32 %v4843, %v4844
        %v4849 = vmul.u32 %v4843, %v4845
        %v4850 = vshll.u32 %v4847, 16
        %v4851 = vshrl.u32 %v4847, 16
        %v4852 = vshll.u32 %v4848, 16
        %v4853 = vshrl.u32 %v4848, 16
        %vm4854 = vc.u32 %v4846, %v4850
        %v4855 = vsel %vm4854, 1, 0
        %v4856 = vadd.s32 %v4846, %v4850
        %v4857 = vadd.s32 %v4849, %v4855
        %vm4858 = vc.u32 %v4856, %v4852
        %v4859 = vsel %vm4858, 1, 0
        %v4860 = vadd.s32 %v4856, %v4852
        %v4861 = vadd.s32 %v4857, %v4859
        %v4862 = vadd.s32 %v4861, %v4851
        %v4863 = vadd.s32 %v4862, %v4853
        %v4864 = vand.u32 %v4841, 65535
        %v4865 = vshrl.u32 %v4841, 16
        %v4866 = vand.u32 %v4836, 65535
        %v4867 = vshrl.u32 %v4836, 16
        %v4868 = vmul.u32 %v4864, %v4866
        %v4869 = vmul.u32 %v4864, %v4867
        %v4870 = vmul.u32 %v4865, %v4866
        %v4871 = vmul.u32 %v4865, %v4867
        %v4872 = vshll.u32 %v4869, 16
        %v4873 = vshrl.u32 %v4869, 16
        %v4874 = vshll.u32 %v4870, 16
        %v4875 = vshrl.u32 %v4870, 16
        %vm4876 = vc.u32 %v4868, %v4872
        %v4877 = vsel %vm4876, 1, 0
        %v4878 = vadd.s32 %v4868, %v4872
        %v4879 = vadd.s32 %v4871, %v4877
        %vm4880 = vc.u32 %v4878, %v4874
        %v4881 = vsel %vm4880, 1, 0
        %v4882 = vadd.s32 %v4878, %v4874
        %v4883 = vadd.s32 %v4879, %v4881
        %v4884 = vadd.s32 %v4883, %v4873
        %v4885 = vadd.s32 %v4884, %v4875
        %v4886 = vmul.u32 %v4841, %v4832
        %v4887 = vadd.s32 %v4863, %v4882
        %vm4888 = vc.u32 %v4863, %v4882
        %v4889 = vadd.s32 %v4885, 1
        %v4890 = vsel %vm4888, %v4889, %v4885
        %v4891 = vadd.s32 %v4886, %v4890
        %v4892 = vadd.s32 %v4891, 536870912
        %v4893 = vshrl.u32 %v4892, 30
        %v4894 = vshll.u32 %v4893, 30
        %v4895 = vsub.s32 %v4891, %v4894
        %vm4896 = vcmp.lt.s32.totalorder %v4895, 0
        %v4897 = vsub.s32 0, %v4895
        %v4898 = vsel %vm4896, %v4897, %v4895
        %v4899 = vclz %v4898
        %v4900 = vsub.s32 %v4899, 2
        %vm4901 = vcmp.gt.s32.totalorder 0, %v4900
        %v4902 = vsel %vm4901, 0, %v4900
        %v4903 = vsub.s32 32, %v4902
        %v4904 = vshll.u32 %v4895, %v4902
        %v4905 = vshrl.u32 %v4887, %v4903
        %v4906 = vor.u32 %v4904, %v4905
        %v4907 = vsub.s32 4294967266, %v4902
        %v4908 = vadd.s32 %v4907, 127
        %v4909 = vshll.u32 %v4908, 23
        %v4910 = vor.u32 4788187, %v4909
        %v4911 = vand.u32 2147483647, %v4910
        %v4913 = vcvt.s32.f32 %v4906
        %v4914 = vmul.f32 %v4913, %v4911
        %v4915 = vxor.u32 %v4914, 2147483648
        %v4916 = vsel %vm4795, %v4915, %v4914
        %v4917 = vsub.s32 4, %v4893
        %v4918 = vsel %vm4795, %v4917, %v4893
        %v4919 = vsel %vm4794, %v4791, %v4916
        %v4920 = vsel %vm4794, 0, %v4918
        %v4921 = vmul.f32 %v4919, %v4919
        %v4922 = vmul.f32 %v4921, -0.001358992
        %v4923 = vadd.f32 %v4922, 0.041655596
        %v4924 = vmul.f32 %v4921, %v4923
        %v4925 = vadd.f32 %v4924, -0.4999988
        %v4926 = vmul.f32 %v4921, %v4925
        %v4927 = vadd.f32 1.0, %v4926
        %v4928 = vmul.f32 %v4919, %v4919
        %v4929 = vmul.f32 %v4928, -0.00019511016
        %v4930 = vadd.f32 %v4929, 0.008332121
        %v4931 = vmul.f32 %v4928, %v4930
        %v4932 = vadd.f32 %v4931, -0.16666654
        %v4933 = vmul.f32 %v4928, %v4932
        %v4934 = vadd.f32 %v4933, 1.0
        %v4935 = vmul.f32 %v4934, %v4919
        %vm4936 = vweird.f32 %v4791
        %v4937 = vadd.s32 %v4920, 3
        %v4938 = vand.u32 %v4937, 3
        %vm4939 = vcmp.lt.s32.totalorder %v4938, 2
        %vm4940 = vcmp.eq.s32.totalorder %v4938, 0
        %v4941 = vxor.u32 %v4935, 2147483648
        %v4942 = vsel %vm4940, %v4927, %v4941
        %vm4943 = vcmp.eq.s32.totalorder %v4938, 2
        %v4944 = vxor.u32 %v4927, 2147483648
        %v4945 = vsel %vm4943, %v4944, %v4935
        %v4946 = vsel %vm4939, %v4942, %v4945
        %v4947 = vsel %vm4936, nan, %v4946
        %v4948 = vand.u32 2147483647, %v4792
        %vm4949 = vcmp.le.f32.partialorder %v4948, 0.7853982
        %vm4950 = vcmp.lt.s32.totalorder %v4792, 0
        %v4951 = vand.u32 %v4792, 2139095040
        %v4952 = vshrl.u32 %v4951, 23
        %v4953 = vsub.s32 %v4952, 127
        %v4954 = vand.u32 2147483647, %v4792
        %v4955 = vand.u32 %v4954, 8388607
        %v4956 = vor.u32 %v4955, 8388608
        %v4957 = vsub.s32 0, %v4956
        %v4958 = vadd.s32 %v4953, 1
        %vm4959 = vcmp.gt.s32.totalorder %v4958, 0
        %v4960 = vsel %vm4959, %v4958, 0
        %v4961 = vshrl.u32 %v4960, 5
        %v4962 = vand.u32 %v4960, 31
        %v4963 = vsub.s32 32, %v4962
        %v4964 = vshrl.u32 683565275, %v4963
        %v4965 = vshll.u32 683565275, %v4962
        %v4966 = vshrl.u32 2475754826, %v4963
        %v4967 = vor.u32 %v4965, %v4966
        %v4968 = vshll.u32 2475754826, %v4962
        %v4969 = vshrl.u32 2131351028, %v4963
        %v4970 = vor.u32 %v4968, %v4969
        %v4971 = vshll.u32 2131351028, %v4962
        %v4972 = vshrl.u32 2102212464, %v4963
        %v4973 = vor.u32 %v4971, %v4972
        %v4974 = vshll.u32 2102212464, %v4962
        %v4975 = vshrl.u32 920167782, %v4963
        %v4976 = vor.u32 %v4974, %v4975
        %v4977 = vshll.u32 920167782, %v4962
        %v4978 = vshrl.u32 1326507024, %v4963
        %v4979 = vor.u32 %v4977, %v4978
        %vm4980 = vcmp.lt.s32.totalorder %v4961, 1
        %vm4981 = vcmp.lt.s32.totalorder %v4961, 2
        %vm4982 = vcmp.lt.s32.totalorder %v4961, 3
        %vm4983 = vcmp.lt.s32.totalorder %v4961, 4
        %v4984 = vsel %vm4980, %v4964, %v4967
        %v4985 = vsel %vm4983, %v4973, 2102212464
        %v4986 = vsel %vm4982, %v4970, %v4985
        %v4987 = vsel %vm4981, %v4984, %v4986
        %v4988 = vsel %vm4980, %v4967, %v4970
        %v4989 = vsel %vm4983, %v4976, 920167782
        %v4990 = vsel %vm4982, %v4973, %v4989
        %v4991 = vsel %vm4981, %v4988, %v4990
        %v4992 = vsel %vm4980, %v4970, %v4973
        %v4993 = vsel %vm4983, %v4979, 1326507024
        %v4994 = vsel %vm4982, %v4976, %v4993
        %v4995 = vsel %vm4981, %v4992, %v4994
        %v4996 = vshll.u32 %v4956, 8
        %v4997 = vand.u32 %v4996, 65535
        %v4998 = vshrl.u32 %v4996, 16
        %v4999 = vand.u32 %v4995, 65535
        %v5000 = vshrl.u32 %v4995, 16
        %v5001 = vmul.u32 %v4997, %v4999
        %v5002 = vmul.u32 %v4997, %v5000
        %v5003 = vmul.u32 %v4998, %v4999
        %v5004 = vmul.u32 %v4998, %v5000
        %v5005 = vshll.u32 %v5002, 16
        %v5006 = vshrl.u32 %v5002, 16
        %v5007 = vshll.u32 %v5003, 16
        %v5008 = vshrl.u32 %v5003, 16
        %vm5009 = vc.u32 %v5001, %v5005
        %v5010 = vsel %vm5009, 1, 0
        %v5011 = vadd.s32 %v5001, %v5005
        %v5012 = vadd.s32 %v5004, %v5010
        %vm5013 = vc.u32 %v5011, %v5007
        %v5014 = vsel %vm5013, 1, 0
        %v5015 = vadd.s32 %v5011, %v5007
        %v5016 = vadd.s32 %v5012, %v5014
        %v5017 = vadd.s32 %v5016, %v5006
        %v5018 = vadd.s32 %v5017, %v5008
        %v5019 = vand.u32 %v4996, 65535
        %v5020 = vshrl.u32 %v4996, 16
        %v5021 = vand.u32 %v4991, 65535
        %v5022 = vshrl.u32 %v4991, 16
        %v5023 = vmul.u32 %v5019, %v5021
        %v5024 = vmul.u32 %v5019, %v5022
        %v5025 = vmul.u32 %v5020, %v5021
        %v5026 = vmul.u32 %v5020, %v5022
        %v5027 = vshll.u32 %v5024, 16
        %v5028 = vshrl.u32 %v5024, 16
        %v5029 = vshll.u32 %v5025, 16
        %v5030 = vshrl.u32 %v5025, 16
        %vm5031 = vc.u32 %v5023, %v5027
        %v5032 = vsel %vm5031, 1, 0
        %v5033 = vadd.s32 %v5023, %v5027
        %v5034 = vadd.s32 %v5026, %v5032
        %vm5035 = vc.u32 %v5033, %v5029
        %v5036 = vsel %vm5035, 1, 0
        %v5037 = vadd.s32 %v5033, %v5029
        %v5038 = vadd.s32 %v5034, %v5036
        %v5039 = vadd.s32 %v5038, %v5028
        %v5040 = vadd.s32 %v5039, %v5030
        %v5041 = vmul.u32 %v4996, %v4987
        %v5042 = vadd.s32 %v5018, %v5037
        %vm5043 = vc.u32 %v5018, %v5037
        %v5044 = vadd.s32 %v5040, 1
        %v5045 = vsel %vm5043, %v5044, %v5040
        %v5046 = vadd.s32 %v5041, %v5045
        %v5047 = vadd.s32 %v5046, 536870912
        %v5048 = vshrl.u32 %v5047, 30
        %v5049 = vshll.u32 %v5048, 30
        %v5050 = vsub.s32 %v5046, %v5049
        %vm5051 = vcmp.lt.s32.totalorder %v5050, 0
        %v5052 = vsub.s32 0, %v5050
        %v5053 = vsel %vm5051, %v5052, %v5050
        %v5054 = vclz %v5053
        %v5055 = vsub.s32 %v5054, 2
        %vm5056 = vcmp.gt.s32.totalorder 0, %v5055
        %v5057 = vsel %vm5056, 0, %v5055
        %v5058 = vsub.s32 32, %v5057
        %v5059 = vshll.u32 %v5050, %v5057
        %v5060 = vshrl.u32 %v5042, %v5058
        %v5061 = vor.u32 %v5059, %v5060
        %v5062 = vsub.s32 4294967266, %v5057
        %v5063 = vadd.s32 %v5062, 127
        %v5064 = vshll.u32 %v5063, 23
        %v5065 = vor.u32 4788187, %v5064
        %v5066 = vand.u32 2147483647, %v5065
        %v5068 = vcvt.s32.f32 %v5061
        %v5069 = vmul.f32 %v5068, %v5066
        %v5070 = vxor.u32 %v5069, 2147483648
        %v5071 = vsel %vm4950, %v5070, %v5069
        %v5072 = vsub.s32 4, %v5048
        %v5073 = vsel %vm4950, %v5072, %v5048
        %v5074 = vsel %vm4949, %v4792, %v5071
        %v5075 = vsel %vm4949, 0, %v5073
        %v5076 = vmul.f32 %v5074, %v5074
        %v5077 = vmul.f32 %v5076, -0.001358992
        %v5078 = vadd.f32 %v5077, 0.041655596
        %v5079 = vmul.f32 %v5076, %v5078
        %v5080 = vadd.f32 %v5079, -0.4999988
        %v5081 = vmul.f32 %v5076, %v5080
        %v5082 = vadd.f32 1.0, %v5081
        %v5083 = vmul.f32 %v5074, %v5074
        %v5084 = vmul.f32 %v5083, -0.00019511016
        %v5085 = vadd.f32 %v5084, 0.008332121
        %v5086 = vmul.f32 %v5083, %v5085
        %v5087 = vadd.f32 %v5086, -0.16666654
        %v5088 = vmul.f32 %v5083, %v5087
        %v5089 = vadd.f32 %v5088, 1.0
        %v5090 = vmul.f32 %v5089, %v5074
        %vm5091 = vweird.f32 %v4792
        %v5092 = vadd.s32 %v5075, 3
        %v5093 = vand.u32 %v5092, 3
        %vm5094 = vcmp.lt.s32.totalorder %v5093, 2
        %vm5095 = vcmp.eq.s32.totalorder %v5093, 0
        %v5096 = vxor.u32 %v5090, 2147483648
        %v5097 = vsel %vm5095, %v5082, %v5096
        %vm5098 = vcmp.eq.s32.totalorder %v5093, 2
        %v5099 = vxor.u32 %v5082, 2147483648
        %v5100 = vsel %vm5098, %v5099, %v5090
        %v5101 = vsel %vm5094, %v5097, %v5100
        %v5102 = vsel %vm5091, nan, %v5101
        %5103 = vst [vmem:[%s237 + $0x70] sm:$0xff] %v4947
        %5104 = vst [vmem:[%s237 + $0x78] sm:$0xff] %v5102
        %v5105 = vmul.f32 %v281, %v4782
        %v5106 = vmul.f32 %v282, %v4782
        %v5107 = vadd.f32 %v5105, %v4789
        %v5108 = vadd.f32 %v5106, %v4789
        %v5109 = vand.u32 2147483647, %v5107
        %vm5110 = vcmp.le.f32.partialorder %v5109, 0.7853982
        %vm5111 = vcmp.lt.s32.totalorder %v5107, 0
        %v5112 = vand.u32 %v5107, 2139095040
        %v5113 = vshrl.u32 %v5112, 23
        %v5114 = vsub.s32 %v5113, 127
        %v5115 = vand.u32 2147483647, %v5107
        %v5116 = vand.u32 %v5115, 8388607
        %v5117 = vor.u32 %v5116, 8388608
        %v5118 = vsub.s32 0, %v5117
        %v5119 = vadd.s32 %v5114, 1
        %vm5120 = vcmp.gt.s32.totalorder %v5119, 0
        %v5121 = vsel %vm5120, %v5119, 0
        %v5122 = vshrl.u32 %v5121, 5
        %v5123 = vand.u32 %v5121, 31
        %v5124 = vsub.s32 32, %v5123
        %v5125 = vshrl.u32 683565275, %v5124
        %v5126 = vshll.u32 683565275, %v5123
        %v5127 = vshrl.u32 2475754826, %v5124
        %v5128 = vor.u32 %v5126, %v5127
        %v5129 = vshll.u32 2475754826, %v5123
        %v5130 = vshrl.u32 2131351028, %v5124
        %v5131 = vor.u32 %v5129, %v5130
        %v5132 = vshll.u32 2131351028, %v5123
        %v5133 = vshrl.u32 2102212464, %v5124
        %v5134 = vor.u32 %v5132, %v5133
        %v5135 = vshll.u32 2102212464, %v5123
        %v5136 = vshrl.u32 920167782, %v5124
        %v5137 = vor.u32 %v5135, %v5136
        %v5138 = vshll.u32 920167782, %v5123
        %v5139 = vshrl.u32 1326507024, %v5124
        %v5140 = vor.u32 %v5138, %v5139
        %vm5141 = vcmp.lt.s32.totalorder %v5122, 1
        %vm5142 = vcmp.lt.s32.totalorder %v5122, 2
        %vm5143 = vcmp.lt.s32.totalorder %v5122, 3
        %vm5144 = vcmp.lt.s32.totalorder %v5122, 4
        %v5145 = vsel %vm5141, %v5125, %v5128
        %v5146 = vsel %vm5144, %v5134, 2102212464
        %v5147 = vsel %vm5143, %v5131, %v5146
        %v5148 = vsel %vm5142, %v5145, %v5147
        %v5149 = vsel %vm5141, %v5128, %v5131
        %v5150 = vsel %vm5144, %v5137, 920167782
        %v5151 = vsel %vm5143, %v5134, %v5150
        %v5152 = vsel %vm5142, %v5149, %v5151
        %v5153 = vsel %vm5141, %v5131, %v5134
        %v5154 = vsel %vm5144, %v5140, 1326507024
        %v5155 = vsel %vm5143, %v5137, %v5154
        %v5156 = vsel %vm5142, %v5153, %v5155
        %v5157 = vshll.u32 %v5117, 8
        %v5158 = vand.u32 %v5157, 65535
        %v5159 = vshrl.u32 %v5157, 16
        %v5160 = vand.u32 %v5156, 65535
        %v5161 = vshrl.u32 %v5156, 16
        %v5162 = vmul.u32 %v5158, %v5160
        %v5163 = vmul.u32 %v5158, %v5161
        %v5164 = vmul.u32 %v5159, %v5160
        %v5165 = vmul.u32 %v5159, %v5161
        %v5166 = vshll.u32 %v5163, 16
        %v5167 = vshrl.u32 %v5163, 16
        %v5168 = vshll.u32 %v5164, 16
        %v5169 = vshrl.u32 %v5164, 16
        %vm5170 = vc.u32 %v5162, %v5166
        %v5171 = vsel %vm5170, 1, 0
        %v5172 = vadd.s32 %v5162, %v5166
        %v5173 = vadd.s32 %v5165, %v5171
        %vm5174 = vc.u32 %v5172, %v5168
        %v5175 = vsel %vm5174, 1, 0
        %v5176 = vadd.s32 %v5172, %v5168
        %v5177 = vadd.s32 %v5173, %v5175
        %v5178 = vadd.s32 %v5177, %v5167
        %v5179 = vadd.s32 %v5178, %v5169
        %v5180 = vand.u32 %v5157, 65535
        %v5181 = vshrl.u32 %v5157, 16
        %v5182 = vand.u32 %v5152, 65535
        %v5183 = vshrl.u32 %v5152, 16
        %v5184 = vmul.u32 %v5180, %v5182
        %v5185 = vmul.u32 %v5180, %v5183
        %v5186 = vmul.u32 %v5181, %v5182
        %v5187 = vmul.u32 %v5181, %v5183
        %v5188 = vshll.u32 %v5185, 16
        %v5189 = vshrl.u32 %v5185, 16
        %v5190 = vshll.u32 %v5186, 16
        %v5191 = vshrl.u32 %v5186, 16
        %vm5192 = vc.u32 %v5184, %v5188
        %v5193 = vsel %vm5192, 1, 0
        %v5194 = vadd.s32 %v5184, %v5188
        %v5195 = vadd.s32 %v5187, %v5193
        %vm5196 = vc.u32 %v5194, %v5190
        %v5197 = vsel %vm5196, 1, 0
        %v5198 = vadd.s32 %v5194, %v5190
        %v5199 = vadd.s32 %v5195, %v5197
        %v5200 = vadd.s32 %v5199, %v5189
        %v5201 = vadd.s32 %v5200, %v5191
        %v5202 = vmul.u32 %v5157, %v5148
        %v5203 = vadd.s32 %v5179, %v5198
        %vm5204 = vc.u32 %v5179, %v5198
        %v5205 = vadd.s32 %v5201, 1
        %v5206 = vsel %vm5204, %v5205, %v5201
        %v5207 = vadd.s32 %v5202, %v5206
        %v5208 = vadd.s32 %v5207, 536870912
        %v5209 = vshrl.u32 %v5208, 30
        %v5210 = vshll.u32 %v5209, 30
        %v5211 = vsub.s32 %v5207, %v5210
        %vm5212 = vcmp.lt.s32.totalorder %v5211, 0
        %v5213 = vsub.s32 0, %v5211
        %v5214 = vsel %vm5212, %v5213, %v5211
        %v5215 = vclz %v5214
        %v5216 = vsub.s32 %v5215, 2
        %vm5217 = vcmp.gt.s32.totalorder 0, %v5216
        %v5218 = vsel %vm5217, 0, %v5216
        %v5219 = vsub.s32 32, %v5218
        %v5220 = vshll.u32 %v5211, %v5218
        %v5221 = vshrl.u32 %v5203, %v5219
        %v5222 = vor.u32 %v5220, %v5221
        %v5223 = vsub.s32 4294967266, %v5218
        %v5224 = vadd.s32 %v5223, 127
        %v5225 = vshll.u32 %v5224, 23
        %v5226 = vor.u32 4788187, %v5225
        %v5227 = vand.u32 2147483647, %v5226
        %v5229 = vcvt.s32.f32 %v5222
        %v5230 = vmul.f32 %v5229, %v5227
        %v5231 = vxor.u32 %v5230, 2147483648
        %v5232 = vsel %vm5111, %v5231, %v5230
        %v5233 = vsub.s32 4, %v5209
        %v5234 = vsel %vm5111, %v5233, %v5209
        %v5235 = vsel %vm5110, %v5107, %v5232
        %v5236 = vsel %vm5110, 0, %v5234
        %v5237 = vmul.f32 %v5235, %v5235
        %v5238 = vmul.f32 %v5237, -0.001358992
        %v5239 = vadd.f32 %v5238, 0.041655596
        %v5240 = vmul.f32 %v5237, %v5239
        %v5241 = vadd.f32 %v5240, -0.4999988
        %v5242 = vmul.f32 %v5237, %v5241
        %v5243 = vadd.f32 1.0, %v5242
        %v5244 = vmul.f32 %v5235, %v5235
        %v5245 = vmul.f32 %v5244, -0.00019511016
        %v5246 = vadd.f32 %v5245, 0.008332121
        %v5247 = vmul.f32 %v5244, %v5246
        %v5248 = vadd.f32 %v5247, -0.16666654
        %v5249 = vmul.f32 %v5244, %v5248
        %v5250 = vadd.f32 %v5249, 1.0
        %v5251 = vmul.f32 %v5250, %v5235
        %vm5252 = vweird.f32 %v5107
        %v5253 = vadd.s32 %v5236, 3
        %v5254 = vand.u32 %v5253, 3
        %vm5255 = vcmp.lt.s32.totalorder %v5254, 2
        %vm5256 = vcmp.eq.s32.totalorder %v5254, 0
        %v5257 = vxor.u32 %v5251, 2147483648
        %v5258 = vsel %vm5256, %v5243, %v5257
        %vm5259 = vcmp.eq.s32.totalorder %v5254, 2
        %v5260 = vxor.u32 %v5243, 2147483648
        %v5261 = vsel %vm5259, %v5260, %v5251
        %v5262 = vsel %vm5255, %v5258, %v5261
        %v5263 = vsel %vm5252, nan, %v5262
        %v5264 = vand.u32 2147483647, %v5108
        %vm5265 = vcmp.le.f32.partialorder %v5264, 0.7853982
        %vm5266 = vcmp.lt.s32.totalorder %v5108, 0
        %v5267 = vand.u32 %v5108, 2139095040
        %v5268 = vshrl.u32 %v5267, 23
        %v5269 = vsub.s32 %v5268, 127
        %v5270 = vand.u32 2147483647, %v5108
        %v5271 = vand.u32 %v5270, 8388607
        %v5272 = vor.u32 %v5271, 8388608
        %v5273 = vsub.s32 0, %v5272
        %v5274 = vadd.s32 %v5269, 1
        %vm5275 = vcmp.gt.s32.totalorder %v5274, 0
        %v5276 = vsel %vm5275, %v5274, 0
        %v5277 = vshrl.u32 %v5276, 5
        %v5278 = vand.u32 %v5276, 31
        %v5279 = vsub.s32 32, %v5278
        %v5280 = vshrl.u32 683565275, %v5279
        %v5281 = vshll.u32 683565275, %v5278
        %v5282 = vshrl.u32 2475754826, %v5279
        %v5283 = vor.u32 %v5281, %v5282
        %v5284 = vshll.u32 2475754826, %v5278
        %v5285 = vshrl.u32 2131351028, %v5279
        %v5286 = vor.u32 %v5284, %v5285
        %v5287 = vshll.u32 2131351028, %v5278
        %v5288 = vshrl.u32 2102212464, %v5279
        %v5289 = vor.u32 %v5287, %v5288
        %v5290 = vshll.u32 2102212464, %v5278
        %v5291 = vshrl.u32 920167782, %v5279
        %v5292 = vor.u32 %v5290, %v5291
        %v5293 = vshll.u32 920167782, %v5278
        %v5294 = vshrl.u32 1326507024, %v5279
        %v5295 = vor.u32 %v5293, %v5294
        %vm5296 = vcmp.lt.s32.totalorder %v5277, 1
        %vm5297 = vcmp.lt.s32.totalorder %v5277, 2
        %vm5298 = vcmp.lt.s32.totalorder %v5277, 3
        %vm5299 = vcmp.lt.s32.totalorder %v5277, 4
        %v5300 = vsel %vm5296, %v5280, %v5283
        %v5301 = vsel %vm5299, %v5289, 2102212464
        %v5302 = vsel %vm5298, %v5286, %v5301
        %v5303 = vsel %vm5297, %v5300, %v5302
        %v5304 = vsel %vm5296, %v5283, %v5286
        %v5305 = vsel %vm5299, %v5292, 920167782
        %v5306 = vsel %vm5298, %v5289, %v5305
        %v5307 = vsel %vm5297, %v5304, %v5306
        %v5308 = vsel %vm5296, %v5286, %v5289
        %v5309 = vsel %vm5299, %v5295, 1326507024
        %v5310 = vsel %vm5298, %v5292, %v5309
        %v5311 = vsel %vm5297, %v5308, %v5310
        %v5312 = vshll.u32 %v5272, 8
        %v5313 = vand.u32 %v5312, 65535
        %v5314 = vshrl.u32 %v5312, 16
        %v5315 = vand.u32 %v5311, 65535
        %v5316 = vshrl.u32 %v5311, 16
        %v5317 = vmul.u32 %v5313, %v5315
        %v5318 = vmul.u32 %v5313, %v5316
        %v5319 = vmul.u32 %v5314, %v5315
        %v5320 = vmul.u32 %v5314, %v5316
        %v5321 = vshll.u32 %v5318, 16
        %v5322 = vshrl.u32 %v5318, 16
        %v5323 = vshll.u32 %v5319, 16
        %v5324 = vshrl.u32 %v5319, 16
        %vm5325 = vc.u32 %v5317, %v5321
        %v5326 = vsel %vm5325, 1, 0
        %v5327 = vadd.s32 %v5317, %v5321
        %v5328 = vadd.s32 %v5320, %v5326
        %vm5329 = vc.u32 %v5327, %v5323
        %v5330 = vsel %vm5329, 1, 0
        %v5331 = vadd.s32 %v5327, %v5323
        %v5332 = vadd.s32 %v5328, %v5330
        %v5333 = vadd.s32 %v5332, %v5322
        %v5334 = vadd.s32 %v5333, %v5324
        %v5335 = vand.u32 %v5312, 65535
        %v5336 = vshrl.u32 %v5312, 16
        %v5337 = vand.u32 %v5307, 65535
        %v5338 = vshrl.u32 %v5307, 16
        %v5339 = vmul.u32 %v5335, %v5337
        %v5340 = vmul.u32 %v5335, %v5338
        %v5341 = vmul.u32 %v5336, %v5337
        %v5342 = vmul.u32 %v5336, %v5338
        %v5343 = vshll.u32 %v5340, 16
        %v5344 = vshrl.u32 %v5340, 16
        %v5345 = vshll.u32 %v5341, 16
        %v5346 = vshrl.u32 %v5341, 16
        %vm5347 = vc.u32 %v5339, %v5343
        %v5348 = vsel %vm5347, 1, 0
        %v5349 = vadd.s32 %v5339, %v5343
        %v5350 = vadd.s32 %v5342, %v5348
        %vm5351 = vc.u32 %v5349, %v5345
        %v5352 = vsel %vm5351, 1, 0
        %v5353 = vadd.s32 %v5349, %v5345
        %v5354 = vadd.s32 %v5350, %v5352
        %v5355 = vadd.s32 %v5354, %v5344
        %v5356 = vadd.s32 %v5355, %v5346
        %v5357 = vmul.u32 %v5312, %v5303
        %v5358 = vadd.s32 %v5334, %v5353
        %vm5359 = vc.u32 %v5334, %v5353
        %v5360 = vadd.s32 %v5356, 1
        %v5361 = vsel %vm5359, %v5360, %v5356
        %v5362 = vadd.s32 %v5357, %v5361
        %v5363 = vadd.s32 %v5362, 536870912
        %v5364 = vshrl.u32 %v5363, 30
        %v5365 = vshll.u32 %v5364, 30
        %v5366 = vsub.s32 %v5362, %v5365
        %vm5367 = vcmp.lt.s32.totalorder %v5366, 0
        %v5368 = vsub.s32 0, %v5366
        %v5369 = vsel %vm5367, %v5368, %v5366
        %v5370 = vclz %v5369
        %v5371 = vsub.s32 %v5370, 2
        %vm5372 = vcmp.gt.s32.totalorder 0, %v5371
        %v5373 = vsel %vm5372, 0, %v5371
        %v5374 = vsub.s32 32, %v5373
        %v5375 = vshll.u32 %v5366, %v5373
        %v5376 = vshrl.u32 %v5358, %v5374
        %v5377 = vor.u32 %v5375, %v5376
        %v5378 = vsub.s32 4294967266, %v5373
        %v5379 = vadd.s32 %v5378, 127
        %v5380 = vshll.u32 %v5379, 23
        %v5381 = vor.u32 4788187, %v5380
        %v5382 = vand.u32 2147483647, %v5381
        %v5384 = vcvt.s32.f32 %v5377
        %v5385 = vmul.f32 %v5384, %v5382
        %v5386 = vxor.u32 %v5385, 2147483648
        %v5387 = vsel %vm5266, %v5386, %v5385
        %v5388 = vsub.s32 4, %v5364
        %v5389 = vsel %vm5266, %v5388, %v5364
        %v5390 = vsel %vm5265, %v5108, %v5387
        %v5391 = vsel %vm5265, 0, %v5389
        %v5392 = vmul.f32 %v5390, %v5390
        %v5393 = vmul.f32 %v5392, -0.001358992
        %v5394 = vadd.f32 %v5393, 0.041655596
        %v5395 = vmul.f32 %v5392, %v5394
        %v5396 = vadd.f32 %v5395, -0.4999988
        %v5397 = vmul.f32 %v5392, %v5396
        %v5398 = vadd.f32 1.0, %v5397
        %v5399 = vmul.f32 %v5390, %v5390
        %v5400 = vmul.f32 %v5399, -0.00019511016
        %v5401 = vadd.f32 %v5400, 0.008332121
        %v5402 = vmul.f32 %v5399, %v5401
        %v5403 = vadd.f32 %v5402, -0.16666654
        %v5404 = vmul.f32 %v5399, %v5403
        %v5405 = vadd.f32 %v5404, 1.0
        %v5406 = vmul.f32 %v5405, %v5390
        %vm5407 = vweird.f32 %v5108
        %v5408 = vadd.s32 %v5391, 3
        %v5409 = vand.u32 %v5408, 3
        %vm5410 = vcmp.lt.s32.totalorder %v5409, 2
        %vm5411 = vcmp.eq.s32.totalorder %v5409, 0
        %v5412 = vxor.u32 %v5406, 2147483648
        %v5413 = vsel %vm5411, %v5398, %v5412
        %vm5414 = vcmp.eq.s32.totalorder %v5409, 2
        %v5415 = vxor.u32 %v5398, 2147483648
        %v5416 = vsel %vm5414, %v5415, %v5406
        %v5417 = vsel %vm5410, %v5413, %v5416
        %v5418 = vsel %vm5407, nan, %v5417
        %5419 = vst [vmem:[%s237 + $0xf0] sm:$0xff] %v5263
        %5420 = vst [vmem:[%s237 + $0xf8] sm:$0xff] %v5418
        %s5421 = sand.u32 %s138, 1
        %s5422 = scalar_lea.sflag [#allocation3], %s5421
        %s5423 = sand.u32 %s138, 1
        %s5424 = smul.addr %s5423, 256
        %s5425 = scalar_lea.vmem [#allocation2], %s5424
        // Predicated region
        $region37: #{tpu_custom_call.1} parent=35 // pred_check
          %p5426 = pneg %p148
        $region38: #{tpu_custom_call.1} parent=35 // pred_check_branch
          %5428 = sbr.rel (%p5426) target = $region40
        $region39: #{tpu_custom_call.1} parent=35 // pred_region
          %s5429 = smul.u32 2, %s23
          %5431 = vsyncadd %s5422, 0
          %s5432 = smul.addr %s22, 32
          %s5433 = sadd.s32 %s5429, %s5432
          %s5434 = smul.addr %s5433, 8
          %s5435 = scalar_lea.hbm %s4, %s5434
          %s5436 = sshll.u32 %s5425, 4
          %s5437 = int_to_ptr.vmem [resolvable:$true] %s5436
          %s5438 = sshll.u32 %s5435, 4
          %s5439 = int_to_ptr.hbm [resolvable:$true] %s5438
          %5444 = dma.vmem_to_hbm [thread:$0]  %s5437, 4096, %s5439, %s5422, 256, 256, 16
        $region40: #{tpu_custom_call.1} parent=35 // pred_fallthru
          _
      $region36: #{tpu_custom_call.1} parent=5 // pred_fallthru
        _
      %p5445 = scmp.le.s32.totalorder 2, %s13
      // Predicated region
      $region41: #{tpu_custom_call.1} parent=5 // pred_check
        %p5446 = pneg %p5445
      $region42: #{tpu_custom_call.1} parent=5 // pred_check_branch
        %5448 = sbr.rel (%p5446) target = $region44
      $region43: #{tpu_custom_call.1} parent=5 // pred_region
        %s5449 = ssub.s32 %s13, 2
        // Predicated region
        $region45: #{tpu_custom_call.1} parent=43 // pred_check
          %p5450 = pneg %p154
        $region46: #{tpu_custom_call.1} parent=43 // pred_check_branch
          %5452 = sbr.rel (%p5450) target = $region48
        $region47: #{tpu_custom_call.1} parent=43 // pred_region
          %s5453 = sand.u32 %s139, 1
          %s5454 = scalar_lea.sflag [#allocation3], %s5453
          %s5455 = sand.u32 %s139, 1
          %s5456 = smul.addr %s5455, 256
          %s5457 = scalar_lea.vmem [#allocation2], %s5456
          %5459 = dma.done %s5454, 4096
        $region48: #{tpu_custom_call.1} parent=43 // pred_fallthru
          _
      $region44: #{tpu_custom_call.1} parent=5 // pred_fallthru
        _
    $region6: #{tpu_custom_call.1} parent=1 // loop_footer
      %s17 = sadd.s32 1, %s13
    $region7: #{tpu_custom_call.1} parent=1 // loop_footer_branch
      %12 = sbr.rel target = $region3
    $region8: #{tpu_custom_call.1} parent=1 // loop_exit
      _
    %5460 = vsyncpa [#allocation3], 1
    %s5461 = scalar_lea.sflag [#allocation3], 1
    %5462 = vsyncpa %s5461, 1

</llo_original>
